<compile_context>
chip_gen: v6e
topology: v6e:2x2x1
jax: 0.10.0
libtpu: 0.0.40
codegen_flags: <defaults>
</compile_context>

<pallas_src>
import math

import jax
import jax.numpy as jnp
from jax.experimental import pallas as pl
from jax.experimental.pallas import tpu as pltpu

CL1_K = 5      # Chebyshev order
CL1_F = 5      # cl1 output features
POOL = 8       # graph_max_pool size
VP = 1024      # padded node count (lane/MXU aligned; real V = 1000)
NG = 128       # padded pooled-group count (real groups = 125)
HIDDEN = 256   # fc1 output / BatchNorm width (required by the PyTorch forward)
NCLS = 13      # fc2 output
SUBLANE = 8    # f32 sublane depth


# ---------------------------------------------------------------------------
# Fused kernel: streamed combined Chebyshev operators -> bias+ReLU -> max-pool
#               -> fc1 (BN0 folded, accumulated per feature) -> BN/ReLU -> fc2
# ---------------------------------------------------------------------------
def akpgcn_fused_kernel(x_ref, m_ref, clb_ref, w1_ref, b1_ref, bns_ref,
                        bnb_ref, w2_ref, b2_ref, o_ref, h_ref):
    # x_ref  : (B_pad, VP)        bf16 VMEM  zero-padded node signal (resident)
    # m_ref  : (VP, VP)           bf16 VMEM  combined operator block for feature f
    # clb_ref: (CL1_F,)           f32  SMEM  cl1 bias
    # w1_ref : (1, NG, HIDDEN)    bf16 VMEM  fc1 weight slab for feature f (BN0 folded)
    # b1_ref : (1, HIDDEN)        f32  VMEM  fc1 bias (BN0 folded)
    # bns_ref: (n_rest, HIDDEN)   f32  VMEM  remaining BatchNorm scales (eval mode)
    # bnb_ref: (n_rest, HIDDEN)   f32  VMEM  remaining BatchNorm shifts
    # w2_ref : (HIDDEN, NCLS)     bf16 VMEM
    # b2_ref : (1, NCLS)          f32  VMEM
    # o_ref  : (B_pad, NCLS)      f32  VMEM
    # h_ref  : (B_pad, HIDDEN)    f32  VMEM scratch (fc1 accumulator)
    f = pl.program_id(0)

    # Pre-ReLU Chebyshev filter output for feature f over the whole batch:
    #   y_f = x @ M_f  (bf16 operands, f32 accumulation) + cl1 bias.
    y = jnp.dot(x_ref[...], m_ref[...], preferred_element_type=jnp.float32)
    y = jnp.maximum(y + clb_ref[f], 0.0)                     # (B_pad, VP)

    # graph_max_pool(8): the operator columns were permuted so pool group g
    # lives at lanes {j*128 + g}; the pool is a max of eight 128-lane slabs.
    pooled = y[:, 0:NG]
    for j in range(1, POOL):
        pooled = jnp.maximum(pooled, y[:, j * NG:(j + 1) * NG])

    # This feature's slice of fc1 (BatchNorm layer 0 folded into w1/b1).  The
    # small matmul overlaps the DMA of the next 2 MiB operator block.
    contrib = jnp.dot(pooled.astype(jnp.bfloat16), w1_ref[0],
                      preferred_element_type=jnp.float32)    # (B_pad, HIDDEN)

    @pl.when(f == 0)
    def _():
        h_ref[...] = contrib + b1_ref[...]

    @pl.when(f != 0)
    def _():
        h_ref[...] = h_ref[...] + contrib

    # Epilogue on the last feature: ReLU, remaining BN -> ReLU (dropout is the
    # identity in eval mode), then fc2.
    @pl.when(f == CL1_F - 1)
    def _():
        h = jnp.maximum(h_ref[...], 0.0)
        scales = bns_ref[...]
        shifts = bnb_ref[...]
        for i in range(scales.shape[0]):
            h = jnp.maximum(h * scales[i:i + 1, :] + shifts[i:i + 1, :], 0.0)
        o_ref[...] = (jnp.dot(h.astype(jnp.bfloat16), w2_ref[...],
                              preferred_element_type=jnp.float32) + b2_ref[...])


def akpgcn_fused(x_pad, m_big, clb, w1, b1, bns, bnb, w2, b2):
    b_pad = x_pad.shape[0]
    n_rest = bns.shape[0]

    flops = (2 * b_pad * VP * VP * CL1_F          # streamed operator matmuls
             + 2 * b_pad * NG * HIDDEN * CL1_F    # fc1 (per-feature slabs)
             + 2 * b_pad * HIDDEN * NCLS)         # fc2
    ins = (x_pad, m_big, clb, w1, b1, bns, bnb, w2, b2)
    bytes_accessed = sum(int(a.size) * a.dtype.itemsize for a in ins) + b_pad * NCLS * 4

    grid_spec = pltpu.PrefetchScalarGridSpec(
        num_scalar_prefetch=0,
        grid=(CL1_F,),
        in_specs=[
            pl.BlockSpec((b_pad, VP), lambda f: (0, 0)),                 # x (resident)
            pl.BlockSpec((VP, VP), lambda f: (0, f)),                    # operator stream
            pl.BlockSpec(memory_space=pltpu.MemorySpace.SMEM),           # cl1 bias
            pl.BlockSpec((1, NG, HIDDEN), lambda f: (f, 0, 0)),          # fc1 slab f
            pl.BlockSpec((1, HIDDEN), lambda f: (0, 0)),                 # fc1 bias
            pl.BlockSpec((n_rest, HIDDEN), lambda f: (0, 0)),            # BN scales
            pl.BlockSpec((n_rest, HIDDEN), lambda f: (0, 0)),            # BN shifts
            pl.BlockSpec((HIDDEN, NCLS), lambda f: (0, 0)),              # fc2 weight
            pl.BlockSpec((1, NCLS), lambda f: (0, 0)),                   # fc2 bias
        ],
        out_specs=pl.BlockSpec((b_pad, NCLS), lambda f: (0, 0)),
        scratch_shapes=[pltpu.VMEM((b_pad, HIDDEN), jnp.float32)],
    )

    return pl.pallas_call(
        akpgcn_fused_kernel,
        out_shape=jax.ShapeDtypeStruct((b_pad, NCLS), jnp.float32),
        grid_spec=grid_spec,
        compiler_params=pltpu.CompilerParams(
            dimension_semantics=("arbitrary",)),   # feature axis carries the fc1 accumulator
        cost_estimate=pl.CostEstimate(flops=flops, transcendentals=0,
                                      bytes_accessed=bytes_accessed),
    )(*ins)


# ---------------------------------------------------------------------------
# Host-side preparation (done once per graph / parameter set).
# ---------------------------------------------------------------------------
def prepare_inputs(params, l_rescaled):
    V = l_rescaled.shape[0]
    n_groups = V // POOL                          # 125
    hidden = params["fc1_w"].shape[0]             # 256
    assert V % POOL == 0 and V <= VP
    assert n_groups * CL1_F == params["fc1_w"].shape[1]   # 625 (forces V = 1000)
    assert hidden == HIDDEN

    hp = jax.lax.Precision.HIGHEST

    # Chebyshev polynomial operators T_k(L) in f32.
    t_list = [jnp.eye(V, dtype=jnp.float32), l_rescaled.astype(jnp.float32)]
    for _ in range(2, CL1_K):
        t_list.append(2.0 * jnp.dot(l_rescaled, t_list[-1], precision=hp) - t_list[-2])
    T = jnp.stack(t_list, 0)                                       # (K, V, V)

    # Combined per-feature operators: comb[f] = sum_k cl1_w[f,k] * T_k, so that
    # the pre-bias cl1 output is y_f = x @ comb[f]^T.
    comb = jnp.einsum("fk,kvu->fvu", params["cl1_w"], T, precision=hp)   # (F, V, V)
    combT = jnp.transpose(comb, (0, 2, 1))                         # (F, V_in, V_out)

    # Pad the input-node axis to VP with zeros; permute + pad the output-node
    # axis so graph_max_pool(8) becomes an elementwise max over eight 128-lane
    # slabs:  new col n = j*128 + g  <->  old node g*8 + j  (g < 125, j < 8).
    combT = jnp.pad(combT, ((0, 0), (0, VP - V), (0, 1)))          # zero col at idx V
    n = jnp.arange(VP)
    j = n // NG
    g = n % NG
    new2old = jnp.where(g < n_groups, g * POOL + j, V).astype(jnp.int32)
    combT = jnp.take(combT, new2old, axis=2)                       # (F, VP, VP)
    m_big = jnp.transpose(combT, (1, 0, 2)).reshape(VP, CL1_F * VP).astype(jnp.bfloat16)

    # fc1 weight regrouped per (feature, pooled group); BatchNorm layer 0 folded.
    scale0 = params["bn_scale"][0]
    shift0 = params["bn_shift"][0]
    w1 = params["fc1_w"].T.reshape(n_groups, CL1_F, hidden)        # rows = g*5 + f
    w1 = jnp.transpose(w1, (1, 0, 2))                              # (F, 125, 256)
    # GUARD: padded pool groups g=125..127 carry max(cl1_b_f, 0) after the
    # in-kernel bias+ReLU; the zero rows added here are what keeps them from
    # leaking into fc1.  Do not change this padding without changing the bias.
    w1 = jnp.pad(w1, ((0, 0), (0, NG - n_groups), (0, 0)))         # (F, 128, 256)
    w1 = (w1 * scale0).astype(jnp.bfloat16)
    b1 = (params["fc1_b"] * scale0 + shift0).reshape(1, hidden).astype(jnp.float32)

    if params["bn_scale"].shape[0] > 1:
        bns = params["bn_scale"][1:].astype(jnp.float32)
        bnb = params["bn_shift"][1:].astype(jnp.float32)
    else:  # no remaining BN layers: identity affine (extra ReLU is a no-op after ReLU)
        bns = jnp.ones((1, hidden), jnp.float32)
        bnb = jnp.zeros((1, hidden), jnp.float32)

    return dict(m=m_big, clb=params["cl1_b"].astype(jnp.float32),
                w1=w1, b1=b1, bns=bns, bnb=bnb,
                w2=params["fc2_w"].T.astype(jnp.bfloat16),
                b2=params["fc2_b"].reshape(1, -1).astype(jnp.float32))


def akpgcn_forward(x, prep):
    # Tiny per-call glue: zero-pad the batch to 8 sublanes and the node axis to
    # 1024 lanes (the output-node permutation is baked into the operators).
    B, V = x.shape
    b_pad = -(-B // SUBLANE) * SUBLANE
    x_pad = jnp.zeros((b_pad, VP), jnp.bfloat16).at[:B, :V].set(x.astype(jnp.bfloat16))
    out = akpgcn_fused(x_pad, prep["m"], prep["clb"], prep["w1"], prep["b1"],
                       prep["bns"], prep["bnb"], prep["w2"], prep["b2"])
    return out[:B]                                                  # (B, 13)


# ---------------------------------------------------------------------------
# Deterministic parameter / graph construction.
# ---------------------------------------------------------------------------
def init_params(key, hidden_channels=256, num_layers=3):
    # hidden_channels must be 256 for BatchNorm1d(hidden) to apply to fc1's
    # output, exactly as the PyTorch forward() requires.
    ks = jax.random.split(key, 6)

    def linear(kw, kb, fan_in, fan_out):
        bound = 1.0 / math.sqrt(fan_in)
        w = jax.random.uniform(kw, (fan_out, fan_in), jnp.float32, -bound, bound)
        b = jax.random.uniform(kb, (fan_out,), jnp.float32, -bound, bound)
        return w, b

    cl1_w, cl1_b = linear(ks[0], ks[1], 5, 5)
    fc1_w, fc1_b = linear(ks[2], ks[3], 625, 256)
    fc2_w, fc2_b = linear(ks[4], ks[5], 256, 13)

    n_bn = num_layers - 1
    eps = 1e-5
    gamma = jnp.ones((n_bn, hidden_channels), jnp.float32)
    beta = jnp.zeros((n_bn, hidden_channels), jnp.float32)
    r_mean = jnp.zeros((n_bn, hidden_channels), jnp.float32)
    r_var = jnp.ones((n_bn, hidden_channels), jnp.float32)
    bn_scale = gamma / jnp.sqrt(r_var + eps)
    bn_shift = beta - r_mean * bn_scale

    # TODO(synk): the GCNConv layers in self.convs are constructed but never
    # invoked by forward(); they are not materialized here.
    return dict(cl1_w=cl1_w, cl1_b=cl1_b,
                fc1_w=fc1_w, fc1_b=fc1_b,
                fc2_w=fc2_w, fc2_b=fc2_b,
                bn_scale=bn_scale, bn_shift=bn_shift)


def build_rescaled_laplacian(key, V):
    # Random symmetric graph -> normalized Laplacian -> ChebNet rescaling (lmax = 2).
    r = jax.random.uniform(key, (V, V), jnp.float32)
    a = (((r + r.T) * 0.5) > 0.9).astype(jnp.float32)
    a = a * (1.0 - jnp.eye(V, dtype=jnp.float32))
    deg = a.sum(axis=1)
    dinv = 1.0 / jnp.sqrt(jnp.maximum(deg, 1.0))
    lap = jnp.eye(V, dtype=jnp.float32) - (dinv[:, None] * a) * dinv[None, :]
    lmax = 2.0
    return (2.0 / lmax) * lap - jnp.eye(V, dtype=jnp.float32)


# ---------------------------------------------------------------------------
# Pure-JAX reference (mirrors the PyTorch forward, f32 highest precision).
# ---------------------------------------------------------------------------
def forward_ref(x, l_rescaled, p):
    hp = jax.lax.Precision.HIGHEST
    B, V = x.shape
    t0 = x.T                                              # (V, B), Fin = 1
    ts = [t0, jnp.dot(l_rescaled, t0, precision=hp)]
    for _ in range(2, CL1_K):
        ts.append(2.0 * jnp.dot(l_rescaled, ts[-1], precision=hp) - ts[-2])
    X = jnp.stack(ts, 0)                                  # (K, V, B)
    X = jnp.transpose(X, (2, 1, 0)).reshape(B * V, CL1_K)
    y = jnp.dot(X, p["cl1_w"].T, precision=hp) + p["cl1_b"]
    y = jnp.maximum(y, 0.0).reshape(B, V, CL1_F)
    y = y.reshape(B, V // POOL, POOL, CL1_F).max(axis=2).reshape(B, -1)
    h = jnp.dot(y, p["fc1_w"].T, precision=hp) + p["fc1_b"]
    for i in range(p["bn_scale"].shape[0]):
        h = jnp.maximum(h * p["bn_scale"][i] + p["bn_shift"][i], 0.0)
    return jnp.dot(h, p["fc2_w"].T, precision=hp) + p["fc2_b"]


if __name__ == "__main__":
    key = jax.random.PRNGKey(0)
    k_x, k_l, k_p = jax.random.split(key, 3)

    B, V = 2, 1000  # V = 1000 is forced by the model: (V/8) * CL1_F must equal 625.
    x = jax.random.normal(k_x, (B, V), jnp.float32)
    l_rescaled = build_rescaled_laplacian(k_l, V)
    params = init_params(k_p, hidden_channels=256, num_layers=3)

    prep = prepare_inputs(params, l_rescaled)   # one-time graph / weight preprocessing
    fwd = jax.jit(akpgcn_forward)

    out = fwd(x, prep)
    out = jax.block_until_ready(out)

    assert out.shape == (B, 13)
    assert bool(jnp.all(jnp.isfinite(out)))
    ref = forward_ref(x, l_rescaled, params)
    assert bool(jnp.allclose(out, ref, rtol=5e-2, atol=5e-2))
    print("KERNEL_OK")
</pallas_src>

<mosaic_0001>
module attributes {stable_mosaic.version = 11 : i64} {
  func.func @akpgcn_fused_kernel(%arg0: i32, %arg1: memref<8x1024xbf16, #tpu.memory_space<vmem>>, %arg2: memref<1024x1024xbf16, #tpu.memory_space<vmem>>, %arg3: memref<5xf32, #tpu.memory_space<smem>>, %arg4: memref<1x128x256xbf16, #tpu.memory_space<vmem>>, %arg5: memref<1x256xf32, #tpu.memory_space<vmem>>, %arg6: memref<1x256xf32, #tpu.memory_space<vmem>>, %arg7: memref<1x256xf32, #tpu.memory_space<vmem>>, %arg8: memref<256x13xbf16, #tpu.memory_space<vmem>>, %arg9: memref<1x13xf32, #tpu.memory_space<vmem>>, %arg10: memref<8x13xf32, #tpu.memory_space<vmem>>, %arg11: memref<8x256xf32, #tpu.memory_space<vmem>>) attributes {dimension_semantics = [#tpu.dimension_semantics<arbitrary>], iteration_bounds = array<i64: 5>, scalar_prefetch = 0 : i64, scratch_operands = 1 : i64, tpu.core_type = #tpu.core_type<tc>, window_params = [{pipeline_mode = #tpu.pipeline_mode<synchronous>, transform_indices = @transform_0, window_bounds = array<i64: 8, 1024>}, {transform_indices = @transform_1, window_bounds = array<i64: 1024, 1024>}, {transform_indices = @transform_2, window_bounds = array<i64: 5>}, {transform_indices = @transform_3, window_bounds = array<i64: 1, 128, 256>}, {pipeline_mode = #tpu.pipeline_mode<synchronous>, transform_indices = @transform_4, window_bounds = array<i64: 1, 256>}, {pipeline_mode = #tpu.pipeline_mode<synchronous>, transform_indices = @transform_5, window_bounds = array<i64: 1, 256>}, {pipeline_mode = #tpu.pipeline_mode<synchronous>, transform_indices = @transform_6, window_bounds = array<i64: 1, 256>}, {pipeline_mode = #tpu.pipeline_mode<synchronous>, transform_indices = @transform_7, window_bounds = array<i64: 256, 13>}, {pipeline_mode = #tpu.pipeline_mode<synchronous>, transform_indices = @transform_8, window_bounds = array<i64: 1, 13>}, {pipeline_mode = #tpu.pipeline_mode<synchronous>, transform_indices = @transform_9, window_bounds = array<i64: 8, 13>}]} {
    %c0 = arith.constant 0 : index
    %c0_0 = arith.constant 0 : index
    %0 = vector.load %arg1[%c0, %c0_0] : memref<8x1024xbf16, #tpu.memory_space<vmem>>, vector<8x1024xbf16>
    %c0_1 = arith.constant 0 : index
    %c0_2 = arith.constant 0 : index
    %1 = vector.load %arg2[%c0_1, %c0_2] : memref<1024x1024xbf16, #tpu.memory_space<vmem>>, vector<1024x1024xbf16>
    %cst = arith.constant dense<0.000000e+00> : vector<8x1024xf32>
    %2 = tpu.matmul %0, %1, %cst {dimension_numbers = #tpu.dot_dimension_numbers<[1], [0], [0], [1], [0, 0, 1, 1], [], []>} : vector<8x1024xbf16>, vector<1024x1024xbf16>, vector<8x1024xf32> -> vector<8x1024xf32>
    %3 = arith.index_cast %arg0 : i32 to index
    %4 = memref.load %arg3[%3] : memref<5xf32, #tpu.memory_space<smem>>
    %5 = vector.broadcast %4 : f32 to vector<8x1024xf32>
    %6 = arith.addf %2, %5 : vector<8x1024xf32>
    %cst_3 = arith.constant 0.000000e+00 : f32
    %7 = vector.broadcast %cst_3 : f32 to vector<8x1024xf32>
    %8 = arith.maximumf %6, %7 : vector<8x1024xf32>
    %9 = vector.extract_strided_slice %8 {offsets = [0, 0], sizes = [8, 128], strides = [1, 1]} : vector<8x1024xf32> to vector<8x128xf32>
    %10 = vector.extract_strided_slice %8 {offsets = [0, 128], sizes = [8, 128], strides = [1, 1]} : vector<8x1024xf32> to vector<8x128xf32>
    %11 = arith.maximumf %9, %10 : vector<8x128xf32>
    %12 = vector.extract_strided_slice %8 {offsets = [0, 256], sizes = [8, 128], strides = [1, 1]} : vector<8x1024xf32> to vector<8x128xf32>
    %13 = arith.maximumf %11, %12 : vector<8x128xf32>
    %14 = vector.extract_strided_slice %8 {offsets = [0, 384], sizes = [8, 128], strides = [1, 1]} : vector<8x1024xf32> to vector<8x128xf32>
    %15 = arith.maximumf %13, %14 : vector<8x128xf32>
    %16 = vector.extract_strided_slice %8 {offsets = [0, 512], sizes = [8, 128], strides = [1, 1]} : vector<8x1024xf32> to vector<8x128xf32>
    %17 = arith.maximumf %15, %16 : vector<8x128xf32>
    %18 = vector.extract_strided_slice %8 {offsets = [0, 640], sizes = [8, 128], strides = [1, 1]} : vector<8x1024xf32> to vector<8x128xf32>
    %19 = arith.maximumf %17, %18 : vector<8x128xf32>
    %20 = vector.extract_strided_slice %8 {offsets = [0, 768], sizes = [8, 128], strides = [1, 1]} : vector<8x1024xf32> to vector<8x128xf32>
    %21 = arith.maximumf %19, %20 : vector<8x128xf32>
    %22 = vector.extract_strided_slice %8 {offsets = [0, 896], sizes = [8, 128], strides = [1, 1]} : vector<8x1024xf32> to vector<8x128xf32>
    %23 = arith.maximumf %21, %22 : vector<8x128xf32>
    %24 = arith.truncf %23 : vector<8x128xf32> to vector<8x128xbf16>
    %c0_4 = arith.constant 0 : index
    %c0_5 = arith.constant 0 : index
    %c0_6 = arith.constant 0 : index
    %25 = vector.load %arg4[%c0_4, %c0_5, %c0_6] : memref<1x128x256xbf16, #tpu.memory_space<vmem>>, vector<1x128x256xbf16>
    %26 = vector.shape_cast %25 : vector<1x128x256xbf16> to vector<128x256xbf16>
    %cst_7 = arith.constant dense<0.000000e+00> : vector<8x256xf32>
    %27 = tpu.matmul %24, %26, %cst_7 {dimension_numbers = #tpu.dot_dimension_numbers<[1], [0], [0], [1], [0, 0, 1, 1], [], []>} : vector<8x128xbf16>, vector<128x256xbf16>, vector<8x256xf32> -> vector<8x256xf32>
    %c0_i32 = arith.constant 0 : i32
    %28 = arith.cmpi eq, %arg0, %c0_i32 : i32
    %29 = arith.extui %28 : i1 to i32
    %c0_i32_8 = arith.constant 0 : i32
    %30 = arith.cmpi ne, %29, %c0_i32_8 : i32
    scf.if %30 {
      %c0_12 = arith.constant 0 : index
      %c0_13 = arith.constant 0 : index
      %37 = vector.load %arg5[%c0_12, %c0_13] : memref<1x256xf32, #tpu.memory_space<vmem>>, vector<1x256xf32>
      %38 = vector.broadcast %37 : vector<1x256xf32> to vector<8x256xf32>
      %39 = arith.addf %27, %38 : vector<8x256xf32>
      %c0_14 = arith.constant 0 : index
      %c0_15 = arith.constant 0 : index
      %40 = vector.load %arg11[%c0_14, %c0_15] : memref<8x256xf32, #tpu.memory_space<vmem>>, vector<8x256xf32>
      tpu.vector_store %arg11[%c0_14, %c0_15], %39 {strides = array<i32>} : memref<8x256xf32, #tpu.memory_space<vmem>>, vector<8x256xf32>,
    } else {
    }
    %c0_i32_9 = arith.constant 0 : i32
    %31 = arith.cmpi ne, %arg0, %c0_i32_9 : i32
    %32 = arith.extui %31 : i1 to i32
    %c0_i32_10 = arith.constant 0 : i32
    %33 = arith.cmpi ne, %32, %c0_i32_10 : i32
    scf.if %33 {
      %c0_12 = arith.constant 0 : index
      %c0_13 = arith.constant 0 : index
      %37 = vector.load %arg11[%c0_12, %c0_13] : memref<8x256xf32, #tpu.memory_space<vmem>>, vector<8x256xf32>
      %38 = arith.addf %37, %27 : vector<8x256xf32>
      %c0_14 = arith.constant 0 : index
      %c0_15 = arith.constant 0 : index
      %39 = vector.load %arg11[%c0_14, %c0_15] : memref<8x256xf32, #tpu.memory_space<vmem>>, vector<8x256xf32>
      tpu.vector_store %arg11[%c0_14, %c0_15], %38 {strides = array<i32>} : memref<8x256xf32, #tpu.memory_space<vmem>>, vector<8x256xf32>,
    } else {
    }
    %c4_i32 = arith.constant 4 : i32
    %34 = arith.cmpi eq, %arg0, %c4_i32 : i32
    %35 = arith.extui %34 : i1 to i32
    %c0_i32_11 = arith.constant 0 : i32
    %36 = arith.cmpi ne, %35, %c0_i32_11 : i32
    scf.if %36 {
      %c0_12 = arith.constant 0 : index
      %c0_13 = arith.constant 0 : index
      %37 = vector.load %arg11[%c0_12, %c0_13] : memref<8x256xf32, #tpu.memory_space<vmem>>, vector<8x256xf32>
      %cst_14 = arith.constant 0.000000e+00 : f32
      %38 = vector.broadcast %cst_14 : f32 to vector<8x256xf32>
      %39 = arith.maximumf %37, %38 : vector<8x256xf32>
      %c0_15 = arith.constant 0 : index
      %c0_16 = arith.constant 0 : index
      %40 = vector.load %arg6[%c0_15, %c0_16] : memref<1x256xf32, #tpu.memory_space<vmem>>, vector<1x256xf32>
      %c0_17 = arith.constant 0 : index
      %c0_18 = arith.constant 0 : index
      %41 = vector.load %arg7[%c0_17, %c0_18] : memref<1x256xf32, #tpu.memory_space<vmem>>, vector<1x256xf32>
      %42 = vector.broadcast %40 : vector<1x256xf32> to vector<8x256xf32>
      %43 = arith.mulf %39, %42 : vector<8x256xf32>
      %44 = vector.broadcast %41 : vector<1x256xf32> to vector<8x256xf32>
      %45 = arith.addf %43, %44 : vector<8x256xf32>
      %cst_19 = arith.constant 0.000000e+00 : f32
      %46 = vector.broadcast %cst_19 : f32 to vector<8x256xf32>
      %47 = arith.maximumf %45, %46 : vector<8x256xf32>
      %48 = arith.truncf %47 : vector<8x256xf32> to vector<8x256xbf16>
      %c0_20 = arith.constant 0 : index
      %c0_21 = arith.constant 0 : index
      %49 = vector.load %arg8[%c0_20, %c0_21] : memref<256x13xbf16, #tpu.memory_space<vmem>>, vector<256x13xbf16>
      %cst_22 = arith.constant dense<0.000000e+00> : vector<8x13xf32>
      %50 = tpu.matmul %48, %49, %cst_22 {dimension_numbers = #tpu.dot_dimension_numbers<[1], [0], [0], [1], [0, 0, 1, 1], [], []>} : vector<8x256xbf16>, vector<256x13xbf16>, vector<8x13xf32> -> vector<8x13xf32>
      %c0_23 = arith.constant 0 : index
      %c0_24 = arith.constant 0 : index
      %51 = vector.load %arg9[%c0_23, %c0_24] : memref<1x13xf32, #tpu.memory_space<vmem>>, vector<1x13xf32>
      %52 = vector.broadcast %51 : vector<1x13xf32> to vector<8x13xf32>
      %53 = arith.addf %50, %52 : vector<8x13xf32>
      %c0_25 = arith.constant 0 : index
      %c0_26 = arith.constant 0 : index
      %54 = vector.load %arg10[%c0_25, %c0_26] : memref<8x13xf32, #tpu.memory_space<vmem>>, vector<8x13xf32>
      tpu.vector_store %arg10[%c0_25, %c0_26], %53 {strides = array<i32>} : memref<8x13xf32, #tpu.memory_space<vmem>>, vector<8x13xf32>,
    } else {
    }
    return
  }
  func.func @transform_0(%arg0: i32) -> (i32, i32) {
    %c0_i32 = arith.constant 0 : i32
    %c0_i32_0 = arith.constant 0 : i32
    %c0_i32_1 = arith.constant 0 : i32
    return %c0_i32, %c0_i32_0 : i32, i32
  }
  func.func @transform_1(%arg0: i32) -> (i32, i32) {
    %c0_i32 = arith.constant 0 : i32
    %c0_i32_0 = arith.constant 0 : i32
    return %c0_i32, %arg0 : i32, i32
  }
  func.func @transform_2(%arg0: i32) -> i32 {
    %c0_i32 = arith.constant 0 : i32
    %c0_i32_0 = arith.constant 0 : i32
    return %c0_i32 : i32
  }
  func.func @transform_3(%arg0: i32) -> (i32, i32, i32) {
    %c0_i32 = arith.constant 0 : i32
    %c0_i32_0 = arith.constant 0 : i32
    %c0_i32_1 = arith.constant 0 : i32
    return %arg0, %c0_i32, %c0_i32_0 : i32, i32, i32
  }
  func.func @transform_4(%arg0: i32) -> (i32, i32) {
    %c0_i32 = arith.constant 0 : i32
    %c0_i32_0 = arith.constant 0 : i32
    %c0_i32_1 = arith.constant 0 : i32
    return %c0_i32, %c0_i32_0 : i32, i32
  }
  func.func @transform_5(%arg0: i32) -> (i32, i32) {
    %c0_i32 = arith.constant 0 : i32
    %c0_i32_0 = arith.constant 0 : i32
    %c0_i32_1 = arith.constant 0 : i32
    return %c0_i32, %c0_i32_0 : i32, i32
  }
  func.func @transform_6(%arg0: i32) -> (i32, i32) {
    %c0_i32 = arith.constant 0 : i32
    %c0_i32_0 = arith.constant 0 : i32
    %c0_i32_1 = arith.constant 0 : i32
    return %c0_i32, %c0_i32_0 : i32, i32
  }
  func.func @transform_7(%arg0: i32) -> (i32, i32) {
    %c0_i32 = arith.constant 0 : i32
    %c0_i32_0 = arith.constant 0 : i32
    %c0_i32_1 = arith.constant 0 : i32
    return %c0_i32, %c0_i32_0 : i32, i32
  }
  func.func @transform_8(%arg0: i32) -> (i32, i32) {
    %c0_i32 = arith.constant 0 : i32
    %c0_i32_0 = arith.constant 0 : i32
    %c0_i32_1 = arith.constant 0 : i32
    return %c0_i32, %c0_i32_0 : i32, i32
  }
  func.func @transform_9(%arg0: i32) -> (i32, i32) {
    %c0_i32 = arith.constant 0 : i32
    %c0_i32_0 = arith.constant 0 : i32
    %c0_i32_1 = arith.constant 0 : i32
    return %c0_i32, %c0_i32_0 : i32, i32
  }
}

</mosaic_0001>

<llo_original>
// kernel: akpgcn_forward.1
$region0: #{akpgcn_forward.1}
  #allocation0 [shape = 'u32[]', space=smem, size = 0x4, offset = 0x4, fixed_abs, tag = 'smem constant byte address 0x4 - core index']
  #allocation1 [shape = 'u32[144,128]{1,0:T(1,128)}', space=vmem, size = 0x12000, scoped, tag = 'internal scratch']
  #allocation2 [shape = 'f32[8,256]{1,0:T(8,128)}', space=vmem, size = 0x2000, scoped, tag = 'scratch operand']
  %s0 = inlined_call_operand.vmem [shape: bf16[8,1024], index: 0, kind: input, shape index: {}]
  %s1 = inlined_call_operand.hbm [shape: bf16[1024,5120], index: 1, kind: input, shape index: {}]
  %s2 = inlined_call_operand.hbm [shape: f32[5], index: 2, kind: input, shape index: {}]
  %s3 = inlined_call_operand.hbm [shape: bf16[5,128,256], index: 3, kind: input, shape index: {}]
  %s4 = inlined_call_operand.hbm [shape: f32[1,256], index: 4, kind: input, shape index: {}]
  %s5 = inlined_call_operand.hbm [shape: f32[1,256], index: 5, kind: input, shape index: {}]
  %s6 = inlined_call_operand.hbm [shape: f32[1,256], index: 6, kind: input, shape index: {}]
  %s7 = inlined_call_operand.vmem [shape: bf16[256,13], index: 7, kind: input, shape index: {}]
  %s8 = inlined_call_operand.hbm [shape: f32[1,13], index: 8, kind: input, shape index: {}]
  %s9 = inlined_call_operand.vmem [shape: f32[8,13], index: 9, kind: output, shape index: {}]
  %s10 = sld [smem:[#allocation0]]
  $region109: #{akpgcn_forward.1} parent=0
    _
  %s12 = ssub.s32 1, %s10
  %s13 = scalar_select 0, %s12, %s10
  $region1: #{akpgcn_forward.1} parent=0
    #allocation3 [shape = 'u8[4194304]{0}', space=vmem, size = 0x400000, scoped, tag = 'input window, operand 1']
    #allocation4 [shape = 's32[2]{0}', space=sflag, size = 0x8, scoped, tag = 'scoped memory for akpgcn_forward.1']
    #allocation5 [shape = 's32[2]{0}', space=sflag, size = 0x8, scoped, tag = 'scoped memory for akpgcn_forward.1']
    #allocation6 [shape = 'u8[512]{0}', space=smem, size = 0x200, scoped, tag = 'input window, operand 2, single buffered']
    #allocation7 [shape = 'u8[131072]{0}', space=vmem, size = 0x20000, scoped, tag = 'input window, operand 3']
    #allocation8 [shape = 's32[2]{0}', space=sflag, size = 0x8, scoped, tag = 'scoped memory for akpgcn_forward.1']
    #allocation9 [shape = 'u8[1024]{0}', space=vmem, size = 0x400, scoped, tag = 'input window, operand 4, single buffered']
    #allocation10 [shape = 'u8[1024]{0}', space=vmem, size = 0x400, scoped, tag = 'input window, operand 5, single buffered']
    #allocation11 [shape = 's32[1]{0}', space=sflag, size = 0x4, scoped, tag = 'scoped memory for akpgcn_forward.1']
    #allocation12 [shape = 'u8[1024]{0}', space=vmem, size = 0x400, scoped, tag = 'input window, operand 6, single buffered']
    #allocation13 [shape = 'u8[512]{0}', space=vmem, size = 0x400, scoped, tag = 'input window, operand 8, single buffered']
    #allocation14 [shape = 's32[1]{0}', space=sflag, size = 0x4, scoped, tag = 'scoped memory for akpgcn_forward.1']
    %14 = vsyncpa [#allocation4], 0
    %s15 = scalar_lea.sflag [#allocation4], 1
    %16 = vsyncpa %s15, 0
    %17 = vsyncpa [#allocation5], 0
    %18 = vsyncpa [#allocation8], 0
    %s19 = scalar_lea.sflag [#allocation8], 1
    %20 = vsyncpa %s19, 0
    %21 = vsyncpa [#allocation11], 0
    %22 = vsyncpa [#allocation14], 0
    loop: start=0, step=1, limit=7
    $region2: #{akpgcn_forward.1} parent=1 // loop_pre_header
      _
    $region3: #{akpgcn_forward.1} parent=1 // loop_header
      %s24 = sphi 0, %s28
      %p25 = scmp.ge.s32.totalorder %s24, 7
      %s32 = sphi 0, %s32
      %s34 = sphi 0, %s32
      %s35 = sphi 0, %s34
      %s49 = sphi 0, %s35
      %s55 = sphi 0, %s57
      %s58 = sphi 0, %s55
      %s59 = sphi 0, %s58
      %s75 = sphi 0, %s59
      %s79 = sphi 0, %s79
      %s81 = sphi 0, %s79
      %s82 = sphi 0, %s81
      %s96 = sphi 0, %s82
      %s102 = sphi 0, %s104
      %s105 = sphi 0, %s102
      %s106 = sphi 0, %s105
      %s122 = sphi 0, %s106
      %s126 = sphi 0, %s126
      %s128 = sphi 0, %s126
      %s129 = sphi 0, %s128
      %s143 = sphi 0, %s129
      %s147 = sphi 0, %s147
      %s149 = sphi 0, %s147
      %s150 = sphi 0, %s149
      %s164 = sphi 0, %s150
      %s168 = sphi 0, %s168
      %s170 = sphi 0, %s168
      %s171 = sphi 0, %s170
      %s185 = sphi 0, %s171
      %s189 = sphi 0, %s189
      %s191 = sphi 0, %s189
      %s192 = sphi 0, %s191
      %s206 = sphi 0, %s192
      %s210 = sphi 0, %s210
      %s212 = sphi 0, %s210
      %s213 = sphi 0, %s212
      %s227 = sphi 0, %s213
      %s231 = sphi 0, %s231
      %s233 = sphi 0, %s231
      %s234 = sphi 0, %s233
      %s248 = sphi 0, %s234
    $region4: #{akpgcn_forward.1} parent=1 // loop_header_branch
      %27 = sbr.rel (%p25) target = $region8
    $region5: #{akpgcn_forward.1} parent=1 // loop_body
      %s29 = ssub.s32 %s24, 1
      %s30 = ssub.s32 %s24, 2
      %s31 = sadd.s32 %s24, 1
      %s33 = sadd.s32 %s32, 1
      %p36 = scmp.eq.s32.totalorder %s24, 4
      %p37 = scmp.ne.s32.totalorder %s32, %s34
      %p38 = scmp.eq.s32.totalorder %s24, 0
      %p39 = por %p37, %p38
      %p40 = scmp.ne.s32.totalorder %s32, %s34
      %p41 = scmp.eq.s32.totalorder %s29, 4
      %p42 = por %p40, %p41
      %p43 = scmp.ne.s32.totalorder %s34, %s35
      %p44 = scmp.eq.s32.totalorder %s29, 0
      %p45 = por %p43, %p44
      %p46 = scmp.ne.s32.totalorder %s34, %s35
      %p47 = scmp.eq.s32.totalorder %s30, 4
      %p48 = por %p46, %p47
      %p50 = scmp.ne.s32.totalorder %s35, %s49
      %p51 = scmp.eq.s32.totalorder %s30, 0
      %p52 = por %p50, %p51
      %s53 = ssub.s32 %s24, %s31
      %p54 = scmp.eq.s32.totalorder %s53, 0
      %s56 = sadd.s32 %s55, 1
      %s57 = scalar_select %p54, %s55, %s56
      %p60 = pneg %p54
      %p61 = scmp.eq.s32.totalorder %s24, 4
      %p62 = por %p60, %p61
      %p63 = scmp.ne.s32.totalorder %s55, %s58
      %p64 = scmp.eq.s32.totalorder %s24, 0
      %p65 = por %p63, %p64
      %p66 = scmp.ne.s32.totalorder %s55, %s58
      %p67 = scmp.eq.s32.totalorder %s29, 4
      %p68 = por %p66, %p67
      %p69 = scmp.ne.s32.totalorder %s58, %s59
      %p70 = scmp.eq.s32.totalorder %s29, 0
      %p71 = por %p69, %p70
      %p72 = scmp.ne.s32.totalorder %s58, %s59
      %p73 = scmp.eq.s32.totalorder %s30, 4
      %p74 = por %p72, %p73
      %p76 = scmp.ne.s32.totalorder %s59, %s75
      %p77 = scmp.eq.s32.totalorder %s30, 0
      %p78 = por %p76, %p77
      %s80 = sadd.s32 %s79, 1
      %p83 = scmp.eq.s32.totalorder %s24, 4
      %p84 = scmp.ne.s32.totalorder %s79, %s81
      %p85 = scmp.eq.s32.totalorder %s24, 0
      %p86 = por %p84, %p85
      %p87 = scmp.ne.s32.totalorder %s79, %s81
      %p88 = scmp.eq.s32.totalorder %s29, 4
      %p89 = por %p87, %p88
      %p90 = scmp.ne.s32.totalorder %s81, %s82
      %p91 = scmp.eq.s32.totalorder %s29, 0
      %p92 = por %p90, %p91
      %p93 = scmp.ne.s32.totalorder %s81, %s82
      %p94 = scmp.eq.s32.totalorder %s30, 4
      %p95 = por %p93, %p94
      %p97 = scmp.ne.s32.totalorder %s82, %s96
      %p98 = scmp.eq.s32.totalorder %s30, 0
      %p99 = por %p97, %p98
      %s100 = ssub.s32 %s24, %s31
      %p101 = scmp.eq.s32.totalorder %s100, 0
      %s103 = sadd.s32 %s102, 1
      %s104 = scalar_select %p101, %s102, %s103
      %p107 = pneg %p101
      %p108 = scmp.eq.s32.totalorder %s24, 4
      %p109 = por %p107, %p108
      %p110 = scmp.ne.s32.totalorder %s102, %s105
      %p111 = scmp.eq.s32.totalorder %s24, 0
      %p112 = por %p110, %p111
      %p113 = scmp.ne.s32.totalorder %s102, %s105
      %p114 = scmp.eq.s32.totalorder %s29, 4
      %p115 = por %p113, %p114
      %p116 = scmp.ne.s32.totalorder %s105, %s106
      %p117 = scmp.eq.s32.totalorder %s29, 0
      %p118 = por %p116, %p117
      %p119 = scmp.ne.s32.totalorder %s105, %s106
      %p120 = scmp.eq.s32.totalorder %s30, 4
      %p121 = por %p119, %p120
      %p123 = scmp.ne.s32.totalorder %s106, %s122
      %p124 = scmp.eq.s32.totalorder %s30, 0
      %p125 = por %p123, %p124
      %s127 = sadd.s32 %s126, 1
      %p130 = scmp.eq.s32.totalorder %s24, 4
      %p131 = scmp.ne.s32.totalorder %s126, %s128
      %p132 = scmp.eq.s32.totalorder %s24, 0
      %p133 = por %p131, %p132
      %p134 = scmp.ne.s32.totalorder %s126, %s128
      %p135 = scmp.eq.s32.totalorder %s29, 4
      %p136 = por %p134, %p135
      %p137 = scmp.ne.s32.totalorder %s128, %s129
      %p138 = scmp.eq.s32.totalorder %s29, 0
      %p139 = por %p137, %p138
      %p140 = scmp.ne.s32.totalorder %s128, %s129
      %p141 = scmp.eq.s32.totalorder %s30, 4
      %p142 = por %p140, %p141
      %p144 = scmp.ne.s32.totalorder %s129, %s143
      %p145 = scmp.eq.s32.totalorder %s30, 0
      %p146 = por %p144, %p145
      %s148 = sadd.s32 %s147, 1
      %p151 = scmp.eq.s32.totalorder %s24, 4
      %p152 = scmp.ne.s32.totalorder %s147, %s149
      %p153 = scmp.eq.s32.totalorder %s24, 0
      %p154 = por %p152, %p153
      %p155 = scmp.ne.s32.totalorder %s147, %s149
      %p156 = scmp.eq.s32.totalorder %s29, 4
      %p157 = por %p155, %p156
      %p158 = scmp.ne.s32.totalorder %s149, %s150
      %p159 = scmp.eq.s32.totalorder %s29, 0
      %p160 = por %p158, %p159
      %p161 = scmp.ne.s32.totalorder %s149, %s150
      %p162 = scmp.eq.s32.totalorder %s30, 4
      %p163 = por %p161, %p162
      %p165 = scmp.ne.s32.totalorder %s150, %s164
      %p166 = scmp.eq.s32.totalorder %s30, 0
      %p167 = por %p165, %p166
      %s169 = sadd.s32 %s168, 1
      %p172 = scmp.eq.s32.totalorder %s24, 4
      %p173 = scmp.ne.s32.totalorder %s168, %s170
      %p174 = scmp.eq.s32.totalorder %s24, 0
      %p175 = por %p173, %p174
      %p176 = scmp.ne.s32.totalorder %s168, %s170
      %p177 = scmp.eq.s32.totalorder %s29, 4
      %p178 = por %p176, %p177
      %p179 = scmp.ne.s32.totalorder %s170, %s171
      %p180 = scmp.eq.s32.totalorder %s29, 0
      %p181 = por %p179, %p180
      %p182 = scmp.ne.s32.totalorder %s170, %s171
      %p183 = scmp.eq.s32.totalorder %s30, 4
      %p184 = por %p182, %p183
      %p186 = scmp.ne.s32.totalorder %s171, %s185
      %p187 = scmp.eq.s32.totalorder %s30, 0
      %p188 = por %p186, %p187
      %s190 = sadd.s32 %s189, 1
      %p193 = scmp.eq.s32.totalorder %s24, 4
      %p194 = scmp.ne.s32.totalorder %s189, %s191
      %p195 = scmp.eq.s32.totalorder %s24, 0
      %p196 = por %p194, %p195
      %p197 = scmp.ne.s32.totalorder %s189, %s191
      %p198 = scmp.eq.s32.totalorder %s29, 4
      %p199 = por %p197, %p198
      %p200 = scmp.ne.s32.totalorder %s191, %s192
      %p201 = scmp.eq.s32.totalorder %s29, 0
      %p202 = por %p200, %p201
      %p203 = scmp.ne.s32.totalorder %s191, %s192
      %p204 = scmp.eq.s32.totalorder %s30, 4
      %p205 = por %p203, %p204
      %p207 = scmp.ne.s32.totalorder %s192, %s206
      %p208 = scmp.eq.s32.totalorder %s30, 0
      %p209 = por %p207, %p208
      %s211 = sadd.s32 %s210, 1
      %p214 = scmp.eq.s32.totalorder %s24, 4
      %p215 = scmp.ne.s32.totalorder %s210, %s212
      %p216 = scmp.eq.s32.totalorder %s24, 0
      %p217 = por %p215, %p216
      %p218 = scmp.ne.s32.totalorder %s210, %s212
      %p219 = scmp.eq.s32.totalorder %s29, 4
      %p220 = por %p218, %p219
      %p221 = scmp.ne.s32.totalorder %s212, %s213
      %p222 = scmp.eq.s32.totalorder %s29, 0
      %p223 = por %p221, %p222
      %p224 = scmp.ne.s32.totalorder %s212, %s213
      %p225 = scmp.eq.s32.totalorder %s30, 4
      %p226 = por %p224, %p225
      %p228 = scmp.ne.s32.totalorder %s213, %s227
      %p229 = scmp.eq.s32.totalorder %s30, 0
      %p230 = por %p228, %p229
      %s232 = sadd.s32 %s231, 1
      %p235 = scmp.eq.s32.totalorder %s24, 4
      %p236 = scmp.ne.s32.totalorder %s231, %s233
      %p237 = scmp.eq.s32.totalorder %s24, 0
      %p238 = por %p236, %p237
      %p239 = scmp.ne.s32.totalorder %s231, %s233
      %p240 = scmp.eq.s32.totalorder %s29, 4
      %p241 = por %p239, %p240
      %p242 = scmp.ne.s32.totalorder %s233, %s234
      %p243 = scmp.eq.s32.totalorder %s29, 0
      %p244 = por %p242, %p243
      %p245 = scmp.ne.s32.totalorder %s233, %s234
      %p246 = scmp.eq.s32.totalorder %s30, 4
      %p247 = por %p245, %p246
      %p249 = scmp.ne.s32.totalorder %s234, %s248
      %p250 = scmp.eq.s32.totalorder %s30, 0
      %p251 = por %p249, %p250
      %p252 = scmp.le.s32.totalorder 1, %s24
      %p253 = scmp.lt.s32.totalorder %s24, 6
      %p254 = pnand %p252, %p253
      %p255 = pneg %p254
      // Predicated region
      $region9: #{akpgcn_forward.1} parent=5 // pred_check
        _
      $region10: #{akpgcn_forward.1} parent=5 // pred_check_branch
        %257 = sbr.rel (%p254) target = $region12
      $region11: #{akpgcn_forward.1} parent=5 // pred_region
        %s258 = ssub.s32 %s24, 1
        // Predicated region
        $region13: #{akpgcn_forward.1} parent=11 // pred_check
          %p259 = pneg %p45
        $region14: #{akpgcn_forward.1} parent=11 // pred_check_branch
          %261 = sbr.rel (%p259) target = $region16
        $region15: #{akpgcn_forward.1} parent=11 // pred_region
          _
        $region16: #{akpgcn_forward.1} parent=11 // pred_fallthru
          _
        // Predicated region
        $region17: #{akpgcn_forward.1} parent=11 // pred_check
          %p262 = pneg %p92
        $region18: #{akpgcn_forward.1} parent=11 // pred_check_branch
          %264 = sbr.rel (%p262) target = $region20
        $region19: #{akpgcn_forward.1} parent=11 // pred_region
          %s266 = ssub.s32 16, 16
          %267 = vsyncadd [#allocation5], %s266
          %270 = dma.hbm_to_smem %s2, 16, [#allocation6], [#allocation5]
        $region20: #{akpgcn_forward.1} parent=11 // pred_fallthru
          _
        // Predicated region
        $region21: #{akpgcn_forward.1} parent=11 // pred_check
          %p271 = pneg %p139
        $region22: #{akpgcn_forward.1} parent=11 // pred_check_branch
          %273 = sbr.rel (%p271) target = $region24
        $region23: #{akpgcn_forward.1} parent=11 // pred_region
          %s275 = ssub.s32 32, 32
          %276 = vsyncadd [#allocation8], %s275
          %s278 = sshll.u32 [#allocation9], 4
          %s279 = int_to_ptr.vmem [resolvable:$true] %s278
          %281 = dma.hbm_to_vmem [thread:$0]  %s4, 32, %s279, [#allocation8]
        $region24: #{akpgcn_forward.1} parent=11 // pred_fallthru
          _
        // Predicated region
        $region25: #{akpgcn_forward.1} parent=11 // pred_check
          %p282 = pneg %p160
        $region26: #{akpgcn_forward.1} parent=11 // pred_check_branch
          %284 = sbr.rel (%p282) target = $region28
        $region27: #{akpgcn_forward.1} parent=11 // pred_region
          %s286 = ssub.s32 32, 32
          %287 = vsyncadd [#allocation11], %s286
          %s289 = sshll.u32 [#allocation10], 4
          %s290 = int_to_ptr.vmem [resolvable:$true] %s289
          %292 = dma.hbm_to_vmem [thread:$0]  %s5, 32, %s290, [#allocation11]
        $region28: #{akpgcn_forward.1} parent=11 // pred_fallthru
          _
        // Predicated region
        $region29: #{akpgcn_forward.1} parent=11 // pred_check
          %p293 = pneg %p181
        $region30: #{akpgcn_forward.1} parent=11 // pred_check_branch
          %295 = sbr.rel (%p293) target = $region32
        $region31: #{akpgcn_forward.1} parent=11 // pred_region
          %s297 = ssub.s32 32, 32
          %298 = vsyncadd [#allocation11], %s297
          %s300 = sshll.u32 [#allocation12], 4
          %s301 = int_to_ptr.vmem [resolvable:$true] %s300
          %303 = dma.hbm_to_vmem [thread:$0]  %s6, 32, %s301, [#allocation11]
        $region32: #{akpgcn_forward.1} parent=11 // pred_fallthru
          _
        // Predicated region
        $region33: #{akpgcn_forward.1} parent=11 // pred_check
          %p304 = pneg %p202
        $region34: #{akpgcn_forward.1} parent=11 // pred_check_branch
          %306 = sbr.rel (%p304) target = $region36
        $region35: #{akpgcn_forward.1} parent=11 // pred_region
          _
        $region36: #{akpgcn_forward.1} parent=11 // pred_fallthru
          _
        // Predicated region
        $region37: #{akpgcn_forward.1} parent=11 // pred_check
          %p307 = pneg %p223
        $region38: #{akpgcn_forward.1} parent=11 // pred_check_branch
          %309 = sbr.rel (%p307) target = $region40
        $region39: #{akpgcn_forward.1} parent=11 // pred_region
          %s311 = ssub.s32 16, 16
          %312 = vsyncadd [#allocation14], %s311
          %s314 = sshll.u32 [#allocation13], 4
          %s315 = int_to_ptr.vmem [resolvable:$true] %s314
          %317 = dma.hbm_to_vmem [thread:$0]  %s8, 16, %s315, [#allocation14]
        $region40: #{akpgcn_forward.1} parent=11 // pred_fallthru
          _
      $region12: #{akpgcn_forward.1} parent=5 // pred_fallthru
        _
      %p318 = scmp.lt.s32.totalorder %s24, 5
      // Predicated region
      $region41: #{akpgcn_forward.1} parent=5 // pred_check
        %p319 = pneg %p318
      $region42: #{akpgcn_forward.1} parent=5 // pred_check_branch
        %321 = sbr.rel (%p319) target = $region44
      $region43: #{akpgcn_forward.1} parent=5 // pred_region
        // Predicated region
        $region45: #{akpgcn_forward.1} parent=43 // pred_check
          %p322 = pneg %p65
        $region46: #{akpgcn_forward.1} parent=43 // pred_check_branch
          %324 = sbr.rel (%p322) target = $region48
        $region47: #{akpgcn_forward.1} parent=43 // pred_region
          %s325 = sand.u32 %s55, 1
          %s326 = scalar_lea.sflag [#allocation4], %s325
          %s327 = sand.u32 %s55, 1
          %s328 = smul.addr %s327, 4096
          %s329 = scalar_lea.vmem [#allocation3], %s328
          %s330 = smul.u32 8, %s24
          %s332 = ssub.s32 65536, 65536
          %333 = vsyncadd %s326, %s332
          %s334 = smul.addr %s330, 64
          %s335 = scalar_lea.hbm %s1, %s334
          %s336 = sshll.u32 %s329, 4
          %s337 = int_to_ptr.vmem [resolvable:$true] %s336
          %342 = dma.hbm_to_vmem [thread:$0]  %s335, 65536, %s337, %s326, 2560, 512, 32
        $region48: #{akpgcn_forward.1} parent=43 // pred_fallthru
          _
        // Predicated region
        $region49: #{akpgcn_forward.1} parent=43 // pred_check
          %p343 = pneg %p112
        $region50: #{akpgcn_forward.1} parent=43 // pred_check_branch
          %345 = sbr.rel (%p343) target = $region52
        $region51: #{akpgcn_forward.1} parent=43 // pred_region
          %s346 = sand.u32 %s24, 1
          %s347 = scalar_lea.sflag [#allocation8], %s346
          %s348 = sand.u32 %s102, 1
          %s349 = smul.addr %s348, 128
          %s350 = scalar_lea.vmem [#allocation7], %s349
          %s352 = ssub.s32 2048, 2048
          %353 = vsyncadd %s347, %s352
          %s354 = smul.addr %s24, 32
          %s355 = smul.addr %s354, 64
          %s356 = scalar_lea.hbm %s3, %s355
          %s357 = sshll.u32 %s350, 4
          %s358 = int_to_ptr.vmem [resolvable:$true] %s357
          %363 = dma.hbm_to_vmem [thread:$0]  %s356, 2048, %s358, %s347, 128, 128, 8
        $region52: #{akpgcn_forward.1} parent=43 // pred_fallthru
          _
      $region44: #{akpgcn_forward.1} parent=5 // pred_fallthru
        _
      %p364 = scmp.le.s32.totalorder 1, %s24
      %p365 = scmp.lt.s32.totalorder %s24, 6
      %p366 = pnand %p364, %p365
      %p367 = pneg %p366
      // Predicated region
      $region53: #{akpgcn_forward.1} parent=5 // pred_check
        _
      $region54: #{akpgcn_forward.1} parent=5 // pred_check_branch
        %369 = sbr.rel (%p366) target = $region56
      $region55: #{akpgcn_forward.1} parent=5 // pred_region
        %s370 = ssub.s32 %s24, 1
        %s371 = sand.u32 %s58, 1
        %s372 = scalar_lea.sflag [#allocation4], %s371
        %s373 = sand.u32 %s58, 1
        %s374 = smul.addr %s373, 4096
        %s375 = scalar_lea.vmem [#allocation3], %s374
        // Predicated region
        $region57: #{akpgcn_forward.1} parent=55 // pred_check
          %p376 = pneg %p71
        $region58: #{akpgcn_forward.1} parent=55 // pred_check_branch
          %378 = sbr.rel (%p376) target = $region60
        $region59: #{akpgcn_forward.1} parent=55 // pred_region
          %379 = dma.done %s372, 65536
        $region60: #{akpgcn_forward.1} parent=55 // pred_fallthru
          _
        // Predicated region
        $region61: #{akpgcn_forward.1} parent=55 // pred_check
          %p380 = pneg %p92
        $region62: #{akpgcn_forward.1} parent=55 // pred_check_branch
          %382 = sbr.rel (%p380) target = $region64
        $region63: #{akpgcn_forward.1} parent=55 // pred_region
          %383 = dma.done [#allocation5], 16
        $region64: #{akpgcn_forward.1} parent=55 // pred_fallthru
          _
        %s384 = sand.u32 %s29, 1
        %s385 = scalar_lea.sflag [#allocation8], %s384
        %s386 = sand.u32 %s105, 1
        %s387 = smul.addr %s386, 128
        %s388 = scalar_lea.vmem [#allocation7], %s387
        // Predicated region
        $region65: #{akpgcn_forward.1} parent=55 // pred_check
          %p389 = pneg %p118
        $region66: #{akpgcn_forward.1} parent=55 // pred_check_branch
          %391 = sbr.rel (%p389) target = $region68
        $region67: #{akpgcn_forward.1} parent=55 // pred_region
          %392 = dma.done %s385, 2048
        $region68: #{akpgcn_forward.1} parent=55 // pred_fallthru
          _
        // Predicated region
        $region69: #{akpgcn_forward.1} parent=55 // pred_check
          %p393 = pneg %p139
        $region70: #{akpgcn_forward.1} parent=55 // pred_check_branch
          %395 = sbr.rel (%p393) target = $region72
        $region71: #{akpgcn_forward.1} parent=55 // pred_region
          %396 = dma.done [#allocation8], 32
        $region72: #{akpgcn_forward.1} parent=55 // pred_fallthru
          _
        // Predicated region
        $region73: #{akpgcn_forward.1} parent=55 // pred_check
          %p397 = pneg %p160
        $region74: #{akpgcn_forward.1} parent=55 // pred_check_branch
          %399 = sbr.rel (%p397) target = $region76
        $region75: #{akpgcn_forward.1} parent=55 // pred_region
          %400 = dma.done [#allocation11], 32
        $region76: #{akpgcn_forward.1} parent=55 // pred_fallthru
          _
        // Predicated region
        $region77: #{akpgcn_forward.1} parent=55 // pred_check
          %p401 = pneg %p181
        $region78: #{akpgcn_forward.1} parent=55 // pred_check_branch
          %403 = sbr.rel (%p401) target = $region80
        $region79: #{akpgcn_forward.1} parent=55 // pred_region
          %404 = dma.done [#allocation11], 32
        $region80: #{akpgcn_forward.1} parent=55 // pred_fallthru
          _
        // Predicated region
        $region81: #{akpgcn_forward.1} parent=55 // pred_check
          %p405 = pneg %p223
        $region82: #{akpgcn_forward.1} parent=55 // pred_check_branch
          %407 = sbr.rel (%p405) target = $region84
        $region83: #{akpgcn_forward.1} parent=55 // pred_region
          %408 = dma.done [#allocation14], 16
        $region84: #{akpgcn_forward.1} parent=55 // pred_fallthru
          _
        %409 = sfence
        %p410 = pneg %p45
        %p411 = pneg %p42
        %s412 = sand.u32 %s58, 1
        %s413 = scalar_lea.sflag [#allocation4], %s412
        %s414 = sand.u32 %s58, 1
        %s415 = smul.addr %s414, 4096
        %s416 = scalar_lea.vmem [#allocation3], %s415
        %p417 = pneg %p71
        %p418 = pneg %p68
        %p419 = pneg %p92
        %p420 = pneg %p89
        %s421 = sand.u32 %s29, 1
        %s422 = scalar_lea.sflag [#allocation8], %s421
        %s423 = sand.u32 %s105, 1
        %s424 = smul.addr %s423, 128
        %s425 = scalar_lea.vmem [#allocation7], %s424
        %p426 = pneg %p118
        %p427 = pneg %p115
        %p428 = pneg %p139
        %p429 = pneg %p136
        %p430 = pneg %p160
        %p431 = pneg %p157
        %p432 = pneg %p181
        %p433 = pneg %p178
        %p434 = pneg %p202
        %p435 = pneg %p199
        %p436 = pneg %p223
        %p437 = pneg %p220
        %p438 = pneg %p244
        %p439 = pneg %p241
        %s440 = smul.u32 8, %s29
        %v442 = vld [vmem:[%s0] sm:$0xff]
        %v443 = vld [vmem:[%s0 + $0x8] sm:$0xff]
        %v444 = vld [vmem:[%s0 + $0x10] sm:$0xff]
        %v445 = vld [vmem:[%s0 + $0x18] sm:$0xff]
        %v446 = vld [vmem:[%s375] sm:$0xff]
        %v447 = vld [vmem:[%s375 + $0x8] sm:$0xff]
        %v448 = vld [vmem:[%s375 + $0x10] sm:$0xff]
        %v449 = vld [vmem:[%s375 + $0x18] sm:$0xff]
        %v450 = vld [vmem:[%s375 + $0x20] sm:$0xff]
        %v451 = vld [vmem:[%s375 + $0x28] sm:$0xff]
        %v452 = vld [vmem:[%s375 + $0x30] sm:$0xff]
        %v453 = vld [vmem:[%s375 + $0x38] sm:$0xff]
        %v454 = vld [vmem:[%s375 + $0x40] sm:$0xff]
        %v455 = vld [vmem:[%s375 + $0x48] sm:$0xff]
        %v456 = vld [vmem:[%s375 + $0x50] sm:$0xff]
        %v457 = vld [vmem:[%s375 + $0x58] sm:$0xff]
        %v458 = vld [vmem:[%s375 + $0x60] sm:$0xff]
        %v459 = vld [vmem:[%s375 + $0x68] sm:$0xff]
        %v460 = vld [vmem:[%s375 + $0x70] sm:$0xff]
        %v461 = vld [vmem:[%s375 + $0x78] sm:$0xff]
        %v462 = vld [vmem:[%s375 + $0x80] sm:$0xff]
        %v463 = vld [vmem:[%s375 + $0x88] sm:$0xff]
        %v464 = vld [vmem:[%s375 + $0x90] sm:$0xff]
        %v465 = vld [vmem:[%s375 + $0x98] sm:$0xff]
        %v466 = vld [vmem:[%s375 + $0xa0] sm:$0xff]
        %v467 = vld [vmem:[%s375 + $0xa8] sm:$0xff]
        %v468 = vld [vmem:[%s375 + $0xb0] sm:$0xff]
        %v469 = vld [vmem:[%s375 + $0xb8] sm:$0xff]
        %v470 = vld [vmem:[%s375 + $0xc0] sm:$0xff]
        %v471 = vld [vmem:[%s375 + $0xc8] sm:$0xff]
        %v472 = vld [vmem:[%s375 + $0xd0] sm:$0xff]
        %v473 = vld [vmem:[%s375 + $0xd8] sm:$0xff]
        %v474 = vld [vmem:[%s375 + $0xe0] sm:$0xff]
        %v475 = vld [vmem:[%s375 + $0xe8] sm:$0xff]
        %v476 = vld [vmem:[%s375 + $0xf0] sm:$0xff]
        %v477 = vld [vmem:[%s375 + $0xf8] sm:$0xff]
        %v478 = vld [vmem:[%s375 + $0x100] sm:$0xff]
        %v479 = vld [vmem:[%s375 + $0x108] sm:$0xff]
        %v480 = vld [vmem:[%s375 + $0x110] sm:$0xff]
        %v481 = vld [vmem:[%s375 + $0x118] sm:$0xff]
        %v482 = vld [vmem:[%s375 + $0x120] sm:$0xff]
        %v483 = vld [vmem:[%s375 + $0x128] sm:$0xff]
        %v484 = vld [vmem:[%s375 + $0x130] sm:$0xff]
        %v485 = vld [vmem:[%s375 + $0x138] sm:$0xff]
        %v486 = vld [vmem:[%s375 + $0x140] sm:$0xff]
        %v487 = vld [vmem:[%s375 + $0x148] sm:$0xff]
        %v488 = vld [vmem:[%s375 + $0x150] sm:$0xff]
        %v489 = vld [vmem:[%s375 + $0x158] sm:$0xff]
        %v490 = vld [vmem:[%s375 + $0x160] sm:$0xff]
        %v491 = vld [vmem:[%s375 + $0x168] sm:$0xff]
        %v492 = vld [vmem:[%s375 + $0x170] sm:$0xff]
        %v493 = vld [vmem:[%s375 + $0x178] sm:$0xff]
        %v494 = vld [vmem:[%s375 + $0x180] sm:$0xff]
        %v495 = vld [vmem:[%s375 + $0x188] sm:$0xff]
        %v496 = vld [vmem:[%s375 + $0x190] sm:$0xff]
        %v497 = vld [vmem:[%s375 + $0x198] sm:$0xff]
        %v498 = vld [vmem:[%s375 + $0x1a0] sm:$0xff]
        %v499 = vld [vmem:[%s375 + $0x1a8] sm:$0xff]
        %v500 = vld [vmem:[%s375 + $0x1b0] sm:$0xff]
        %v501 = vld [vmem:[%s375 + $0x1b8] sm:$0xff]
        %v502 = vld [vmem:[%s375 + $0x1c0] sm:$0xff]
        %v503 = vld [vmem:[%s375 + $0x1c8] sm:$0xff]
        %v504 = vld [vmem:[%s375 + $0x1d0] sm:$0xff]
        %v505 = vld [vmem:[%s375 + $0x1d8] sm:$0xff]
        %v506 = vld [vmem:[%s375 + $0x1e0] sm:$0xff]
        %v507 = vld [vmem:[%s375 + $0x1e8] sm:$0xff]
        %v508 = vld [vmem:[%s375 + $0x1f0] sm:$0xff]
        %v509 = vld [vmem:[%s375 + $0x1f8] sm:$0xff]
        %v510 = vld [vmem:[%s375 + $0x200] sm:$0xff]
        %v511 = vld [vmem:[%s375 + $0x208] sm:$0xff]
        %v512 = vld [vmem:[%s375 + $0x210] sm:$0xff]
        %v513 = vld [vmem:[%s375 + $0x218] sm:$0xff]
        %v514 = vld [vmem:[%s375 + $0x220] sm:$0xff]
        %v515 = vld [vmem:[%s375 + $0x228] sm:$0xff]
        %v516 = vld [vmem:[%s375 + $0x230] sm:$0xff]
        %v517 = vld [vmem:[%s375 + $0x238] sm:$0xff]
        %v518 = vld [vmem:[%s375 + $0x240] sm:$0xff]
        %v519 = vld [vmem:[%s375 + $0x248] sm:$0xff]
        %v520 = vld [vmem:[%s375 + $0x250] sm:$0xff]
        %v521 = vld [vmem:[%s375 + $0x258] sm:$0xff]
        %v522 = vld [vmem:[%s375 + $0x260] sm:$0xff]
        %v523 = vld [vmem:[%s375 + $0x268] sm:$0xff]
        %v524 = vld [vmem:[%s375 + $0x270] sm:$0xff]
        %v525 = vld [vmem:[%s375 + $0x278] sm:$0xff]
        %v526 = vld [vmem:[%s375 + $0x280] sm:$0xff]
        %v527 = vld [vmem:[%s375 + $0x288] sm:$0xff]
        %v528 = vld [vmem:[%s375 + $0x290] sm:$0xff]
        %v529 = vld [vmem:[%s375 + $0x298] sm:$0xff]
        %v530 = vld [vmem:[%s375 + $0x2a0] sm:$0xff]
        %v531 = vld [vmem:[%s375 + $0x2a8] sm:$0xff]
        %v532 = vld [vmem:[%s375 + $0x2b0] sm:$0xff]
        %v533 = vld [vmem:[%s375 + $0x2b8] sm:$0xff]
        %v534 = vld [vmem:[%s375 + $0x2c0] sm:$0xff]
        %v535 = vld [vmem:[%s375 + $0x2c8] sm:$0xff]
        %v536 = vld [vmem:[%s375 + $0x2d0] sm:$0xff]
        %v537 = vld [vmem:[%s375 + $0x2d8] sm:$0xff]
        %v538 = vld [vmem:[%s375 + $0x2e0] sm:$0xff]
        %v539 = vld [vmem:[%s375 + $0x2e8] sm:$0xff]
        %v540 = vld [vmem:[%s375 + $0x2f0] sm:$0xff]
        %v541 = vld [vmem:[%s375 + $0x2f8] sm:$0xff]
        %v542 = vld [vmem:[%s375 + $0x300] sm:$0xff]
        %v543 = vld [vmem:[%s375 + $0x308] sm:$0xff]
        %v544 = vld [vmem:[%s375 + $0x310] sm:$0xff]
        %v545 = vld [vmem:[%s375 + $0x318] sm:$0xff]
        %v546 = vld [vmem:[%s375 + $0x320] sm:$0xff]
        %v547 = vld [vmem:[%s375 + $0x328] sm:$0xff]
        %v548 = vld [vmem:[%s375 + $0x330] sm:$0xff]
        %v549 = vld [vmem:[%s375 + $0x338] sm:$0xff]
        %v550 = vld [vmem:[%s375 + $0x340] sm:$0xff]
        %v551 = vld [vmem:[%s375 + $0x348] sm:$0xff]
        %v552 = vld [vmem:[%s375 + $0x350] sm:$0xff]
        %v553 = vld [vmem:[%s375 + $0x358] sm:$0xff]
        %v554 = vld [vmem:[%s375 + $0x360] sm:$0xff]
        %v555 = vld [vmem:[%s375 + $0x368] sm:$0xff]
        %v556 = vld [vmem:[%s375 + $0x370] sm:$0xff]
        %v557 = vld [vmem:[%s375 + $0x378] sm:$0xff]
        %v558 = vld [vmem:[%s375 + $0x380] sm:$0xff]
        %v559 = vld [vmem:[%s375 + $0x388] sm:$0xff]
        %v560 = vld [vmem:[%s375 + $0x390] sm:$0xff]
        %v561 = vld [vmem:[%s375 + $0x398] sm:$0xff]
        %v562 = vld [vmem:[%s375 + $0x3a0] sm:$0xff]
        %v563 = vld [vmem:[%s375 + $0x3a8] sm:$0xff]
        %v564 = vld [vmem:[%s375 + $0x3b0] sm:$0xff]
        %v565 = vld [vmem:[%s375 + $0x3b8] sm:$0xff]
        %v566 = vld [vmem:[%s375 + $0x3c0] sm:$0xff]
        %v567 = vld [vmem:[%s375 + $0x3c8] sm:$0xff]
        %v568 = vld [vmem:[%s375 + $0x3d0] sm:$0xff]
        %v569 = vld [vmem:[%s375 + $0x3d8] sm:$0xff]
        %v570 = vld [vmem:[%s375 + $0x3e0] sm:$0xff]
        %v571 = vld [vmem:[%s375 + $0x3e8] sm:$0xff]
        %v572 = vld [vmem:[%s375 + $0x3f0] sm:$0xff]
        %v573 = vld [vmem:[%s375 + $0x3f8] sm:$0xff]
        %v574 = vld [vmem:[%s375 + $0x400] sm:$0xff]
        %v575 = vld [vmem:[%s375 + $0x408] sm:$0xff]
        %v576 = vld [vmem:[%s375 + $0x410] sm:$0xff]
        %v577 = vld [vmem:[%s375 + $0x418] sm:$0xff]
        %v578 = vld [vmem:[%s375 + $0x420] sm:$0xff]
        %v579 = vld [vmem:[%s375 + $0x428] sm:$0xff]
        %v580 = vld [vmem:[%s375 + $0x430] sm:$0xff]
        %v581 = vld [vmem:[%s375 + $0x438] sm:$0xff]
        %v582 = vld [vmem:[%s375 + $0x440] sm:$0xff]
        %v583 = vld [vmem:[%s375 + $0x448] sm:$0xff]
        %v584 = vld [vmem:[%s375 + $0x450] sm:$0xff]
        %v585 = vld [vmem:[%s375 + $0x458] sm:$0xff]
        %v586 = vld [vmem:[%s375 + $0x460] sm:$0xff]
        %v587 = vld [vmem:[%s375 + $0x468] sm:$0xff]
        %v588 = vld [vmem:[%s375 + $0x470] sm:$0xff]
        %v589 = vld [vmem:[%s375 + $0x478] sm:$0xff]
        %v590 = vld [vmem:[%s375 + $0x480] sm:$0xff]
        %v591 = vld [vmem:[%s375 + $0x488] sm:$0xff]
        %v592 = vld [vmem:[%s375 + $0x490] sm:$0xff]
        %v593 = vld [vmem:[%s375 + $0x498] sm:$0xff]
        %v594 = vld [vmem:[%s375 + $0x4a0] sm:$0xff]
        %v595 = vld [vmem:[%s375 + $0x4a8] sm:$0xff]
        %v596 = vld [vmem:[%s375 + $0x4b0] sm:$0xff]
        %v597 = vld [vmem:[%s375 + $0x4b8] sm:$0xff]
        %v598 = vld [vmem:[%s375 + $0x4c0] sm:$0xff]
        %v599 = vld [vmem:[%s375 + $0x4c8] sm:$0xff]
        %v600 = vld [vmem:[%s375 + $0x4d0] sm:$0xff]
        %v601 = vld [vmem:[%s375 + $0x4d8] sm:$0xff]
        %v602 = vld [vmem:[%s375 + $0x4e0] sm:$0xff]
        %v603 = vld [vmem:[%s375 + $0x4e8] sm:$0xff]
        %v604 = vld [vmem:[%s375 + $0x4f0] sm:$0xff]
        %v605 = vld [vmem:[%s375 + $0x4f8] sm:$0xff]
        %v606 = vld [vmem:[%s375 + $0x500] sm:$0xff]
        %v607 = vld [vmem:[%s375 + $0x508] sm:$0xff]
        %v608 = vld [vmem:[%s375 + $0x510] sm:$0xff]
        %v609 = vld [vmem:[%s375 + $0x518] sm:$0xff]
        %v610 = vld [vmem:[%s375 + $0x520] sm:$0xff]
        %v611 = vld [vmem:[%s375 + $0x528] sm:$0xff]
        %v612 = vld [vmem:[%s375 + $0x530] sm:$0xff]
        %v613 = vld [vmem:[%s375 + $0x538] sm:$0xff]
        %v614 = vld [vmem:[%s375 + $0x540] sm:$0xff]
        %v615 = vld [vmem:[%s375 + $0x548] sm:$0xff]
        %v616 = vld [vmem:[%s375 + $0x550] sm:$0xff]
        %v617 = vld [vmem:[%s375 + $0x558] sm:$0xff]
        %v618 = vld [vmem:[%s375 + $0x560] sm:$0xff]
        %v619 = vld [vmem:[%s375 + $0x568] sm:$0xff]
        %v620 = vld [vmem:[%s375 + $0x570] sm:$0xff]
        %v621 = vld [vmem:[%s375 + $0x578] sm:$0xff]
        %v622 = vld [vmem:[%s375 + $0x580] sm:$0xff]
        %v623 = vld [vmem:[%s375 + $0x588] sm:$0xff]
        %v624 = vld [vmem:[%s375 + $0x590] sm:$0xff]
        %v625 = vld [vmem:[%s375 + $0x598] sm:$0xff]
        %v626 = vld [vmem:[%s375 + $0x5a0] sm:$0xff]
        %v627 = vld [vmem:[%s375 + $0x5a8] sm:$0xff]
        %v628 = vld [vmem:[%s375 + $0x5b0] sm:$0xff]
        %v629 = vld [vmem:[%s375 + $0x5b8] sm:$0xff]
        %v630 = vld [vmem:[%s375 + $0x5c0] sm:$0xff]
        %v631 = vld [vmem:[%s375 + $0x5c8] sm:$0xff]
        %v632 = vld [vmem:[%s375 + $0x5d0] sm:$0xff]
        %v633 = vld [vmem:[%s375 + $0x5d8] sm:$0xff]
        %v634 = vld [vmem:[%s375 + $0x5e0] sm:$0xff]
        %v635 = vld [vmem:[%s375 + $0x5e8] sm:$0xff]
        %v636 = vld [vmem:[%s375 + $0x5f0] sm:$0xff]
        %v637 = vld [vmem:[%s375 + $0x5f8] sm:$0xff]
        %v638 = vld [vmem:[%s375 + $0x600] sm:$0xff]
        %v639 = vld [vmem:[%s375 + $0x608] sm:$0xff]
        %v640 = vld [vmem:[%s375 + $0x610] sm:$0xff]
        %v641 = vld [vmem:[%s375 + $0x618] sm:$0xff]
        %v642 = vld [vmem:[%s375 + $0x620] sm:$0xff]
        %v643 = vld [vmem:[%s375 + $0x628] sm:$0xff]
        %v644 = vld [vmem:[%s375 + $0x630] sm:$0xff]
        %v645 = vld [vmem:[%s375 + $0x638] sm:$0xff]
        %v646 = vld [vmem:[%s375 + $0x640] sm:$0xff]
        %v647 = vld [vmem:[%s375 + $0x648] sm:$0xff]
        %v648 = vld [vmem:[%s375 + $0x650] sm:$0xff]
        %v649 = vld [vmem:[%s375 + $0x658] sm:$0xff]
        %v650 = vld [vmem:[%s375 + $0x660] sm:$0xff]
        %v651 = vld [vmem:[%s375 + $0x668] sm:$0xff]
        %v652 = vld [vmem:[%s375 + $0x670] sm:$0xff]
        %v653 = vld [vmem:[%s375 + $0x678] sm:$0xff]
        %v654 = vld [vmem:[%s375 + $0x680] sm:$0xff]
        %v655 = vld [vmem:[%s375 + $0x688] sm:$0xff]
        %v656 = vld [vmem:[%s375 + $0x690] sm:$0xff]
        %v657 = vld [vmem:[%s375 + $0x698] sm:$0xff]
        %v658 = vld [vmem:[%s375 + $0x6a0] sm:$0xff]
        %v659 = vld [vmem:[%s375 + $0x6a8] sm:$0xff]
        %v660 = vld [vmem:[%s375 + $0x6b0] sm:$0xff]
        %v661 = vld [vmem:[%s375 + $0x6b8] sm:$0xff]
        %v662 = vld [vmem:[%s375 + $0x6c0] sm:$0xff]
        %v663 = vld [vmem:[%s375 + $0x6c8] sm:$0xff]
        %v664 = vld [vmem:[%s375 + $0x6d0] sm:$0xff]
        %v665 = vld [vmem:[%s375 + $0x6d8] sm:$0xff]
        %v666 = vld [vmem:[%s375 + $0x6e0] sm:$0xff]
        %v667 = vld [vmem:[%s375 + $0x6e8] sm:$0xff]
        %v668 = vld [vmem:[%s375 + $0x6f0] sm:$0xff]
        %v669 = vld [vmem:[%s375 + $0x6f8] sm:$0xff]
        %v670 = vld [vmem:[%s375 + $0x700] sm:$0xff]
        %v671 = vld [vmem:[%s375 + $0x708] sm:$0xff]
        %v672 = vld [vmem:[%s375 + $0x710] sm:$0xff]
        %v673 = vld [vmem:[%s375 + $0x718] sm:$0xff]
        %v674 = vld [vmem:[%s375 + $0x720] sm:$0xff]
        %v675 = vld [vmem:[%s375 + $0x728] sm:$0xff]
        %v676 = vld [vmem:[%s375 + $0x730] sm:$0xff]
        %v677 = vld [vmem:[%s375 + $0x738] sm:$0xff]
        %v678 = vld [vmem:[%s375 + $0x740] sm:$0xff]
        %v679 = vld [vmem:[%s375 + $0x748] sm:$0xff]
        %v680 = vld [vmem:[%s375 + $0x750] sm:$0xff]
        %v681 = vld [vmem:[%s375 + $0x758] sm:$0xff]
        %v682 = vld [vmem:[%s375 + $0x760] sm:$0xff]
        %v683 = vld [vmem:[%s375 + $0x768] sm:$0xff]
        %v684 = vld [vmem:[%s375 + $0x770] sm:$0xff]
        %v685 = vld [vmem:[%s375 + $0x778] sm:$0xff]
        %v686 = vld [vmem:[%s375 + $0x780] sm:$0xff]
        %v687 = vld [vmem:[%s375 + $0x788] sm:$0xff]
        %v688 = vld [vmem:[%s375 + $0x790] sm:$0xff]
        %v689 = vld [vmem:[%s375 + $0x798] sm:$0xff]
        %v690 = vld [vmem:[%s375 + $0x7a0] sm:$0xff]
        %v691 = vld [vmem:[%s375 + $0x7a8] sm:$0xff]
        %v692 = vld [vmem:[%s375 + $0x7b0] sm:$0xff]
        %v693 = vld [vmem:[%s375 + $0x7b8] sm:$0xff]
        %v694 = vld [vmem:[%s375 + $0x7c0] sm:$0xff]
        %v695 = vld [vmem:[%s375 + $0x7c8] sm:$0xff]
        %v696 = vld [vmem:[%s375 + $0x7d0] sm:$0xff]
        %v697 = vld [vmem:[%s375 + $0x7d8] sm:$0xff]
        %v698 = vld [vmem:[%s375 + $0x7e0] sm:$0xff]
        %v699 = vld [vmem:[%s375 + $0x7e8] sm:$0xff]
        %v700 = vld [vmem:[%s375 + $0x7f0] sm:$0xff]
        %v701 = vld [vmem:[%s375 + $0x7f8] sm:$0xff]
        %v702 = vld [vmem:[%s375 + $0x800] sm:$0xff]
        %v703 = vld [vmem:[%s375 + $0x808] sm:$0xff]
        %v704 = vld [vmem:[%s375 + $0x810] sm:$0xff]
        %v705 = vld [vmem:[%s375 + $0x818] sm:$0xff]
        %v706 = vld [vmem:[%s375 + $0x820] sm:$0xff]
        %v707 = vld [vmem:[%s375 + $0x828] sm:$0xff]
        %v708 = vld [vmem:[%s375 + $0x830] sm:$0xff]
        %v709 = vld [vmem:[%s375 + $0x838] sm:$0xff]
        %v710 = vld [vmem:[%s375 + $0x840] sm:$0xff]
        %v711 = vld [vmem:[%s375 + $0x848] sm:$0xff]
        %v712 = vld [vmem:[%s375 + $0x850] sm:$0xff]
        %v713 = vld [vmem:[%s375 + $0x858] sm:$0xff]
        %v714 = vld [vmem:[%s375 + $0x860] sm:$0xff]
        %v715 = vld [vmem:[%s375 + $0x868] sm:$0xff]
        %v716 = vld [vmem:[%s375 + $0x870] sm:$0xff]
        %v717 = vld [vmem:[%s375 + $0x878] sm:$0xff]
        %v718 = vld [vmem:[%s375 + $0x880] sm:$0xff]
        %v719 = vld [vmem:[%s375 + $0x888] sm:$0xff]
        %v720 = vld [vmem:[%s375 + $0x890] sm:$0xff]
        %v721 = vld [vmem:[%s375 + $0x898] sm:$0xff]
        %v722 = vld [vmem:[%s375 + $0x8a0] sm:$0xff]
        %v723 = vld [vmem:[%s375 + $0x8a8] sm:$0xff]
        %v724 = vld [vmem:[%s375 + $0x8b0] sm:$0xff]
        %v725 = vld [vmem:[%s375 + $0x8b8] sm:$0xff]
        %v726 = vld [vmem:[%s375 + $0x8c0] sm:$0xff]
        %v727 = vld [vmem:[%s375 + $0x8c8] sm:$0xff]
        %v728 = vld [vmem:[%s375 + $0x8d0] sm:$0xff]
        %v729 = vld [vmem:[%s375 + $0x8d8] sm:$0xff]
        %v730 = vld [vmem:[%s375 + $0x8e0] sm:$0xff]
        %v731 = vld [vmem:[%s375 + $0x8e8] sm:$0xff]
        %v732 = vld [vmem:[%s375 + $0x8f0] sm:$0xff]
        %v733 = vld [vmem:[%s375 + $0x8f8] sm:$0xff]
        %v734 = vld [vmem:[%s375 + $0x900] sm:$0xff]
        %v735 = vld [vmem:[%s375 + $0x908] sm:$0xff]
        %v736 = vld [vmem:[%s375 + $0x910] sm:$0xff]
        %v737 = vld [vmem:[%s375 + $0x918] sm:$0xff]
        %v738 = vld [vmem:[%s375 + $0x920] sm:$0xff]
        %v739 = vld [vmem:[%s375 + $0x928] sm:$0xff]
        %v740 = vld [vmem:[%s375 + $0x930] sm:$0xff]
        %v741 = vld [vmem:[%s375 + $0x938] sm:$0xff]
        %v742 = vld [vmem:[%s375 + $0x940] sm:$0xff]
        %v743 = vld [vmem:[%s375 + $0x948] sm:$0xff]
        %v744 = vld [vmem:[%s375 + $0x950] sm:$0xff]
        %v745 = vld [vmem:[%s375 + $0x958] sm:$0xff]
        %v746 = vld [vmem:[%s375 + $0x960] sm:$0xff]
        %v747 = vld [vmem:[%s375 + $0x968] sm:$0xff]
        %v748 = vld [vmem:[%s375 + $0x970] sm:$0xff]
        %v749 = vld [vmem:[%s375 + $0x978] sm:$0xff]
        %v750 = vld [vmem:[%s375 + $0x980] sm:$0xff]
        %v751 = vld [vmem:[%s375 + $0x988] sm:$0xff]
        %v752 = vld [vmem:[%s375 + $0x990] sm:$0xff]
        %v753 = vld [vmem:[%s375 + $0x998] sm:$0xff]
        %v754 = vld [vmem:[%s375 + $0x9a0] sm:$0xff]
        %v755 = vld [vmem:[%s375 + $0x9a8] sm:$0xff]
        %v756 = vld [vmem:[%s375 + $0x9b0] sm:$0xff]
        %v757 = vld [vmem:[%s375 + $0x9b8] sm:$0xff]
        %v758 = vld [vmem:[%s375 + $0x9c0] sm:$0xff]
        %v759 = vld [vmem:[%s375 + $0x9c8] sm:$0xff]
        %v760 = vld [vmem:[%s375 + $0x9d0] sm:$0xff]
        %v761 = vld [vmem:[%s375 + $0x9d8] sm:$0xff]
        %v762 = vld [vmem:[%s375 + $0x9e0] sm:$0xff]
        %v763 = vld [vmem:[%s375 + $0x9e8] sm:$0xff]
        %v764 = vld [vmem:[%s375 + $0x9f0] sm:$0xff]
        %v765 = vld [vmem:[%s375 + $0x9f8] sm:$0xff]
        %v766 = vld [vmem:[%s375 + $0xa00] sm:$0xff]
        %v767 = vld [vmem:[%s375 + $0xa08] sm:$0xff]
        %v768 = vld [vmem:[%s375 + $0xa10] sm:$0xff]
        %v769 = vld [vmem:[%s375 + $0xa18] sm:$0xff]
        %v770 = vld [vmem:[%s375 + $0xa20] sm:$0xff]
        %v771 = vld [vmem:[%s375 + $0xa28] sm:$0xff]
        %v772 = vld [vmem:[%s375 + $0xa30] sm:$0xff]
        %v773 = vld [vmem:[%s375 + $0xa38] sm:$0xff]
        %v774 = vld [vmem:[%s375 + $0xa40] sm:$0xff]
        %v775 = vld [vmem:[%s375 + $0xa48] sm:$0xff]
        %v776 = vld [vmem:[%s375 + $0xa50] sm:$0xff]
        %v777 = vld [vmem:[%s375 + $0xa58] sm:$0xff]
        %v778 = vld [vmem:[%s375 + $0xa60] sm:$0xff]
        %v779 = vld [vmem:[%s375 + $0xa68] sm:$0xff]
        %v780 = vld [vmem:[%s375 + $0xa70] sm:$0xff]
        %v781 = vld [vmem:[%s375 + $0xa78] sm:$0xff]
        %v782 = vld [vmem:[%s375 + $0xa80] sm:$0xff]
        %v783 = vld [vmem:[%s375 + $0xa88] sm:$0xff]
        %v784 = vld [vmem:[%s375 + $0xa90] sm:$0xff]
        %v785 = vld [vmem:[%s375 + $0xa98] sm:$0xff]
        %v786 = vld [vmem:[%s375 + $0xaa0] sm:$0xff]
        %v787 = vld [vmem:[%s375 + $0xaa8] sm:$0xff]
        %v788 = vld [vmem:[%s375 + $0xab0] sm:$0xff]
        %v789 = vld [vmem:[%s375 + $0xab8] sm:$0xff]
        %v790 = vld [vmem:[%s375 + $0xac0] sm:$0xff]
        %v791 = vld [vmem:[%s375 + $0xac8] sm:$0xff]
        %v792 = vld [vmem:[%s375 + $0xad0] sm:$0xff]
        %v793 = vld [vmem:[%s375 + $0xad8] sm:$0xff]
        %v794 = vld [vmem:[%s375 + $0xae0] sm:$0xff]
        %v795 = vld [vmem:[%s375 + $0xae8] sm:$0xff]
        %v796 = vld [vmem:[%s375 + $0xaf0] sm:$0xff]
        %v797 = vld [vmem:[%s375 + $0xaf8] sm:$0xff]
        %v798 = vld [vmem:[%s375 + $0xb00] sm:$0xff]
        %v799 = vld [vmem:[%s375 + $0xb08] sm:$0xff]
        %v800 = vld [vmem:[%s375 + $0xb10] sm:$0xff]
        %v801 = vld [vmem:[%s375 + $0xb18] sm:$0xff]
        %v802 = vld [vmem:[%s375 + $0xb20] sm:$0xff]
        %v803 = vld [vmem:[%s375 + $0xb28] sm:$0xff]
        %v804 = vld [vmem:[%s375 + $0xb30] sm:$0xff]
        %v805 = vld [vmem:[%s375 + $0xb38] sm:$0xff]
        %v806 = vld [vmem:[%s375 + $0xb40] sm:$0xff]
        %v807 = vld [vmem:[%s375 + $0xb48] sm:$0xff]
        %v808 = vld [vmem:[%s375 + $0xb50] sm:$0xff]
        %v809 = vld [vmem:[%s375 + $0xb58] sm:$0xff]
        %v810 = vld [vmem:[%s375 + $0xb60] sm:$0xff]
        %v811 = vld [vmem:[%s375 + $0xb68] sm:$0xff]
        %v812 = vld [vmem:[%s375 + $0xb70] sm:$0xff]
        %v813 = vld [vmem:[%s375 + $0xb78] sm:$0xff]
        %v814 = vld [vmem:[%s375 + $0xb80] sm:$0xff]
        %v815 = vld [vmem:[%s375 + $0xb88] sm:$0xff]
        %v816 = vld [vmem:[%s375 + $0xb90] sm:$0xff]
        %v817 = vld [vmem:[%s375 + $0xb98] sm:$0xff]
        %v818 = vld [vmem:[%s375 + $0xba0] sm:$0xff]
        %v819 = vld [vmem:[%s375 + $0xba8] sm:$0xff]
        %v820 = vld [vmem:[%s375 + $0xbb0] sm:$0xff]
        %v821 = vld [vmem:[%s375 + $0xbb8] sm:$0xff]
        %v822 = vld [vmem:[%s375 + $0xbc0] sm:$0xff]
        %v823 = vld [vmem:[%s375 + $0xbc8] sm:$0xff]
        %v824 = vld [vmem:[%s375 + $0xbd0] sm:$0xff]
        %v825 = vld [vmem:[%s375 + $0xbd8] sm:$0xff]
        %v826 = vld [vmem:[%s375 + $0xbe0] sm:$0xff]
        %v827 = vld [vmem:[%s375 + $0xbe8] sm:$0xff]
        %v828 = vld [vmem:[%s375 + $0xbf0] sm:$0xff]
        %v829 = vld [vmem:[%s375 + $0xbf8] sm:$0xff]
        %v830 = vld [vmem:[%s375 + $0xc00] sm:$0xff]
        %v831 = vld [vmem:[%s375 + $0xc08] sm:$0xff]
        %v832 = vld [vmem:[%s375 + $0xc10] sm:$0xff]
        %v833 = vld [vmem:[%s375 + $0xc18] sm:$0xff]
        %v834 = vld [vmem:[%s375 + $0xc20] sm:$0xff]
        %v835 = vld [vmem:[%s375 + $0xc28] sm:$0xff]
        %v836 = vld [vmem:[%s375 + $0xc30] sm:$0xff]
        %v837 = vld [vmem:[%s375 + $0xc38] sm:$0xff]
        %v838 = vld [vmem:[%s375 + $0xc40] sm:$0xff]
        %v839 = vld [vmem:[%s375 + $0xc48] sm:$0xff]
        %v840 = vld [vmem:[%s375 + $0xc50] sm:$0xff]
        %v841 = vld [vmem:[%s375 + $0xc58] sm:$0xff]
        %v842 = vld [vmem:[%s375 + $0xc60] sm:$0xff]
        %v843 = vld [vmem:[%s375 + $0xc68] sm:$0xff]
        %v844 = vld [vmem:[%s375 + $0xc70] sm:$0xff]
        %v845 = vld [vmem:[%s375 + $0xc78] sm:$0xff]
        %v846 = vld [vmem:[%s375 + $0xc80] sm:$0xff]
        %v847 = vld [vmem:[%s375 + $0xc88] sm:$0xff]
        %v848 = vld [vmem:[%s375 + $0xc90] sm:$0xff]
        %v849 = vld [vmem:[%s375 + $0xc98] sm:$0xff]
        %v850 = vld [vmem:[%s375 + $0xca0] sm:$0xff]
        %v851 = vld [vmem:[%s375 + $0xca8] sm:$0xff]
        %v852 = vld [vmem:[%s375 + $0xcb0] sm:$0xff]
        %v853 = vld [vmem:[%s375 + $0xcb8] sm:$0xff]
        %v854 = vld [vmem:[%s375 + $0xcc0] sm:$0xff]
        %v855 = vld [vmem:[%s375 + $0xcc8] sm:$0xff]
        %v856 = vld [vmem:[%s375 + $0xcd0] sm:$0xff]
        %v857 = vld [vmem:[%s375 + $0xcd8] sm:$0xff]
        %v858 = vld [vmem:[%s375 + $0xce0] sm:$0xff]
        %v859 = vld [vmem:[%s375 + $0xce8] sm:$0xff]
        %v860 = vld [vmem:[%s375 + $0xcf0] sm:$0xff]
        %v861 = vld [vmem:[%s375 + $0xcf8] sm:$0xff]
        %v862 = vld [vmem:[%s375 + $0xd00] sm:$0xff]
        %v863 = vld [vmem:[%s375 + $0xd08] sm:$0xff]
        %v864 = vld [vmem:[%s375 + $0xd10] sm:$0xff]
        %v865 = vld [vmem:[%s375 + $0xd18] sm:$0xff]
        %v866 = vld [vmem:[%s375 + $0xd20] sm:$0xff]
        %v867 = vld [vmem:[%s375 + $0xd28] sm:$0xff]
        %v868 = vld [vmem:[%s375 + $0xd30] sm:$0xff]
        %v869 = vld [vmem:[%s375 + $0xd38] sm:$0xff]
        %v870 = vld [vmem:[%s375 + $0xd40] sm:$0xff]
        %v871 = vld [vmem:[%s375 + $0xd48] sm:$0xff]
        %v872 = vld [vmem:[%s375 + $0xd50] sm:$0xff]
        %v873 = vld [vmem:[%s375 + $0xd58] sm:$0xff]
        %v874 = vld [vmem:[%s375 + $0xd60] sm:$0xff]
        %v875 = vld [vmem:[%s375 + $0xd68] sm:$0xff]
        %v876 = vld [vmem:[%s375 + $0xd70] sm:$0xff]
        %v877 = vld [vmem:[%s375 + $0xd78] sm:$0xff]
        %v878 = vld [vmem:[%s375 + $0xd80] sm:$0xff]
        %v879 = vld [vmem:[%s375 + $0xd88] sm:$0xff]
        %v880 = vld [vmem:[%s375 + $0xd90] sm:$0xff]
        %v881 = vld [vmem:[%s375 + $0xd98] sm:$0xff]
        %v882 = vld [vmem:[%s375 + $0xda0] sm:$0xff]
        %v883 = vld [vmem:[%s375 + $0xda8] sm:$0xff]
        %v884 = vld [vmem:[%s375 + $0xdb0] sm:$0xff]
        %v885 = vld [vmem:[%s375 + $0xdb8] sm:$0xff]
        %v886 = vld [vmem:[%s375 + $0xdc0] sm:$0xff]
        %v887 = vld [vmem:[%s375 + $0xdc8] sm:$0xff]
        %v888 = vld [vmem:[%s375 + $0xdd0] sm:$0xff]
        %v889 = vld [vmem:[%s375 + $0xdd8] sm:$0xff]
        %v890 = vld [vmem:[%s375 + $0xde0] sm:$0xff]
        %v891 = vld [vmem:[%s375 + $0xde8] sm:$0xff]
        %v892 = vld [vmem:[%s375 + $0xdf0] sm:$0xff]
        %v893 = vld [vmem:[%s375 + $0xdf8] sm:$0xff]
        %v894 = vld [vmem:[%s375 + $0xe00] sm:$0xff]
        %v895 = vld [vmem:[%s375 + $0xe08] sm:$0xff]
        %v896 = vld [vmem:[%s375 + $0xe10] sm:$0xff]
        %v897 = vld [vmem:[%s375 + $0xe18] sm:$0xff]
        %v898 = vld [vmem:[%s375 + $0xe20] sm:$0xff]
        %v899 = vld [vmem:[%s375 + $0xe28] sm:$0xff]
        %v900 = vld [vmem:[%s375 + $0xe30] sm:$0xff]
        %v901 = vld [vmem:[%s375 + $0xe38] sm:$0xff]
        %v902 = vld [vmem:[%s375 + $0xe40] sm:$0xff]
        %v903 = vld [vmem:[%s375 + $0xe48] sm:$0xff]
        %v904 = vld [vmem:[%s375 + $0xe50] sm:$0xff]
        %v905 = vld [vmem:[%s375 + $0xe58] sm:$0xff]
        %v906 = vld [vmem:[%s375 + $0xe60] sm:$0xff]
        %v907 = vld [vmem:[%s375 + $0xe68] sm:$0xff]
        %v908 = vld [vmem:[%s375 + $0xe70] sm:$0xff]
        %v909 = vld [vmem:[%s375 + $0xe78] sm:$0xff]
        %v910 = vld [vmem:[%s375 + $0xe80] sm:$0xff]
        %v911 = vld [vmem:[%s375 + $0xe88] sm:$0xff]
        %v912 = vld [vmem:[%s375 + $0xe90] sm:$0xff]
        %v913 = vld [vmem:[%s375 + $0xe98] sm:$0xff]
        %v914 = vld [vmem:[%s375 + $0xea0] sm:$0xff]
        %v915 = vld [vmem:[%s375 + $0xea8] sm:$0xff]
        %v916 = vld [vmem:[%s375 + $0xeb0] sm:$0xff]
        %v917 = vld [vmem:[%s375 + $0xeb8] sm:$0xff]
        %v918 = vld [vmem:[%s375 + $0xec0] sm:$0xff]
        %v919 = vld [vmem:[%s375 + $0xec8] sm:$0xff]
        %v920 = vld [vmem:[%s375 + $0xed0] sm:$0xff]
        %v921 = vld [vmem:[%s375 + $0xed8] sm:$0xff]
        %v922 = vld [vmem:[%s375 + $0xee0] sm:$0xff]
        %v923 = vld [vmem:[%s375 + $0xee8] sm:$0xff]
        %v924 = vld [vmem:[%s375 + $0xef0] sm:$0xff]
        %v925 = vld [vmem:[%s375 + $0xef8] sm:$0xff]
        %v926 = vld [vmem:[%s375 + $0xf00] sm:$0xff]
        %v927 = vld [vmem:[%s375 + $0xf08] sm:$0xff]
        %v928 = vld [vmem:[%s375 + $0xf10] sm:$0xff]
        %v929 = vld [vmem:[%s375 + $0xf18] sm:$0xff]
        %v930 = vld [vmem:[%s375 + $0xf20] sm:$0xff]
        %v931 = vld [vmem:[%s375 + $0xf28] sm:$0xff]
        %v932 = vld [vmem:[%s375 + $0xf30] sm:$0xff]
        %v933 = vld [vmem:[%s375 + $0xf38] sm:$0xff]
        %v934 = vld [vmem:[%s375 + $0xf40] sm:$0xff]
        %v935 = vld [vmem:[%s375 + $0xf48] sm:$0xff]
        %v936 = vld [vmem:[%s375 + $0xf50] sm:$0xff]
        %v937 = vld [vmem:[%s375 + $0xf58] sm:$0xff]
        %v938 = vld [vmem:[%s375 + $0xf60] sm:$0xff]
        %v939 = vld [vmem:[%s375 + $0xf68] sm:$0xff]
        %v940 = vld [vmem:[%s375 + $0xf70] sm:$0xff]
        %v941 = vld [vmem:[%s375 + $0xf78] sm:$0xff]
        %v942 = vld [vmem:[%s375 + $0xf80] sm:$0xff]
        %v943 = vld [vmem:[%s375 + $0xf88] sm:$0xff]
        %v944 = vld [vmem:[%s375 + $0xf90] sm:$0xff]
        %v945 = vld [vmem:[%s375 + $0xf98] sm:$0xff]
        %v946 = vld [vmem:[%s375 + $0xfa0] sm:$0xff]
        %v947 = vld [vmem:[%s375 + $0xfa8] sm:$0xff]
        %v948 = vld [vmem:[%s375 + $0xfb0] sm:$0xff]
        %v949 = vld [vmem:[%s375 + $0xfb8] sm:$0xff]
        %v950 = vld [vmem:[%s375 + $0xfc0] sm:$0xff]
        %v951 = vld [vmem:[%s375 + $0xfc8] sm:$0xff]
        %v952 = vld [vmem:[%s375 + $0xfd0] sm:$0xff]
        %v953 = vld [vmem:[%s375 + $0xfd8] sm:$0xff]
        %v954 = vld [vmem:[%s375 + $0xfe0] sm:$0xff]
        %v955 = vld [vmem:[%s375 + $0xfe8] sm:$0xff]
        %v956 = vld [vmem:[%s375 + $0xff0] sm:$0xff]
        %v957 = vld [vmem:[%s375 + $0xff8] sm:$0xff]
        %s958 = sld [smem:[#allocation6 + %s29]]
        %v959 = vstv %s958
        %v964 = vunpack.c.l.b16 %v442
        %v965 = vunpack.c.h.b16 %v442
        %v966 = vunpack.c.l.b16 %v443
        %v967 = vunpack.c.h.b16 %v443
        %v968 = vunpack.c.l.b16 %v444
        %v969 = vunpack.c.h.b16 %v444
        %v970 = vunpack.c.l.b16 %v445
        %v971 = vunpack.c.h.b16 %v445
        %v972 = vpack.c.b16 %v964, %v964
        %v973 = vpack.c.b16 %v965, %v965
        %v974 = vpack.c.b16 %v966, %v966
        %v975 = vpack.c.b16 %v967, %v967
        %v976 = vpack.c.b16 %v968, %v968
        %v977 = vpack.c.b16 %v969, %v969
        %v978 = vpack.c.b16 %v970, %v970
        %v979 = vpack.c.b16 %v971, %v971
        %v1500 = vunpack.c.l.b16 %v446
        %v1501 = vunpack.c.h.b16 %v446
        %v1502 = vunpack.c.l.b16 %v447
        %v1503 = vunpack.c.h.b16 %v447
        %v1504 = vunpack.c.l.b16 %v448
        %v1505 = vunpack.c.h.b16 %v448
        %v1506 = vunpack.c.l.b16 %v449
        %v1507 = vunpack.c.h.b16 %v449
        %v1508 = vunpack.c.l.b16 %v450
        %v1509 = vunpack.c.h.b16 %v450
        %v1510 = vunpack.c.l.b16 %v451
        %v1511 = vunpack.c.h.b16 %v451
        %v1512 = vunpack.c.l.b16 %v452
        %v1513 = vunpack.c.h.b16 %v452
        %v1514 = vunpack.c.l.b16 %v453
        %v1515 = vunpack.c.h.b16 %v453
        %v1516 = vunpack.c.l.b16 %v454
        %v1517 = vunpack.c.h.b16 %v454
        %v1518 = vunpack.c.l.b16 %v455
        %v1519 = vunpack.c.h.b16 %v455
        %v1520 = vunpack.c.l.b16 %v456
        %v1521 = vunpack.c.h.b16 %v456
        %v1522 = vunpack.c.l.b16 %v457
        %v1523 = vunpack.c.h.b16 %v457
        %v1524 = vunpack.c.l.b16 %v458
        %v1525 = vunpack.c.h.b16 %v458
        %v1526 = vunpack.c.l.b16 %v459
        %v1527 = vunpack.c.h.b16 %v459
        %v1528 = vunpack.c.l.b16 %v460
        %v1529 = vunpack.c.h.b16 %v460
        %v1530 = vunpack.c.l.b16 %v461
        %v1531 = vunpack.c.h.b16 %v461
        %v1532 = vunpack.c.l.b16 %v462
        %v1533 = vunpack.c.h.b16 %v462
        %v1534 = vunpack.c.l.b16 %v463
        %v1535 = vunpack.c.h.b16 %v463
        %v1536 = vunpack.c.l.b16 %v464
        %v1537 = vunpack.c.h.b16 %v464
        %v1538 = vunpack.c.l.b16 %v465
        %v1539 = vunpack.c.h.b16 %v465
        %v1540 = vunpack.c.l.b16 %v466
        %v1541 = vunpack.c.h.b16 %v466
        %v1542 = vunpack.c.l.b16 %v467
        %v1543 = vunpack.c.h.b16 %v467
        %v1544 = vunpack.c.l.b16 %v468
        %v1545 = vunpack.c.h.b16 %v468
        %v1546 = vunpack.c.l.b16 %v469
        %v1547 = vunpack.c.h.b16 %v469
        %v1548 = vunpack.c.l.b16 %v470
        %v1549 = vunpack.c.h.b16 %v470
        %v1550 = vunpack.c.l.b16 %v471
        %v1551 = vunpack.c.h.b16 %v471
        %v1552 = vunpack.c.l.b16 %v472
        %v1553 = vunpack.c.h.b16 %v472
        %v1554 = vunpack.c.l.b16 %v473
        %v1555 = vunpack.c.h.b16 %v473
        %v1556 = vunpack.c.l.b16 %v474
        %v1557 = vunpack.c.h.b16 %v474
        %v1558 = vunpack.c.l.b16 %v475
        %v1559 = vunpack.c.h.b16 %v475
        %v1560 = vunpack.c.l.b16 %v476
        %v1561 = vunpack.c.h.b16 %v476
        %v1562 = vunpack.c.l.b16 %v477
        %v1563 = vunpack.c.h.b16 %v477
        %v1564 = vunpack.c.l.b16 %v478
        %v1565 = vunpack.c.h.b16 %v478
        %v1566 = vunpack.c.l.b16 %v479
        %v1567 = vunpack.c.h.b16 %v479
        %v1568 = vunpack.c.l.b16 %v480
        %v1569 = vunpack.c.h.b16 %v480
        %v1570 = vunpack.c.l.b16 %v481
        %v1571 = vunpack.c.h.b16 %v481
        %v1572 = vunpack.c.l.b16 %v482
        %v1573 = vunpack.c.h.b16 %v482
        %v1574 = vunpack.c.l.b16 %v483
        %v1575 = vunpack.c.h.b16 %v483
        %v1576 = vunpack.c.l.b16 %v484
        %v1577 = vunpack.c.h.b16 %v484
        %v1578 = vunpack.c.l.b16 %v485
        %v1579 = vunpack.c.h.b16 %v485
        %v1580 = vunpack.c.l.b16 %v486
        %v1581 = vunpack.c.h.b16 %v486
        %v1582 = vunpack.c.l.b16 %v487
        %v1583 = vunpack.c.h.b16 %v487
        %v1584 = vunpack.c.l.b16 %v488
        %v1585 = vunpack.c.h.b16 %v488
        %v1586 = vunpack.c.l.b16 %v489
        %v1587 = vunpack.c.h.b16 %v489
        %v1588 = vunpack.c.l.b16 %v490
        %v1589 = vunpack.c.h.b16 %v490
        %v1590 = vunpack.c.l.b16 %v491
        %v1591 = vunpack.c.h.b16 %v491
        %v1592 = vunpack.c.l.b16 %v492
        %v1593 = vunpack.c.h.b16 %v492
        %v1594 = vunpack.c.l.b16 %v493
        %v1595 = vunpack.c.h.b16 %v493
        %v1596 = vunpack.c.l.b16 %v494
        %v1597 = vunpack.c.h.b16 %v494
        %v1598 = vunpack.c.l.b16 %v495
        %v1599 = vunpack.c.h.b16 %v495
        %v1600 = vunpack.c.l.b16 %v496
        %v1601 = vunpack.c.h.b16 %v496
        %v1602 = vunpack.c.l.b16 %v497
        %v1603 = vunpack.c.h.b16 %v497
        %v1604 = vunpack.c.l.b16 %v498
        %v1605 = vunpack.c.h.b16 %v498
        %v1606 = vunpack.c.l.b16 %v499
        %v1607 = vunpack.c.h.b16 %v499
        %v1608 = vunpack.c.l.b16 %v500
        %v1609 = vunpack.c.h.b16 %v500
        %v1610 = vunpack.c.l.b16 %v501
        %v1611 = vunpack.c.h.b16 %v501
        %v1612 = vunpack.c.l.b16 %v502
        %v1613 = vunpack.c.h.b16 %v502
        %v1614 = vunpack.c.l.b16 %v503
        %v1615 = vunpack.c.h.b16 %v503
        %v1616 = vunpack.c.l.b16 %v504
        %v1617 = vunpack.c.h.b16 %v504
        %v1618 = vunpack.c.l.b16 %v505
        %v1619 = vunpack.c.h.b16 %v505
        %v1620 = vunpack.c.l.b16 %v506
        %v1621 = vunpack.c.h.b16 %v506
        %v1622 = vunpack.c.l.b16 %v507
        %v1623 = vunpack.c.h.b16 %v507
        %v1624 = vunpack.c.l.b16 %v508
        %v1625 = vunpack.c.h.b16 %v508
        %v1626 = vunpack.c.l.b16 %v509
        %v1627 = vunpack.c.h.b16 %v509
        %v1628 = vunpack.c.l.b16 %v510
        %v1629 = vunpack.c.h.b16 %v510
        %v1630 = vunpack.c.l.b16 %v511
        %v1631 = vunpack.c.h.b16 %v511
        %v1632 = vunpack.c.l.b16 %v512
        %v1633 = vunpack.c.h.b16 %v512
        %v1634 = vunpack.c.l.b16 %v513
        %v1635 = vunpack.c.h.b16 %v513
        %v1636 = vunpack.c.l.b16 %v514
        %v1637 = vunpack.c.h.b16 %v514
        %v1638 = vunpack.c.l.b16 %v515
        %v1639 = vunpack.c.h.b16 %v515
        %v1640 = vunpack.c.l.b16 %v516
        %v1641 = vunpack.c.h.b16 %v516
        %v1642 = vunpack.c.l.b16 %v517
        %v1643 = vunpack.c.h.b16 %v517
        %v1644 = vunpack.c.l.b16 %v518
        %v1645 = vunpack.c.h.b16 %v518
        %v1646 = vunpack.c.l.b16 %v519
        %v1647 = vunpack.c.h.b16 %v519
        %v1648 = vunpack.c.l.b16 %v520
        %v1649 = vunpack.c.h.b16 %v520
        %v1650 = vunpack.c.l.b16 %v521
        %v1651 = vunpack.c.h.b16 %v521
        %v1652 = vunpack.c.l.b16 %v522
        %v1653 = vunpack.c.h.b16 %v522
        %v1654 = vunpack.c.l.b16 %v523
        %v1655 = vunpack.c.h.b16 %v523
        %v1656 = vunpack.c.l.b16 %v524
        %v1657 = vunpack.c.h.b16 %v524
        %v1658 = vunpack.c.l.b16 %v525
        %v1659 = vunpack.c.h.b16 %v525
        %v1660 = vunpack.c.l.b16 %v526
        %v1661 = vunpack.c.h.b16 %v526
        %v1662 = vunpack.c.l.b16 %v527
        %v1663 = vunpack.c.h.b16 %v527
        %v1664 = vunpack.c.l.b16 %v528
        %v1665 = vunpack.c.h.b16 %v528
        %v1666 = vunpack.c.l.b16 %v529
        %v1667 = vunpack.c.h.b16 %v529
        %v1668 = vunpack.c.l.b16 %v530
        %v1669 = vunpack.c.h.b16 %v530
        %v1670 = vunpack.c.l.b16 %v531
        %v1671 = vunpack.c.h.b16 %v531
        %v1672 = vunpack.c.l.b16 %v532
        %v1673 = vunpack.c.h.b16 %v532
        %v1674 = vunpack.c.l.b16 %v533
        %v1675 = vunpack.c.h.b16 %v533
        %v1676 = vunpack.c.l.b16 %v534
        %v1677 = vunpack.c.h.b16 %v534
        %v1678 = vunpack.c.l.b16 %v535
        %v1679 = vunpack.c.h.b16 %v535
        %v1680 = vunpack.c.l.b16 %v536
        %v1681 = vunpack.c.h.b16 %v536
        %v1682 = vunpack.c.l.b16 %v537
        %v1683 = vunpack.c.h.b16 %v537
        %v1684 = vunpack.c.l.b16 %v538
        %v1685 = vunpack.c.h.b16 %v538
        %v1686 = vunpack.c.l.b16 %v539
        %v1687 = vunpack.c.h.b16 %v539
        %v1688 = vunpack.c.l.b16 %v540
        %v1689 = vunpack.c.h.b16 %v540
        %v1690 = vunpack.c.l.b16 %v541
        %v1691 = vunpack.c.h.b16 %v541
        %v1692 = vunpack.c.l.b16 %v542
        %v1693 = vunpack.c.h.b16 %v542
        %v1694 = vunpack.c.l.b16 %v543
        %v1695 = vunpack.c.h.b16 %v543
        %v1696 = vunpack.c.l.b16 %v544
        %v1697 = vunpack.c.h.b16 %v544
        %v1698 = vunpack.c.l.b16 %v545
        %v1699 = vunpack.c.h.b16 %v545
        %v1700 = vunpack.c.l.b16 %v546
        %v1701 = vunpack.c.h.b16 %v546
        %v1702 = vunpack.c.l.b16 %v547
        %v1703 = vunpack.c.h.b16 %v547
        %v1704 = vunpack.c.l.b16 %v548
        %v1705 = vunpack.c.h.b16 %v548
        %v1706 = vunpack.c.l.b16 %v549
        %v1707 = vunpack.c.h.b16 %v549
        %v1708 = vunpack.c.l.b16 %v550
        %v1709 = vunpack.c.h.b16 %v550
        %v1710 = vunpack.c.l.b16 %v551
        %v1711 = vunpack.c.h.b16 %v551
        %v1712 = vunpack.c.l.b16 %v552
        %v1713 = vunpack.c.h.b16 %v552
        %v1714 = vunpack.c.l.b16 %v553
        %v1715 = vunpack.c.h.b16 %v553
        %v1716 = vunpack.c.l.b16 %v554
        %v1717 = vunpack.c.h.b16 %v554
        %v1718 = vunpack.c.l.b16 %v555
        %v1719 = vunpack.c.h.b16 %v555
        %v1720 = vunpack.c.l.b16 %v556
        %v1721 = vunpack.c.h.b16 %v556
        %v1722 = vunpack.c.l.b16 %v557
        %v1723 = vunpack.c.h.b16 %v557
        %v1724 = vunpack.c.l.b16 %v558
        %v1725 = vunpack.c.h.b16 %v558
        %v1726 = vunpack.c.l.b16 %v559
        %v1727 = vunpack.c.h.b16 %v559
        %v1728 = vunpack.c.l.b16 %v560
        %v1729 = vunpack.c.h.b16 %v560
        %v1730 = vunpack.c.l.b16 %v561
        %v1731 = vunpack.c.h.b16 %v561
        %v1732 = vunpack.c.l.b16 %v562
        %v1733 = vunpack.c.h.b16 %v562
        %v1734 = vunpack.c.l.b16 %v563
        %v1735 = vunpack.c.h.b16 %v563
        %v1736 = vunpack.c.l.b16 %v564
        %v1737 = vunpack.c.h.b16 %v564
        %v1738 = vunpack.c.l.b16 %v565
        %v1739 = vunpack.c.h.b16 %v565
        %v1740 = vunpack.c.l.b16 %v566
        %v1741 = vunpack.c.h.b16 %v566
        %v1742 = vunpack.c.l.b16 %v567
        %v1743 = vunpack.c.h.b16 %v567
        %v1744 = vunpack.c.l.b16 %v568
        %v1745 = vunpack.c.h.b16 %v568
        %v1746 = vunpack.c.l.b16 %v569
        %v1747 = vunpack.c.h.b16 %v569
        %v1748 = vunpack.c.l.b16 %v570
        %v1749 = vunpack.c.h.b16 %v570
        %v1750 = vunpack.c.l.b16 %v571
        %v1751 = vunpack.c.h.b16 %v571
        %v1752 = vunpack.c.l.b16 %v572
        %v1753 = vunpack.c.h.b16 %v572
        %v1754 = vunpack.c.l.b16 %v573
        %v1755 = vunpack.c.h.b16 %v573
        %v1756 = vunpack.c.l.b16 %v574
        %v1757 = vunpack.c.h.b16 %v574
        %v1758 = vunpack.c.l.b16 %v575
        %v1759 = vunpack.c.h.b16 %v575
        %v1760 = vunpack.c.l.b16 %v576
        %v1761 = vunpack.c.h.b16 %v576
        %v1762 = vunpack.c.l.b16 %v577
        %v1763 = vunpack.c.h.b16 %v577
        %v1764 = vunpack.c.l.b16 %v578
        %v1765 = vunpack.c.h.b16 %v578
        %v1766 = vunpack.c.l.b16 %v579
        %v1767 = vunpack.c.h.b16 %v579
        %v1768 = vunpack.c.l.b16 %v580
        %v1769 = vunpack.c.h.b16 %v580
        %v1770 = vunpack.c.l.b16 %v581
        %v1771 = vunpack.c.h.b16 %v581
        %v1772 = vunpack.c.l.b16 %v582
        %v1773 = vunpack.c.h.b16 %v582
        %v1774 = vunpack.c.l.b16 %v583
        %v1775 = vunpack.c.h.b16 %v583
        %v1776 = vunpack.c.l.b16 %v584
        %v1777 = vunpack.c.h.b16 %v584
        %v1778 = vunpack.c.l.b16 %v585
        %v1779 = vunpack.c.h.b16 %v585
        %v1780 = vunpack.c.l.b16 %v586
        %v1781 = vunpack.c.h.b16 %v586
        %v1782 = vunpack.c.l.b16 %v587
        %v1783 = vunpack.c.h.b16 %v587
        %v1784 = vunpack.c.l.b16 %v588
        %v1785 = vunpack.c.h.b16 %v588
        %v1786 = vunpack.c.l.b16 %v589
        %v1787 = vunpack.c.h.b16 %v589
        %v1788 = vunpack.c.l.b16 %v590
        %v1789 = vunpack.c.h.b16 %v590
        %v1790 = vunpack.c.l.b16 %v591
        %v1791 = vunpack.c.h.b16 %v591
        %v1792 = vunpack.c.l.b16 %v592
        %v1793 = vunpack.c.h.b16 %v592
        %v1794 = vunpack.c.l.b16 %v593
        %v1795 = vunpack.c.h.b16 %v593
        %v1796 = vunpack.c.l.b16 %v594
        %v1797 = vunpack.c.h.b16 %v594
        %v1798 = vunpack.c.l.b16 %v595
        %v1799 = vunpack.c.h.b16 %v595
        %v1800 = vunpack.c.l.b16 %v596
        %v1801 = vunpack.c.h.b16 %v596
        %v1802 = vunpack.c.l.b16 %v597
        %v1803 = vunpack.c.h.b16 %v597
        %v1804 = vunpack.c.l.b16 %v598
        %v1805 = vunpack.c.h.b16 %v598
        %v1806 = vunpack.c.l.b16 %v599
        %v1807 = vunpack.c.h.b16 %v599
        %v1808 = vunpack.c.l.b16 %v600
        %v1809 = vunpack.c.h.b16 %v600
        %v1810 = vunpack.c.l.b16 %v601
        %v1811 = vunpack.c.h.b16 %v601
        %v1812 = vunpack.c.l.b16 %v602
        %v1813 = vunpack.c.h.b16 %v602
        %v1814 = vunpack.c.l.b16 %v603
        %v1815 = vunpack.c.h.b16 %v603
        %v1816 = vunpack.c.l.b16 %v604
        %v1817 = vunpack.c.h.b16 %v604
        %v1818 = vunpack.c.l.b16 %v605
        %v1819 = vunpack.c.h.b16 %v605
        %v1820 = vunpack.c.l.b16 %v606
        %v1821 = vunpack.c.h.b16 %v606
        %v1822 = vunpack.c.l.b16 %v607
        %v1823 = vunpack.c.h.b16 %v607
        %v1824 = vunpack.c.l.b16 %v608
        %v1825 = vunpack.c.h.b16 %v608
        %v1826 = vunpack.c.l.b16 %v609
        %v1827 = vunpack.c.h.b16 %v609
        %v1828 = vunpack.c.l.b16 %v610
        %v1829 = vunpack.c.h.b16 %v610
        %v1830 = vunpack.c.l.b16 %v611
        %v1831 = vunpack.c.h.b16 %v611
        %v1832 = vunpack.c.l.b16 %v612
        %v1833 = vunpack.c.h.b16 %v612
        %v1834 = vunpack.c.l.b16 %v613
        %v1835 = vunpack.c.h.b16 %v613
        %v1836 = vunpack.c.l.b16 %v614
        %v1837 = vunpack.c.h.b16 %v614
        %v1838 = vunpack.c.l.b16 %v615
        %v1839 = vunpack.c.h.b16 %v615
        %v1840 = vunpack.c.l.b16 %v616
        %v1841 = vunpack.c.h.b16 %v616
        %v1842 = vunpack.c.l.b16 %v617
        %v1843 = vunpack.c.h.b16 %v617
        %v1844 = vunpack.c.l.b16 %v618
        %v1845 = vunpack.c.h.b16 %v618
        %v1846 = vunpack.c.l.b16 %v619
        %v1847 = vunpack.c.h.b16 %v619
        %v1848 = vunpack.c.l.b16 %v620
        %v1849 = vunpack.c.h.b16 %v620
        %v1850 = vunpack.c.l.b16 %v621
        %v1851 = vunpack.c.h.b16 %v621
        %v1852 = vunpack.c.l.b16 %v622
        %v1853 = vunpack.c.h.b16 %v622
        %v1854 = vunpack.c.l.b16 %v623
        %v1855 = vunpack.c.h.b16 %v623
        %v1856 = vunpack.c.l.b16 %v624
        %v1857 = vunpack.c.h.b16 %v624
        %v1858 = vunpack.c.l.b16 %v625
        %v1859 = vunpack.c.h.b16 %v625
        %v1860 = vunpack.c.l.b16 %v626
        %v1861 = vunpack.c.h.b16 %v626
        %v1862 = vunpack.c.l.b16 %v627
        %v1863 = vunpack.c.h.b16 %v627
        %v1864 = vunpack.c.l.b16 %v628
        %v1865 = vunpack.c.h.b16 %v628
        %v1866 = vunpack.c.l.b16 %v629
        %v1867 = vunpack.c.h.b16 %v629
        %v1868 = vunpack.c.l.b16 %v630
        %v1869 = vunpack.c.h.b16 %v630
        %v1870 = vunpack.c.l.b16 %v631
        %v1871 = vunpack.c.h.b16 %v631
        %v1872 = vunpack.c.l.b16 %v632
        %v1873 = vunpack.c.h.b16 %v632
        %v1874 = vunpack.c.l.b16 %v633
        %v1875 = vunpack.c.h.b16 %v633
        %v1876 = vunpack.c.l.b16 %v634
        %v1877 = vunpack.c.h.b16 %v634
        %v1878 = vunpack.c.l.b16 %v635
        %v1879 = vunpack.c.h.b16 %v635
        %v1880 = vunpack.c.l.b16 %v636
        %v1881 = vunpack.c.h.b16 %v636
        %v1882 = vunpack.c.l.b16 %v637
        %v1883 = vunpack.c.h.b16 %v637
        %v1884 = vunpack.c.l.b16 %v638
        %v1885 = vunpack.c.h.b16 %v638
        %v1886 = vunpack.c.l.b16 %v639
        %v1887 = vunpack.c.h.b16 %v639
        %v1888 = vunpack.c.l.b16 %v640
        %v1889 = vunpack.c.h.b16 %v640
        %v1890 = vunpack.c.l.b16 %v641
        %v1891 = vunpack.c.h.b16 %v641
        %v1892 = vunpack.c.l.b16 %v642
        %v1893 = vunpack.c.h.b16 %v642
        %v1894 = vunpack.c.l.b16 %v643
        %v1895 = vunpack.c.h.b16 %v643
        %v1896 = vunpack.c.l.b16 %v644
        %v1897 = vunpack.c.h.b16 %v644
        %v1898 = vunpack.c.l.b16 %v645
        %v1899 = vunpack.c.h.b16 %v645
        %v1900 = vunpack.c.l.b16 %v646
        %v1901 = vunpack.c.h.b16 %v646
        %v1902 = vunpack.c.l.b16 %v647
        %v1903 = vunpack.c.h.b16 %v647
        %v1904 = vunpack.c.l.b16 %v648
        %v1905 = vunpack.c.h.b16 %v648
        %v1906 = vunpack.c.l.b16 %v649
        %v1907 = vunpack.c.h.b16 %v649
        %v1908 = vunpack.c.l.b16 %v650
        %v1909 = vunpack.c.h.b16 %v650
        %v1910 = vunpack.c.l.b16 %v651
        %v1911 = vunpack.c.h.b16 %v651
        %v1912 = vunpack.c.l.b16 %v652
        %v1913 = vunpack.c.h.b16 %v652
        %v1914 = vunpack.c.l.b16 %v653
        %v1915 = vunpack.c.h.b16 %v653
        %v1916 = vunpack.c.l.b16 %v654
        %v1917 = vunpack.c.h.b16 %v654
        %v1918 = vunpack.c.l.b16 %v655
        %v1919 = vunpack.c.h.b16 %v655
        %v1920 = vunpack.c.l.b16 %v656
        %v1921 = vunpack.c.h.b16 %v656
        %v1922 = vunpack.c.l.b16 %v657
        %v1923 = vunpack.c.h.b16 %v657
        %v1924 = vunpack.c.l.b16 %v658
        %v1925 = vunpack.c.h.b16 %v658
        %v1926 = vunpack.c.l.b16 %v659
        %v1927 = vunpack.c.h.b16 %v659
        %v1928 = vunpack.c.l.b16 %v660
        %v1929 = vunpack.c.h.b16 %v660
        %v1930 = vunpack.c.l.b16 %v661
        %v1931 = vunpack.c.h.b16 %v661
        %v1932 = vunpack.c.l.b16 %v662
        %v1933 = vunpack.c.h.b16 %v662
        %v1934 = vunpack.c.l.b16 %v663
        %v1935 = vunpack.c.h.b16 %v663
        %v1936 = vunpack.c.l.b16 %v664
        %v1937 = vunpack.c.h.b16 %v664
        %v1938 = vunpack.c.l.b16 %v665
        %v1939 = vunpack.c.h.b16 %v665
        %v1940 = vunpack.c.l.b16 %v666
        %v1941 = vunpack.c.h.b16 %v666
        %v1942 = vunpack.c.l.b16 %v667
        %v1943 = vunpack.c.h.b16 %v667
        %v1944 = vunpack.c.l.b16 %v668
        %v1945 = vunpack.c.h.b16 %v668
        %v1946 = vunpack.c.l.b16 %v669
        %v1947 = vunpack.c.h.b16 %v669
        %v1948 = vunpack.c.l.b16 %v670
        %v1949 = vunpack.c.h.b16 %v670
        %v1950 = vunpack.c.l.b16 %v671
        %v1951 = vunpack.c.h.b16 %v671
        %v1952 = vunpack.c.l.b16 %v672
        %v1953 = vunpack.c.h.b16 %v672
        %v1954 = vunpack.c.l.b16 %v673
        %v1955 = vunpack.c.h.b16 %v673
        %v1956 = vunpack.c.l.b16 %v674
        %v1957 = vunpack.c.h.b16 %v674
        %v1958 = vunpack.c.l.b16 %v675
        %v1959 = vunpack.c.h.b16 %v675
        %v1960 = vunpack.c.l.b16 %v676
        %v1961 = vunpack.c.h.b16 %v676
        %v1962 = vunpack.c.l.b16 %v677
        %v1963 = vunpack.c.h.b16 %v677
        %v1964 = vunpack.c.l.b16 %v678
        %v1965 = vunpack.c.h.b16 %v678
        %v1966 = vunpack.c.l.b16 %v679
        %v1967 = vunpack.c.h.b16 %v679
        %v1968 = vunpack.c.l.b16 %v680
        %v1969 = vunpack.c.h.b16 %v680
        %v1970 = vunpack.c.l.b16 %v681
        %v1971 = vunpack.c.h.b16 %v681
        %v1972 = vunpack.c.l.b16 %v682
        %v1973 = vunpack.c.h.b16 %v682
        %v1974 = vunpack.c.l.b16 %v683
        %v1975 = vunpack.c.h.b16 %v683
        %v1976 = vunpack.c.l.b16 %v684
        %v1977 = vunpack.c.h.b16 %v684
        %v1978 = vunpack.c.l.b16 %v685
        %v1979 = vunpack.c.h.b16 %v685
        %v1980 = vunpack.c.l.b16 %v686
        %v1981 = vunpack.c.h.b16 %v686
        %v1982 = vunpack.c.l.b16 %v687
        %v1983 = vunpack.c.h.b16 %v687
        %v1984 = vunpack.c.l.b16 %v688
        %v1985 = vunpack.c.h.b16 %v688
        %v1986 = vunpack.c.l.b16 %v689
        %v1987 = vunpack.c.h.b16 %v689
        %v1988 = vunpack.c.l.b16 %v690
        %v1989 = vunpack.c.h.b16 %v690
        %v1990 = vunpack.c.l.b16 %v691
        %v1991 = vunpack.c.h.b16 %v691
        %v1992 = vunpack.c.l.b16 %v692
        %v1993 = vunpack.c.h.b16 %v692
        %v1994 = vunpack.c.l.b16 %v693
        %v1995 = vunpack.c.h.b16 %v693
        %v1996 = vunpack.c.l.b16 %v694
        %v1997 = vunpack.c.h.b16 %v694
        %v1998 = vunpack.c.l.b16 %v695
        %v1999 = vunpack.c.h.b16 %v695
        %v2000 = vunpack.c.l.b16 %v696
        %v2001 = vunpack.c.h.b16 %v696
        %v2002 = vunpack.c.l.b16 %v697
        %v2003 = vunpack.c.h.b16 %v697
        %v2004 = vunpack.c.l.b16 %v698
        %v2005 = vunpack.c.h.b16 %v698
        %v2006 = vunpack.c.l.b16 %v699
        %v2007 = vunpack.c.h.b16 %v699
        %v2008 = vunpack.c.l.b16 %v700
        %v2009 = vunpack.c.h.b16 %v700
        %v2010 = vunpack.c.l.b16 %v701
        %v2011 = vunpack.c.h.b16 %v701
        %v2012 = vunpack.c.l.b16 %v702
        %v2013 = vunpack.c.h.b16 %v702
        %v2014 = vunpack.c.l.b16 %v703
        %v2015 = vunpack.c.h.b16 %v703
        %v2016 = vunpack.c.l.b16 %v704
        %v2017 = vunpack.c.h.b16 %v704
        %v2018 = vunpack.c.l.b16 %v705
        %v2019 = vunpack.c.h.b16 %v705
        %v2020 = vunpack.c.l.b16 %v706
        %v2021 = vunpack.c.h.b16 %v706
        %v2022 = vunpack.c.l.b16 %v707
        %v2023 = vunpack.c.h.b16 %v707
        %v2024 = vunpack.c.l.b16 %v708
        %v2025 = vunpack.c.h.b16 %v708
        %v2026 = vunpack.c.l.b16 %v709
        %v2027 = vunpack.c.h.b16 %v709
        %v2028 = vunpack.c.l.b16 %v710
        %v2029 = vunpack.c.h.b16 %v710
        %v2030 = vunpack.c.l.b16 %v711
        %v2031 = vunpack.c.h.b16 %v711
        %v2032 = vunpack.c.l.b16 %v712
        %v2033 = vunpack.c.h.b16 %v712
        %v2034 = vunpack.c.l.b16 %v713
        %v2035 = vunpack.c.h.b16 %v713
        %v2036 = vunpack.c.l.b16 %v714
        %v2037 = vunpack.c.h.b16 %v714
        %v2038 = vunpack.c.l.b16 %v715
        %v2039 = vunpack.c.h.b16 %v715
        %v2040 = vunpack.c.l.b16 %v716
        %v2041 = vunpack.c.h.b16 %v716
        %v2042 = vunpack.c.l.b16 %v717
        %v2043 = vunpack.c.h.b16 %v717
        %v2044 = vunpack.c.l.b16 %v718
        %v2045 = vunpack.c.h.b16 %v718
        %v2046 = vunpack.c.l.b16 %v719
        %v2047 = vunpack.c.h.b16 %v719
        %v2048 = vunpack.c.l.b16 %v720
        %v2049 = vunpack.c.h.b16 %v720
        %v2050 = vunpack.c.l.b16 %v721
        %v2051 = vunpack.c.h.b16 %v721
        %v2052 = vunpack.c.l.b16 %v722
        %v2053 = vunpack.c.h.b16 %v722
        %v2054 = vunpack.c.l.b16 %v723
        %v2055 = vunpack.c.h.b16 %v723
        %v2056 = vunpack.c.l.b16 %v724
        %v2057 = vunpack.c.h.b16 %v724
        %v2058 = vunpack.c.l.b16 %v725
        %v2059 = vunpack.c.h.b16 %v725
        %v2060 = vunpack.c.l.b16 %v726
        %v2061 = vunpack.c.h.b16 %v726
        %v2062 = vunpack.c.l.b16 %v727
        %v2063 = vunpack.c.h.b16 %v727
        %v2064 = vunpack.c.l.b16 %v728
        %v2065 = vunpack.c.h.b16 %v728
        %v2066 = vunpack.c.l.b16 %v729
        %v2067 = vunpack.c.h.b16 %v729
        %v2068 = vunpack.c.l.b16 %v730
        %v2069 = vunpack.c.h.b16 %v730
        %v2070 = vunpack.c.l.b16 %v731
        %v2071 = vunpack.c.h.b16 %v731
        %v2072 = vunpack.c.l.b16 %v732
        %v2073 = vunpack.c.h.b16 %v732
        %v2074 = vunpack.c.l.b16 %v733
        %v2075 = vunpack.c.h.b16 %v733
        %v2076 = vunpack.c.l.b16 %v734
        %v2077 = vunpack.c.h.b16 %v734
        %v2078 = vunpack.c.l.b16 %v735
        %v2079 = vunpack.c.h.b16 %v735
        %v2080 = vunpack.c.l.b16 %v736
        %v2081 = vunpack.c.h.b16 %v736
        %v2082 = vunpack.c.l.b16 %v737
        %v2083 = vunpack.c.h.b16 %v737
        %v2084 = vunpack.c.l.b16 %v738
        %v2085 = vunpack.c.h.b16 %v738
        %v2086 = vunpack.c.l.b16 %v739
        %v2087 = vunpack.c.h.b16 %v739
        %v2088 = vunpack.c.l.b16 %v740
        %v2089 = vunpack.c.h.b16 %v740
        %v2090 = vunpack.c.l.b16 %v741
        %v2091 = vunpack.c.h.b16 %v741
        %v2092 = vunpack.c.l.b16 %v742
        %v2093 = vunpack.c.h.b16 %v742
        %v2094 = vunpack.c.l.b16 %v743
        %v2095 = vunpack.c.h.b16 %v743
        %v2096 = vunpack.c.l.b16 %v744
        %v2097 = vunpack.c.h.b16 %v744
        %v2098 = vunpack.c.l.b16 %v745
        %v2099 = vunpack.c.h.b16 %v745
        %v2100 = vunpack.c.l.b16 %v746
        %v2101 = vunpack.c.h.b16 %v746
        %v2102 = vunpack.c.l.b16 %v747
        %v2103 = vunpack.c.h.b16 %v747
        %v2104 = vunpack.c.l.b16 %v748
        %v2105 = vunpack.c.h.b16 %v748
        %v2106 = vunpack.c.l.b16 %v749
        %v2107 = vunpack.c.h.b16 %v749
        %v2108 = vunpack.c.l.b16 %v750
        %v2109 = vunpack.c.h.b16 %v750
        %v2110 = vunpack.c.l.b16 %v751
        %v2111 = vunpack.c.h.b16 %v751
        %v2112 = vunpack.c.l.b16 %v752
        %v2113 = vunpack.c.h.b16 %v752
        %v2114 = vunpack.c.l.b16 %v753
        %v2115 = vunpack.c.h.b16 %v753
        %v2116 = vunpack.c.l.b16 %v754
        %v2117 = vunpack.c.h.b16 %v754
        %v2118 = vunpack.c.l.b16 %v755
        %v2119 = vunpack.c.h.b16 %v755
        %v2120 = vunpack.c.l.b16 %v756
        %v2121 = vunpack.c.h.b16 %v756
        %v2122 = vunpack.c.l.b16 %v757
        %v2123 = vunpack.c.h.b16 %v757
        %v2124 = vunpack.c.l.b16 %v758
        %v2125 = vunpack.c.h.b16 %v758
        %v2126 = vunpack.c.l.b16 %v759
        %v2127 = vunpack.c.h.b16 %v759
        %v2128 = vunpack.c.l.b16 %v760
        %v2129 = vunpack.c.h.b16 %v760
        %v2130 = vunpack.c.l.b16 %v761
        %v2131 = vunpack.c.h.b16 %v761
        %v2132 = vunpack.c.l.b16 %v762
        %v2133 = vunpack.c.h.b16 %v762
        %v2134 = vunpack.c.l.b16 %v763
        %v2135 = vunpack.c.h.b16 %v763
        %v2136 = vunpack.c.l.b16 %v764
        %v2137 = vunpack.c.h.b16 %v764
        %v2138 = vunpack.c.l.b16 %v765
        %v2139 = vunpack.c.h.b16 %v765
        %v2140 = vunpack.c.l.b16 %v766
        %v2141 = vunpack.c.h.b16 %v766
        %v2142 = vunpack.c.l.b16 %v767
        %v2143 = vunpack.c.h.b16 %v767
        %v2144 = vunpack.c.l.b16 %v768
        %v2145 = vunpack.c.h.b16 %v768
        %v2146 = vunpack.c.l.b16 %v769
        %v2147 = vunpack.c.h.b16 %v769
        %v2148 = vunpack.c.l.b16 %v770
        %v2149 = vunpack.c.h.b16 %v770
        %v2150 = vunpack.c.l.b16 %v771
        %v2151 = vunpack.c.h.b16 %v771
        %v2152 = vunpack.c.l.b16 %v772
        %v2153 = vunpack.c.h.b16 %v772
        %v2154 = vunpack.c.l.b16 %v773
        %v2155 = vunpack.c.h.b16 %v773
        %v2156 = vunpack.c.l.b16 %v774
        %v2157 = vunpack.c.h.b16 %v774
        %v2158 = vunpack.c.l.b16 %v775
        %v2159 = vunpack.c.h.b16 %v775
        %v2160 = vunpack.c.l.b16 %v776
        %v2161 = vunpack.c.h.b16 %v776
        %v2162 = vunpack.c.l.b16 %v777
        %v2163 = vunpack.c.h.b16 %v777
        %v2164 = vunpack.c.l.b16 %v778
        %v2165 = vunpack.c.h.b16 %v778
        %v2166 = vunpack.c.l.b16 %v779
        %v2167 = vunpack.c.h.b16 %v779
        %v2168 = vunpack.c.l.b16 %v780
        %v2169 = vunpack.c.h.b16 %v780
        %v2170 = vunpack.c.l.b16 %v781
        %v2171 = vunpack.c.h.b16 %v781
        %v2172 = vunpack.c.l.b16 %v782
        %v2173 = vunpack.c.h.b16 %v782
        %v2174 = vunpack.c.l.b16 %v783
        %v2175 = vunpack.c.h.b16 %v783
        %v2176 = vunpack.c.l.b16 %v784
        %v2177 = vunpack.c.h.b16 %v784
        %v2178 = vunpack.c.l.b16 %v785
        %v2179 = vunpack.c.h.b16 %v785
        %v2180 = vunpack.c.l.b16 %v786
        %v2181 = vunpack.c.h.b16 %v786
        %v2182 = vunpack.c.l.b16 %v787
        %v2183 = vunpack.c.h.b16 %v787
        %v2184 = vunpack.c.l.b16 %v788
        %v2185 = vunpack.c.h.b16 %v788
        %v2186 = vunpack.c.l.b16 %v789
        %v2187 = vunpack.c.h.b16 %v789
        %v2188 = vunpack.c.l.b16 %v790
        %v2189 = vunpack.c.h.b16 %v790
        %v2190 = vunpack.c.l.b16 %v791
        %v2191 = vunpack.c.h.b16 %v791
        %v2192 = vunpack.c.l.b16 %v792
        %v2193 = vunpack.c.h.b16 %v792
        %v2194 = vunpack.c.l.b16 %v793
        %v2195 = vunpack.c.h.b16 %v793
        %v2196 = vunpack.c.l.b16 %v794
        %v2197 = vunpack.c.h.b16 %v794
        %v2198 = vunpack.c.l.b16 %v795
        %v2199 = vunpack.c.h.b16 %v795
        %v2200 = vunpack.c.l.b16 %v796
        %v2201 = vunpack.c.h.b16 %v796
        %v2202 = vunpack.c.l.b16 %v797
        %v2203 = vunpack.c.h.b16 %v797
        %v2204 = vunpack.c.l.b16 %v798
        %v2205 = vunpack.c.h.b16 %v798
        %v2206 = vunpack.c.l.b16 %v799
        %v2207 = vunpack.c.h.b16 %v799
        %v2208 = vunpack.c.l.b16 %v800
        %v2209 = vunpack.c.h.b16 %v800
        %v2210 = vunpack.c.l.b16 %v801
        %v2211 = vunpack.c.h.b16 %v801
        %v2212 = vunpack.c.l.b16 %v802
        %v2213 = vunpack.c.h.b16 %v802
        %v2214 = vunpack.c.l.b16 %v803
        %v2215 = vunpack.c.h.b16 %v803
        %v2216 = vunpack.c.l.b16 %v804
        %v2217 = vunpack.c.h.b16 %v804
        %v2218 = vunpack.c.l.b16 %v805
        %v2219 = vunpack.c.h.b16 %v805
        %v2220 = vunpack.c.l.b16 %v806
        %v2221 = vunpack.c.h.b16 %v806
        %v2222 = vunpack.c.l.b16 %v807
        %v2223 = vunpack.c.h.b16 %v807
        %v2224 = vunpack.c.l.b16 %v808
        %v2225 = vunpack.c.h.b16 %v808
        %v2226 = vunpack.c.l.b16 %v809
        %v2227 = vunpack.c.h.b16 %v809
        %v2228 = vunpack.c.l.b16 %v810
        %v2229 = vunpack.c.h.b16 %v810
        %v2230 = vunpack.c.l.b16 %v811
        %v2231 = vunpack.c.h.b16 %v811
        %v2232 = vunpack.c.l.b16 %v812
        %v2233 = vunpack.c.h.b16 %v812
        %v2234 = vunpack.c.l.b16 %v813
        %v2235 = vunpack.c.h.b16 %v813
        %v2236 = vunpack.c.l.b16 %v814
        %v2237 = vunpack.c.h.b16 %v814
        %v2238 = vunpack.c.l.b16 %v815
        %v2239 = vunpack.c.h.b16 %v815
        %v2240 = vunpack.c.l.b16 %v816
        %v2241 = vunpack.c.h.b16 %v816
        %v2242 = vunpack.c.l.b16 %v817
        %v2243 = vunpack.c.h.b16 %v817
        %v2244 = vunpack.c.l.b16 %v818
        %v2245 = vunpack.c.h.b16 %v818
        %v2246 = vunpack.c.l.b16 %v819
        %v2247 = vunpack.c.h.b16 %v819
        %v2248 = vunpack.c.l.b16 %v820
        %v2249 = vunpack.c.h.b16 %v820
        %v2250 = vunpack.c.l.b16 %v821
        %v2251 = vunpack.c.h.b16 %v821
        %v2252 = vunpack.c.l.b16 %v822
        %v2253 = vunpack.c.h.b16 %v822
        %v2254 = vunpack.c.l.b16 %v823
        %v2255 = vunpack.c.h.b16 %v823
        %v2256 = vunpack.c.l.b16 %v824
        %v2257 = vunpack.c.h.b16 %v824
        %v2258 = vunpack.c.l.b16 %v825
        %v2259 = vunpack.c.h.b16 %v825
        %v2260 = vunpack.c.l.b16 %v826
        %v2261 = vunpack.c.h.b16 %v826
        %v2262 = vunpack.c.l.b16 %v827
        %v2263 = vunpack.c.h.b16 %v827
        %v2264 = vunpack.c.l.b16 %v828
        %v2265 = vunpack.c.h.b16 %v828
        %v2266 = vunpack.c.l.b16 %v829
        %v2267 = vunpack.c.h.b16 %v829
        %v2268 = vunpack.c.l.b16 %v830
        %v2269 = vunpack.c.h.b16 %v830
        %v2270 = vunpack.c.l.b16 %v831
        %v2271 = vunpack.c.h.b16 %v831
        %v2272 = vunpack.c.l.b16 %v832
        %v2273 = vunpack.c.h.b16 %v832
        %v2274 = vunpack.c.l.b16 %v833
        %v2275 = vunpack.c.h.b16 %v833
        %v2276 = vunpack.c.l.b16 %v834
        %v2277 = vunpack.c.h.b16 %v834
        %v2278 = vunpack.c.l.b16 %v835
        %v2279 = vunpack.c.h.b16 %v835
        %v2280 = vunpack.c.l.b16 %v836
        %v2281 = vunpack.c.h.b16 %v836
        %v2282 = vunpack.c.l.b16 %v837
        %v2283 = vunpack.c.h.b16 %v837
        %v2284 = vunpack.c.l.b16 %v838
        %v2285 = vunpack.c.h.b16 %v838
        %v2286 = vunpack.c.l.b16 %v839
        %v2287 = vunpack.c.h.b16 %v839
        %v2288 = vunpack.c.l.b16 %v840
        %v2289 = vunpack.c.h.b16 %v840
        %v2290 = vunpack.c.l.b16 %v841
        %v2291 = vunpack.c.h.b16 %v841
        %v2292 = vunpack.c.l.b16 %v842
        %v2293 = vunpack.c.h.b16 %v842
        %v2294 = vunpack.c.l.b16 %v843
        %v2295 = vunpack.c.h.b16 %v843
        %v2296 = vunpack.c.l.b16 %v844
        %v2297 = vunpack.c.h.b16 %v844
        %v2298 = vunpack.c.l.b16 %v845
        %v2299 = vunpack.c.h.b16 %v845
        %v2300 = vunpack.c.l.b16 %v846
        %v2301 = vunpack.c.h.b16 %v846
        %v2302 = vunpack.c.l.b16 %v847
        %v2303 = vunpack.c.h.b16 %v847
        %v2304 = vunpack.c.l.b16 %v848
        %v2305 = vunpack.c.h.b16 %v848
        %v2306 = vunpack.c.l.b16 %v849
        %v2307 = vunpack.c.h.b16 %v849
        %v2308 = vunpack.c.l.b16 %v850
        %v2309 = vunpack.c.h.b16 %v850
        %v2310 = vunpack.c.l.b16 %v851
        %v2311 = vunpack.c.h.b16 %v851
        %v2312 = vunpack.c.l.b16 %v852
        %v2313 = vunpack.c.h.b16 %v852
        %v2314 = vunpack.c.l.b16 %v853
        %v2315 = vunpack.c.h.b16 %v853
        %v2316 = vunpack.c.l.b16 %v854
        %v2317 = vunpack.c.h.b16 %v854
        %v2318 = vunpack.c.l.b16 %v855
        %v2319 = vunpack.c.h.b16 %v855
        %v2320 = vunpack.c.l.b16 %v856
        %v2321 = vunpack.c.h.b16 %v856
        %v2322 = vunpack.c.l.b16 %v857
        %v2323 = vunpack.c.h.b16 %v857
        %v2324 = vunpack.c.l.b16 %v858
        %v2325 = vunpack.c.h.b16 %v858
        %v2326 = vunpack.c.l.b16 %v859
        %v2327 = vunpack.c.h.b16 %v859
        %v2328 = vunpack.c.l.b16 %v860
        %v2329 = vunpack.c.h.b16 %v860
        %v2330 = vunpack.c.l.b16 %v861
        %v2331 = vunpack.c.h.b16 %v861
        %v2332 = vunpack.c.l.b16 %v862
        %v2333 = vunpack.c.h.b16 %v862
        %v2334 = vunpack.c.l.b16 %v863
        %v2335 = vunpack.c.h.b16 %v863
        %v2336 = vunpack.c.l.b16 %v864
        %v2337 = vunpack.c.h.b16 %v864
        %v2338 = vunpack.c.l.b16 %v865
        %v2339 = vunpack.c.h.b16 %v865
        %v2340 = vunpack.c.l.b16 %v866
        %v2341 = vunpack.c.h.b16 %v866
        %v2342 = vunpack.c.l.b16 %v867
        %v2343 = vunpack.c.h.b16 %v867
        %v2344 = vunpack.c.l.b16 %v868
        %v2345 = vunpack.c.h.b16 %v868
        %v2346 = vunpack.c.l.b16 %v869
        %v2347 = vunpack.c.h.b16 %v869
        %v2348 = vunpack.c.l.b16 %v870
        %v2349 = vunpack.c.h.b16 %v870
        %v2350 = vunpack.c.l.b16 %v871
        %v2351 = vunpack.c.h.b16 %v871
        %v2352 = vunpack.c.l.b16 %v872
        %v2353 = vunpack.c.h.b16 %v872
        %v2354 = vunpack.c.l.b16 %v873
        %v2355 = vunpack.c.h.b16 %v873
        %v2356 = vunpack.c.l.b16 %v874
        %v2357 = vunpack.c.h.b16 %v874
        %v2358 = vunpack.c.l.b16 %v875
        %v2359 = vunpack.c.h.b16 %v875
        %v2360 = vunpack.c.l.b16 %v876
        %v2361 = vunpack.c.h.b16 %v876
        %v2362 = vunpack.c.l.b16 %v877
        %v2363 = vunpack.c.h.b16 %v877
        %v2364 = vunpack.c.l.b16 %v878
        %v2365 = vunpack.c.h.b16 %v878
        %v2366 = vunpack.c.l.b16 %v879
        %v2367 = vunpack.c.h.b16 %v879
        %v2368 = vunpack.c.l.b16 %v880
        %v2369 = vunpack.c.h.b16 %v880
        %v2370 = vunpack.c.l.b16 %v881
        %v2371 = vunpack.c.h.b16 %v881
        %v2372 = vunpack.c.l.b16 %v882
        %v2373 = vunpack.c.h.b16 %v882
        %v2374 = vunpack.c.l.b16 %v883
        %v2375 = vunpack.c.h.b16 %v883
        %v2376 = vunpack.c.l.b16 %v884
        %v2377 = vunpack.c.h.b16 %v884
        %v2378 = vunpack.c.l.b16 %v885
        %v2379 = vunpack.c.h.b16 %v885
        %v2380 = vunpack.c.l.b16 %v886
        %v2381 = vunpack.c.h.b16 %v886
        %v2382 = vunpack.c.l.b16 %v887
        %v2383 = vunpack.c.h.b16 %v887
        %v2384 = vunpack.c.l.b16 %v888
        %v2385 = vunpack.c.h.b16 %v888
        %v2386 = vunpack.c.l.b16 %v889
        %v2387 = vunpack.c.h.b16 %v889
        %v2388 = vunpack.c.l.b16 %v890
        %v2389 = vunpack.c.h.b16 %v890
        %v2390 = vunpack.c.l.b16 %v891
        %v2391 = vunpack.c.h.b16 %v891
        %v2392 = vunpack.c.l.b16 %v892
        %v2393 = vunpack.c.h.b16 %v892
        %v2394 = vunpack.c.l.b16 %v893
        %v2395 = vunpack.c.h.b16 %v893
        %v2396 = vunpack.c.l.b16 %v894
        %v2397 = vunpack.c.h.b16 %v894
        %v2398 = vunpack.c.l.b16 %v895
        %v2399 = vunpack.c.h.b16 %v895
        %v2400 = vunpack.c.l.b16 %v896
        %v2401 = vunpack.c.h.b16 %v896
        %v2402 = vunpack.c.l.b16 %v897
        %v2403 = vunpack.c.h.b16 %v897
        %v2404 = vunpack.c.l.b16 %v898
        %v2405 = vunpack.c.h.b16 %v898
        %v2406 = vunpack.c.l.b16 %v899
        %v2407 = vunpack.c.h.b16 %v899
        %v2408 = vunpack.c.l.b16 %v900
        %v2409 = vunpack.c.h.b16 %v900
        %v2410 = vunpack.c.l.b16 %v901
        %v2411 = vunpack.c.h.b16 %v901
        %v2412 = vunpack.c.l.b16 %v902
        %v2413 = vunpack.c.h.b16 %v902
        %v2414 = vunpack.c.l.b16 %v903
        %v2415 = vunpack.c.h.b16 %v903
        %v2416 = vunpack.c.l.b16 %v904
        %v2417 = vunpack.c.h.b16 %v904
        %v2418 = vunpack.c.l.b16 %v905
        %v2419 = vunpack.c.h.b16 %v905
        %v2420 = vunpack.c.l.b16 %v906
        %v2421 = vunpack.c.h.b16 %v906
        %v2422 = vunpack.c.l.b16 %v907
        %v2423 = vunpack.c.h.b16 %v907
        %v2424 = vunpack.c.l.b16 %v908
        %v2425 = vunpack.c.h.b16 %v908
        %v2426 = vunpack.c.l.b16 %v909
        %v2427 = vunpack.c.h.b16 %v909
        %v2428 = vunpack.c.l.b16 %v910
        %v2429 = vunpack.c.h.b16 %v910
        %v2430 = vunpack.c.l.b16 %v911
        %v2431 = vunpack.c.h.b16 %v911
        %v2432 = vunpack.c.l.b16 %v912
        %v2433 = vunpack.c.h.b16 %v912
        %v2434 = vunpack.c.l.b16 %v913
        %v2435 = vunpack.c.h.b16 %v913
        %v2436 = vunpack.c.l.b16 %v914
        %v2437 = vunpack.c.h.b16 %v914
        %v2438 = vunpack.c.l.b16 %v915
        %v2439 = vunpack.c.h.b16 %v915
        %v2440 = vunpack.c.l.b16 %v916
        %v2441 = vunpack.c.h.b16 %v916
        %v2442 = vunpack.c.l.b16 %v917
        %v2443 = vunpack.c.h.b16 %v917
        %v2444 = vunpack.c.l.b16 %v918
        %v2445 = vunpack.c.h.b16 %v918
        %v2446 = vunpack.c.l.b16 %v919
        %v2447 = vunpack.c.h.b16 %v919
        %v2448 = vunpack.c.l.b16 %v920
        %v2449 = vunpack.c.h.b16 %v920
        %v2450 = vunpack.c.l.b16 %v921
        %v2451 = vunpack.c.h.b16 %v921
        %v2452 = vunpack.c.l.b16 %v922
        %v2453 = vunpack.c.h.b16 %v922
        %v2454 = vunpack.c.l.b16 %v923
        %v2455 = vunpack.c.h.b16 %v923
        %v2456 = vunpack.c.l.b16 %v924
        %v2457 = vunpack.c.h.b16 %v924
        %v2458 = vunpack.c.l.b16 %v925
        %v2459 = vunpack.c.h.b16 %v925
        %v2460 = vunpack.c.l.b16 %v926
        %v2461 = vunpack.c.h.b16 %v926
        %v2462 = vunpack.c.l.b16 %v927
        %v2463 = vunpack.c.h.b16 %v927
        %v2464 = vunpack.c.l.b16 %v928
        %v2465 = vunpack.c.h.b16 %v928
        %v2466 = vunpack.c.l.b16 %v929
        %v2467 = vunpack.c.h.b16 %v929
        %v2468 = vunpack.c.l.b16 %v930
        %v2469 = vunpack.c.h.b16 %v930
        %v2470 = vunpack.c.l.b16 %v931
        %v2471 = vunpack.c.h.b16 %v931
        %v2472 = vunpack.c.l.b16 %v932
        %v2473 = vunpack.c.h.b16 %v932
        %v2474 = vunpack.c.l.b16 %v933
        %v2475 = vunpack.c.h.b16 %v933
        %v2476 = vunpack.c.l.b16 %v934
        %v2477 = vunpack.c.h.b16 %v934
        %v2478 = vunpack.c.l.b16 %v935
        %v2479 = vunpack.c.h.b16 %v935
        %v2480 = vunpack.c.l.b16 %v936
        %v2481 = vunpack.c.h.b16 %v936
        %v2482 = vunpack.c.l.b16 %v937
        %v2483 = vunpack.c.h.b16 %v937
        %v2484 = vunpack.c.l.b16 %v938
        %v2485 = vunpack.c.h.b16 %v938
        %v2486 = vunpack.c.l.b16 %v939
        %v2487 = vunpack.c.h.b16 %v939
        %v2488 = vunpack.c.l.b16 %v940
        %v2489 = vunpack.c.h.b16 %v940
        %v2490 = vunpack.c.l.b16 %v941
        %v2491 = vunpack.c.h.b16 %v941
        %v2492 = vunpack.c.l.b16 %v942
        %v2493 = vunpack.c.h.b16 %v942
        %v2494 = vunpack.c.l.b16 %v943
        %v2495 = vunpack.c.h.b16 %v943
        %v2496 = vunpack.c.l.b16 %v944
        %v2497 = vunpack.c.h.b16 %v944
        %v2498 = vunpack.c.l.b16 %v945
        %v2499 = vunpack.c.h.b16 %v945
        %v2500 = vunpack.c.l.b16 %v946
        %v2501 = vunpack.c.h.b16 %v946
        %v2502 = vunpack.c.l.b16 %v947
        %v2503 = vunpack.c.h.b16 %v947
        %v2504 = vunpack.c.l.b16 %v948
        %v2505 = vunpack.c.h.b16 %v948
        %v2506 = vunpack.c.l.b16 %v949
        %v2507 = vunpack.c.h.b16 %v949
        %v2508 = vunpack.c.l.b16 %v950
        %v2509 = vunpack.c.h.b16 %v950
        %v2510 = vunpack.c.l.b16 %v951
        %v2511 = vunpack.c.h.b16 %v951
        %v2512 = vunpack.c.l.b16 %v952
        %v2513 = vunpack.c.h.b16 %v952
        %v2514 = vunpack.c.l.b16 %v953
        %v2515 = vunpack.c.h.b16 %v953
        %v2516 = vunpack.c.l.b16 %v954
        %v2517 = vunpack.c.h.b16 %v954
        %v2518 = vunpack.c.l.b16 %v955
        %v2519 = vunpack.c.h.b16 %v955
        %v2520 = vunpack.c.l.b16 %v956
        %v2521 = vunpack.c.h.b16 %v956
        %v2522 = vunpack.c.l.b16 %v957
        %v2523 = vunpack.c.h.b16 %v957
        %v2524 = vpack.c.b16 %v1508, %v1500
        %v2525 = vpack.c.b16 %v1509, %v1501
        %v2526 = vpack.c.b16 %v1510, %v1502
        %v2527 = vpack.c.b16 %v1511, %v1503
        %v2528 = vpack.c.b16 %v1512, %v1504
        %v2529 = vpack.c.b16 %v1513, %v1505
        %v2530 = vpack.c.b16 %v1514, %v1506
        %v2531 = vpack.c.b16 %v1515, %v1507
        %v2532 = vpack.c.b16 %v1524, %v1516
        %v2533 = vpack.c.b16 %v1525, %v1517
        %v2534 = vpack.c.b16 %v1526, %v1518
        %v2535 = vpack.c.b16 %v1527, %v1519
        %v2536 = vpack.c.b16 %v1528, %v1520
        %v2537 = vpack.c.b16 %v1529, %v1521
        %v2538 = vpack.c.b16 %v1530, %v1522
        %v2539 = vpack.c.b16 %v1531, %v1523
        %v2540 = vpack.c.b16 %v1540, %v1532
        %v2541 = vpack.c.b16 %v1541, %v1533
        %v2542 = vpack.c.b16 %v1542, %v1534
        %v2543 = vpack.c.b16 %v1543, %v1535
        %v2544 = vpack.c.b16 %v1544, %v1536
        %v2545 = vpack.c.b16 %v1545, %v1537
        %v2546 = vpack.c.b16 %v1546, %v1538
        %v2547 = vpack.c.b16 %v1547, %v1539
        %v2548 = vpack.c.b16 %v1556, %v1548
        %v2549 = vpack.c.b16 %v1557, %v1549
        %v2550 = vpack.c.b16 %v1558, %v1550
        %v2551 = vpack.c.b16 %v1559, %v1551
        %v2552 = vpack.c.b16 %v1560, %v1552
        %v2553 = vpack.c.b16 %v1561, %v1553
        %v2554 = vpack.c.b16 %v1562, %v1554
        %v2555 = vpack.c.b16 %v1563, %v1555
        %v2556 = vpack.c.b16 %v1572, %v1564
        %v2557 = vpack.c.b16 %v1573, %v1565
        %v2558 = vpack.c.b16 %v1574, %v1566
        %v2559 = vpack.c.b16 %v1575, %v1567
        %v2560 = vpack.c.b16 %v1576, %v1568
        %v2561 = vpack.c.b16 %v1577, %v1569
        %v2562 = vpack.c.b16 %v1578, %v1570
        %v2563 = vpack.c.b16 %v1579, %v1571
        %v2564 = vpack.c.b16 %v1588, %v1580
        %v2565 = vpack.c.b16 %v1589, %v1581
        %v2566 = vpack.c.b16 %v1590, %v1582
        %v2567 = vpack.c.b16 %v1591, %v1583
        %v2568 = vpack.c.b16 %v1592, %v1584
        %v2569 = vpack.c.b16 %v1593, %v1585
        %v2570 = vpack.c.b16 %v1594, %v1586
        %v2571 = vpack.c.b16 %v1595, %v1587
        %v2572 = vpack.c.b16 %v1604, %v1596
        %v2573 = vpack.c.b16 %v1605, %v1597
        %v2574 = vpack.c.b16 %v1606, %v1598
        %v2575 = vpack.c.b16 %v1607, %v1599
        %v2576 = vpack.c.b16 %v1608, %v1600
        %v2577 = vpack.c.b16 %v1609, %v1601
        %v2578 = vpack.c.b16 %v1610, %v1602
        %v2579 = vpack.c.b16 %v1611, %v1603
        %v2580 = vpack.c.b16 %v1620, %v1612
        %v2581 = vpack.c.b16 %v1621, %v1613
        %v2582 = vpack.c.b16 %v1622, %v1614
        %v2583 = vpack.c.b16 %v1623, %v1615
        %v2584 = vpack.c.b16 %v1624, %v1616
        %v2585 = vpack.c.b16 %v1625, %v1617
        %v2586 = vpack.c.b16 %v1626, %v1618
        %v2587 = vpack.c.b16 %v1627, %v1619
        %v2588 = vpack.c.b16 %v1636, %v1628
        %v2589 = vpack.c.b16 %v1637, %v1629
        %v2590 = vpack.c.b16 %v1638, %v1630
        %v2591 = vpack.c.b16 %v1639, %v1631
        %v2592 = vpack.c.b16 %v1640, %v1632
        %v2593 = vpack.c.b16 %v1641, %v1633
        %v2594 = vpack.c.b16 %v1642, %v1634
        %v2595 = vpack.c.b16 %v1643, %v1635
        %v2596 = vpack.c.b16 %v1652, %v1644
        %v2597 = vpack.c.b16 %v1653, %v1645
        %v2598 = vpack.c.b16 %v1654, %v1646
        %v2599 = vpack.c.b16 %v1655, %v1647
        %v2600 = vpack.c.b16 %v1656, %v1648
        %v2601 = vpack.c.b16 %v1657, %v1649
        %v2602 = vpack.c.b16 %v1658, %v1650
        %v2603 = vpack.c.b16 %v1659, %v1651
        %v2604 = vpack.c.b16 %v1668, %v1660
        %v2605 = vpack.c.b16 %v1669, %v1661
        %v2606 = vpack.c.b16 %v1670, %v1662
        %v2607 = vpack.c.b16 %v1671, %v1663
        %v2608 = vpack.c.b16 %v1672, %v1664
        %v2609 = vpack.c.b16 %v1673, %v1665
        %v2610 = vpack.c.b16 %v1674, %v1666
        %v2611 = vpack.c.b16 %v1675, %v1667
        %v2612 = vpack.c.b16 %v1684, %v1676
        %v2613 = vpack.c.b16 %v1685, %v1677
        %v2614 = vpack.c.b16 %v1686, %v1678
        %v2615 = vpack.c.b16 %v1687, %v1679
        %v2616 = vpack.c.b16 %v1688, %v1680
        %v2617 = vpack.c.b16 %v1689, %v1681
        %v2618 = vpack.c.b16 %v1690, %v1682
        %v2619 = vpack.c.b16 %v1691, %v1683
        %v2620 = vpack.c.b16 %v1700, %v1692
        %v2621 = vpack.c.b16 %v1701, %v1693
        %v2622 = vpack.c.b16 %v1702, %v1694
        %v2623 = vpack.c.b16 %v1703, %v1695
        %v2624 = vpack.c.b16 %v1704, %v1696
        %v2625 = vpack.c.b16 %v1705, %v1697
        %v2626 = vpack.c.b16 %v1706, %v1698
        %v2627 = vpack.c.b16 %v1707, %v1699
        %v2628 = vpack.c.b16 %v1716, %v1708
        %v2629 = vpack.c.b16 %v1717, %v1709
        %v2630 = vpack.c.b16 %v1718, %v1710
        %v2631 = vpack.c.b16 %v1719, %v1711
        %v2632 = vpack.c.b16 %v1720, %v1712
        %v2633 = vpack.c.b16 %v1721, %v1713
        %v2634 = vpack.c.b16 %v1722, %v1714
        %v2635 = vpack.c.b16 %v1723, %v1715
        %v2636 = vpack.c.b16 %v1732, %v1724
        %v2637 = vpack.c.b16 %v1733, %v1725
        %v2638 = vpack.c.b16 %v1734, %v1726
        %v2639 = vpack.c.b16 %v1735, %v1727
        %v2640 = vpack.c.b16 %v1736, %v1728
        %v2641 = vpack.c.b16 %v1737, %v1729
        %v2642 = vpack.c.b16 %v1738, %v1730
        %v2643 = vpack.c.b16 %v1739, %v1731
        %v2644 = vpack.c.b16 %v1748, %v1740
        %v2645 = vpack.c.b16 %v1749, %v1741
        %v2646 = vpack.c.b16 %v1750, %v1742
        %v2647 = vpack.c.b16 %v1751, %v1743
        %v2648 = vpack.c.b16 %v1752, %v1744
        %v2649 = vpack.c.b16 %v1753, %v1745
        %v2650 = vpack.c.b16 %v1754, %v1746
        %v2651 = vpack.c.b16 %v1755, %v1747
        %v2652 = vpack.c.b16 %v1764, %v1756
        %v2653 = vpack.c.b16 %v1765, %v1757
        %v2654 = vpack.c.b16 %v1766, %v1758
        %v2655 = vpack.c.b16 %v1767, %v1759
        %v2656 = vpack.c.b16 %v1768, %v1760
        %v2657 = vpack.c.b16 %v1769, %v1761
        %v2658 = vpack.c.b16 %v1770, %v1762
        %v2659 = vpack.c.b16 %v1771, %v1763
        %v2660 = vpack.c.b16 %v1780, %v1772
        %v2661 = vpack.c.b16 %v1781, %v1773
        %v2662 = vpack.c.b16 %v1782, %v1774
        %v2663 = vpack.c.b16 %v1783, %v1775
        %v2664 = vpack.c.b16 %v1784, %v1776
        %v2665 = vpack.c.b16 %v1785, %v1777
        %v2666 = vpack.c.b16 %v1786, %v1778
        %v2667 = vpack.c.b16 %v1787, %v1779
        %v2668 = vpack.c.b16 %v1796, %v1788
        %v2669 = vpack.c.b16 %v1797, %v1789
        %v2670 = vpack.c.b16 %v1798, %v1790
        %v2671 = vpack.c.b16 %v1799, %v1791
        %v2672 = vpack.c.b16 %v1800, %v1792
        %v2673 = vpack.c.b16 %v1801, %v1793
        %v2674 = vpack.c.b16 %v1802, %v1794
        %v2675 = vpack.c.b16 %v1803, %v1795
        %v2676 = vpack.c.b16 %v1812, %v1804
        %v2677 = vpack.c.b16 %v1813, %v1805
        %v2678 = vpack.c.b16 %v1814, %v1806
        %v2679 = vpack.c.b16 %v1815, %v1807
        %v2680 = vpack.c.b16 %v1816, %v1808
        %v2681 = vpack.c.b16 %v1817, %v1809
        %v2682 = vpack.c.b16 %v1818, %v1810
        %v2683 = vpack.c.b16 %v1819, %v1811
        %v2684 = vpack.c.b16 %v1828, %v1820
        %v2685 = vpack.c.b16 %v1829, %v1821
        %v2686 = vpack.c.b16 %v1830, %v1822
        %v2687 = vpack.c.b16 %v1831, %v1823
        %v2688 = vpack.c.b16 %v1832, %v1824
        %v2689 = vpack.c.b16 %v1833, %v1825
        %v2690 = vpack.c.b16 %v1834, %v1826
        %v2691 = vpack.c.b16 %v1835, %v1827
        %v2692 = vpack.c.b16 %v1844, %v1836
        %v2693 = vpack.c.b16 %v1845, %v1837
        %v2694 = vpack.c.b16 %v1846, %v1838
        %v2695 = vpack.c.b16 %v1847, %v1839
        %v2696 = vpack.c.b16 %v1848, %v1840
        %v2697 = vpack.c.b16 %v1849, %v1841
        %v2698 = vpack.c.b16 %v1850, %v1842
        %v2699 = vpack.c.b16 %v1851, %v1843
        %v2700 = vpack.c.b16 %v1860, %v1852
        %v2701 = vpack.c.b16 %v1861, %v1853
        %v2702 = vpack.c.b16 %v1862, %v1854
        %v2703 = vpack.c.b16 %v1863, %v1855
        %v2704 = vpack.c.b16 %v1864, %v1856
        %v2705 = vpack.c.b16 %v1865, %v1857
        %v2706 = vpack.c.b16 %v1866, %v1858
        %v2707 = vpack.c.b16 %v1867, %v1859
        %v2708 = vpack.c.b16 %v1876, %v1868
        %v2709 = vpack.c.b16 %v1877, %v1869
        %v2710 = vpack.c.b16 %v1878, %v1870
        %v2711 = vpack.c.b16 %v1879, %v1871
        %v2712 = vpack.c.b16 %v1880, %v1872
        %v2713 = vpack.c.b16 %v1881, %v1873
        %v2714 = vpack.c.b16 %v1882, %v1874
        %v2715 = vpack.c.b16 %v1883, %v1875
        %v2716 = vpack.c.b16 %v1892, %v1884
        %v2717 = vpack.c.b16 %v1893, %v1885
        %v2718 = vpack.c.b16 %v1894, %v1886
        %v2719 = vpack.c.b16 %v1895, %v1887
        %v2720 = vpack.c.b16 %v1896, %v1888
        %v2721 = vpack.c.b16 %v1897, %v1889
        %v2722 = vpack.c.b16 %v1898, %v1890
        %v2723 = vpack.c.b16 %v1899, %v1891
        %v2724 = vpack.c.b16 %v1908, %v1900
        %v2725 = vpack.c.b16 %v1909, %v1901
        %v2726 = vpack.c.b16 %v1910, %v1902
        %v2727 = vpack.c.b16 %v1911, %v1903
        %v2728 = vpack.c.b16 %v1912, %v1904
        %v2729 = vpack.c.b16 %v1913, %v1905
        %v2730 = vpack.c.b16 %v1914, %v1906
        %v2731 = vpack.c.b16 %v1915, %v1907
        %v2732 = vpack.c.b16 %v1924, %v1916
        %v2733 = vpack.c.b16 %v1925, %v1917
        %v2734 = vpack.c.b16 %v1926, %v1918
        %v2735 = vpack.c.b16 %v1927, %v1919
        %v2736 = vpack.c.b16 %v1928, %v1920
        %v2737 = vpack.c.b16 %v1929, %v1921
        %v2738 = vpack.c.b16 %v1930, %v1922
        %v2739 = vpack.c.b16 %v1931, %v1923
        %v2740 = vpack.c.b16 %v1940, %v1932
        %v2741 = vpack.c.b16 %v1941, %v1933
        %v2742 = vpack.c.b16 %v1942, %v1934
        %v2743 = vpack.c.b16 %v1943, %v1935
        %v2744 = vpack.c.b16 %v1944, %v1936
        %v2745 = vpack.c.b16 %v1945, %v1937
        %v2746 = vpack.c.b16 %v1946, %v1938
        %v2747 = vpack.c.b16 %v1947, %v1939
        %v2748 = vpack.c.b16 %v1956, %v1948
        %v2749 = vpack.c.b16 %v1957, %v1949
        %v2750 = vpack.c.b16 %v1958, %v1950
        %v2751 = vpack.c.b16 %v1959, %v1951
        %v2752 = vpack.c.b16 %v1960, %v1952
        %v2753 = vpack.c.b16 %v1961, %v1953
        %v2754 = vpack.c.b16 %v1962, %v1954
        %v2755 = vpack.c.b16 %v1963, %v1955
        %v2756 = vpack.c.b16 %v1972, %v1964
        %v2757 = vpack.c.b16 %v1973, %v1965
        %v2758 = vpack.c.b16 %v1974, %v1966
        %v2759 = vpack.c.b16 %v1975, %v1967
        %v2760 = vpack.c.b16 %v1976, %v1968
        %v2761 = vpack.c.b16 %v1977, %v1969
        %v2762 = vpack.c.b16 %v1978, %v1970
        %v2763 = vpack.c.b16 %v1979, %v1971
        %v2764 = vpack.c.b16 %v1988, %v1980
        %v2765 = vpack.c.b16 %v1989, %v1981
        %v2766 = vpack.c.b16 %v1990, %v1982
        %v2767 = vpack.c.b16 %v1991, %v1983
        %v2768 = vpack.c.b16 %v1992, %v1984
        %v2769 = vpack.c.b16 %v1993, %v1985
        %v2770 = vpack.c.b16 %v1994, %v1986
        %v2771 = vpack.c.b16 %v1995, %v1987
        %v2772 = vpack.c.b16 %v2004, %v1996
        %v2773 = vpack.c.b16 %v2005, %v1997
        %v2774 = vpack.c.b16 %v2006, %v1998
        %v2775 = vpack.c.b16 %v2007, %v1999
        %v2776 = vpack.c.b16 %v2008, %v2000
        %v2777 = vpack.c.b16 %v2009, %v2001
        %v2778 = vpack.c.b16 %v2010, %v2002
        %v2779 = vpack.c.b16 %v2011, %v2003
        %v2780 = vpack.c.b16 %v2020, %v2012
        %v2781 = vpack.c.b16 %v2021, %v2013
        %v2782 = vpack.c.b16 %v2022, %v2014
        %v2783 = vpack.c.b16 %v2023, %v2015
        %v2784 = vpack.c.b16 %v2024, %v2016
        %v2785 = vpack.c.b16 %v2025, %v2017
        %v2786 = vpack.c.b16 %v2026, %v2018
        %v2787 = vpack.c.b16 %v2027, %v2019
        %v2788 = vpack.c.b16 %v2036, %v2028
        %v2789 = vpack.c.b16 %v2037, %v2029
        %v2790 = vpack.c.b16 %v2038, %v2030
        %v2791 = vpack.c.b16 %v2039, %v2031
        %v2792 = vpack.c.b16 %v2040, %v2032
        %v2793 = vpack.c.b16 %v2041, %v2033
        %v2794 = vpack.c.b16 %v2042, %v2034
        %v2795 = vpack.c.b16 %v2043, %v2035
        %v2796 = vpack.c.b16 %v2052, %v2044
        %v2797 = vpack.c.b16 %v2053, %v2045
        %v2798 = vpack.c.b16 %v2054, %v2046
        %v2799 = vpack.c.b16 %v2055, %v2047
        %v2800 = vpack.c.b16 %v2056, %v2048
        %v2801 = vpack.c.b16 %v2057, %v2049
        %v2802 = vpack.c.b16 %v2058, %v2050
        %v2803 = vpack.c.b16 %v2059, %v2051
        %v2804 = vpack.c.b16 %v2068, %v2060
        %v2805 = vpack.c.b16 %v2069, %v2061
        %v2806 = vpack.c.b16 %v2070, %v2062
        %v2807 = vpack.c.b16 %v2071, %v2063
        %v2808 = vpack.c.b16 %v2072, %v2064
        %v2809 = vpack.c.b16 %v2073, %v2065
        %v2810 = vpack.c.b16 %v2074, %v2066
        %v2811 = vpack.c.b16 %v2075, %v2067
        %v2812 = vpack.c.b16 %v2084, %v2076
        %v2813 = vpack.c.b16 %v2085, %v2077
        %v2814 = vpack.c.b16 %v2086, %v2078
        %v2815 = vpack.c.b16 %v2087, %v2079
        %v2816 = vpack.c.b16 %v2088, %v2080
        %v2817 = vpack.c.b16 %v2089, %v2081
        %v2818 = vpack.c.b16 %v2090, %v2082
        %v2819 = vpack.c.b16 %v2091, %v2083
        %v2820 = vpack.c.b16 %v2100, %v2092
        %v2821 = vpack.c.b16 %v2101, %v2093
        %v2822 = vpack.c.b16 %v2102, %v2094
        %v2823 = vpack.c.b16 %v2103, %v2095
        %v2824 = vpack.c.b16 %v2104, %v2096
        %v2825 = vpack.c.b16 %v2105, %v2097
        %v2826 = vpack.c.b16 %v2106, %v2098
        %v2827 = vpack.c.b16 %v2107, %v2099
        %v2828 = vpack.c.b16 %v2116, %v2108
        %v2829 = vpack.c.b16 %v2117, %v2109
        %v2830 = vpack.c.b16 %v2118, %v2110
        %v2831 = vpack.c.b16 %v2119, %v2111
        %v2832 = vpack.c.b16 %v2120, %v2112
        %v2833 = vpack.c.b16 %v2121, %v2113
        %v2834 = vpack.c.b16 %v2122, %v2114
        %v2835 = vpack.c.b16 %v2123, %v2115
        %v2836 = vpack.c.b16 %v2132, %v2124
        %v2837 = vpack.c.b16 %v2133, %v2125
        %v2838 = vpack.c.b16 %v2134, %v2126
        %v2839 = vpack.c.b16 %v2135, %v2127
        %v2840 = vpack.c.b16 %v2136, %v2128
        %v2841 = vpack.c.b16 %v2137, %v2129
        %v2842 = vpack.c.b16 %v2138, %v2130
        %v2843 = vpack.c.b16 %v2139, %v2131
        %v2844 = vpack.c.b16 %v2148, %v2140
        %v2845 = vpack.c.b16 %v2149, %v2141
        %v2846 = vpack.c.b16 %v2150, %v2142
        %v2847 = vpack.c.b16 %v2151, %v2143
        %v2848 = vpack.c.b16 %v2152, %v2144
        %v2849 = vpack.c.b16 %v2153, %v2145
        %v2850 = vpack.c.b16 %v2154, %v2146
        %v2851 = vpack.c.b16 %v2155, %v2147
        %v2852 = vpack.c.b16 %v2164, %v2156
        %v2853 = vpack.c.b16 %v2165, %v2157
        %v2854 = vpack.c.b16 %v2166, %v2158
        %v2855 = vpack.c.b16 %v2167, %v2159
        %v2856 = vpack.c.b16 %v2168, %v2160
        %v2857 = vpack.c.b16 %v2169, %v2161
        %v2858 = vpack.c.b16 %v2170, %v2162
        %v2859 = vpack.c.b16 %v2171, %v2163
        %v2860 = vpack.c.b16 %v2180, %v2172
        %v2861 = vpack.c.b16 %v2181, %v2173
        %v2862 = vpack.c.b16 %v2182, %v2174
        %v2863 = vpack.c.b16 %v2183, %v2175
        %v2864 = vpack.c.b16 %v2184, %v2176
        %v2865 = vpack.c.b16 %v2185, %v2177
        %v2866 = vpack.c.b16 %v2186, %v2178
        %v2867 = vpack.c.b16 %v2187, %v2179
        %v2868 = vpack.c.b16 %v2196, %v2188
        %v2869 = vpack.c.b16 %v2197, %v2189
        %v2870 = vpack.c.b16 %v2198, %v2190
        %v2871 = vpack.c.b16 %v2199, %v2191
        %v2872 = vpack.c.b16 %v2200, %v2192
        %v2873 = vpack.c.b16 %v2201, %v2193
        %v2874 = vpack.c.b16 %v2202, %v2194
        %v2875 = vpack.c.b16 %v2203, %v2195
        %v2876 = vpack.c.b16 %v2212, %v2204
        %v2877 = vpack.c.b16 %v2213, %v2205
        %v2878 = vpack.c.b16 %v2214, %v2206
        %v2879 = vpack.c.b16 %v2215, %v2207
        %v2880 = vpack.c.b16 %v2216, %v2208
        %v2881 = vpack.c.b16 %v2217, %v2209
        %v2882 = vpack.c.b16 %v2218, %v2210
        %v2883 = vpack.c.b16 %v2219, %v2211
        %v2884 = vpack.c.b16 %v2228, %v2220
        %v2885 = vpack.c.b16 %v2229, %v2221
        %v2886 = vpack.c.b16 %v2230, %v2222
        %v2887 = vpack.c.b16 %v2231, %v2223
        %v2888 = vpack.c.b16 %v2232, %v2224
        %v2889 = vpack.c.b16 %v2233, %v2225
        %v2890 = vpack.c.b16 %v2234, %v2226
        %v2891 = vpack.c.b16 %v2235, %v2227
        %v2892 = vpack.c.b16 %v2244, %v2236
        %v2893 = vpack.c.b16 %v2245, %v2237
        %v2894 = vpack.c.b16 %v2246, %v2238
        %v2895 = vpack.c.b16 %v2247, %v2239
        %v2896 = vpack.c.b16 %v2248, %v2240
        %v2897 = vpack.c.b16 %v2249, %v2241
        %v2898 = vpack.c.b16 %v2250, %v2242
        %v2899 = vpack.c.b16 %v2251, %v2243
        %v2900 = vpack.c.b16 %v2260, %v2252
        %v2901 = vpack.c.b16 %v2261, %v2253
        %v2902 = vpack.c.b16 %v2262, %v2254
        %v2903 = vpack.c.b16 %v2263, %v2255
        %v2904 = vpack.c.b16 %v2264, %v2256
        %v2905 = vpack.c.b16 %v2265, %v2257
        %v2906 = vpack.c.b16 %v2266, %v2258
        %v2907 = vpack.c.b16 %v2267, %v2259
        %v2908 = vpack.c.b16 %v2276, %v2268
        %v2909 = vpack.c.b16 %v2277, %v2269
        %v2910 = vpack.c.b16 %v2278, %v2270
        %v2911 = vpack.c.b16 %v2279, %v2271
        %v2912 = vpack.c.b16 %v2280, %v2272
        %v2913 = vpack.c.b16 %v2281, %v2273
        %v2914 = vpack.c.b16 %v2282, %v2274
        %v2915 = vpack.c.b16 %v2283, %v2275
        %v2916 = vpack.c.b16 %v2292, %v2284
        %v2917 = vpack.c.b16 %v2293, %v2285
        %v2918 = vpack.c.b16 %v2294, %v2286
        %v2919 = vpack.c.b16 %v2295, %v2287
        %v2920 = vpack.c.b16 %v2296, %v2288
        %v2921 = vpack.c.b16 %v2297, %v2289
        %v2922 = vpack.c.b16 %v2298, %v2290
        %v2923 = vpack.c.b16 %v2299, %v2291
        %v2924 = vpack.c.b16 %v2308, %v2300
        %v2925 = vpack.c.b16 %v2309, %v2301
        %v2926 = vpack.c.b16 %v2310, %v2302
        %v2927 = vpack.c.b16 %v2311, %v2303
        %v2928 = vpack.c.b16 %v2312, %v2304
        %v2929 = vpack.c.b16 %v2313, %v2305
        %v2930 = vpack.c.b16 %v2314, %v2306
        %v2931 = vpack.c.b16 %v2315, %v2307
        %v2932 = vpack.c.b16 %v2324, %v2316
        %v2933 = vpack.c.b16 %v2325, %v2317
        %v2934 = vpack.c.b16 %v2326, %v2318
        %v2935 = vpack.c.b16 %v2327, %v2319
        %v2936 = vpack.c.b16 %v2328, %v2320
        %v2937 = vpack.c.b16 %v2329, %v2321
        %v2938 = vpack.c.b16 %v2330, %v2322
        %v2939 = vpack.c.b16 %v2331, %v2323
        %v2940 = vpack.c.b16 %v2340, %v2332
        %v2941 = vpack.c.b16 %v2341, %v2333
        %v2942 = vpack.c.b16 %v2342, %v2334
        %v2943 = vpack.c.b16 %v2343, %v2335
        %v2944 = vpack.c.b16 %v2344, %v2336
        %v2945 = vpack.c.b16 %v2345, %v2337
        %v2946 = vpack.c.b16 %v2346, %v2338
        %v2947 = vpack.c.b16 %v2347, %v2339
        %v2948 = vpack.c.b16 %v2356, %v2348
        %v2949 = vpack.c.b16 %v2357, %v2349
        %v2950 = vpack.c.b16 %v2358, %v2350
        %v2951 = vpack.c.b16 %v2359, %v2351
        %v2952 = vpack.c.b16 %v2360, %v2352
        %v2953 = vpack.c.b16 %v2361, %v2353
        %v2954 = vpack.c.b16 %v2362, %v2354
        %v2955 = vpack.c.b16 %v2363, %v2355
        %v2956 = vpack.c.b16 %v2372, %v2364
        %v2957 = vpack.c.b16 %v2373, %v2365
        %v2958 = vpack.c.b16 %v2374, %v2366
        %v2959 = vpack.c.b16 %v2375, %v2367
        %v2960 = vpack.c.b16 %v2376, %v2368
        %v2961 = vpack.c.b16 %v2377, %v2369
        %v2962 = vpack.c.b16 %v2378, %v2370
        %v2963 = vpack.c.b16 %v2379, %v2371
        %v2964 = vpack.c.b16 %v2388, %v2380
        %v2965 = vpack.c.b16 %v2389, %v2381
        %v2966 = vpack.c.b16 %v2390, %v2382
        %v2967 = vpack.c.b16 %v2391, %v2383
        %v2968 = vpack.c.b16 %v2392, %v2384
        %v2969 = vpack.c.b16 %v2393, %v2385
        %v2970 = vpack.c.b16 %v2394, %v2386
        %v2971 = vpack.c.b16 %v2395, %v2387
        %v2972 = vpack.c.b16 %v2404, %v2396
        %v2973 = vpack.c.b16 %v2405, %v2397
        %v2974 = vpack.c.b16 %v2406, %v2398
        %v2975 = vpack.c.b16 %v2407, %v2399
        %v2976 = vpack.c.b16 %v2408, %v2400
        %v2977 = vpack.c.b16 %v2409, %v2401
        %v2978 = vpack.c.b16 %v2410, %v2402
        %v2979 = vpack.c.b16 %v2411, %v2403
        %v2980 = vpack.c.b16 %v2420, %v2412
        %v2981 = vpack.c.b16 %v2421, %v2413
        %v2982 = vpack.c.b16 %v2422, %v2414
        %v2983 = vpack.c.b16 %v2423, %v2415
        %v2984 = vpack.c.b16 %v2424, %v2416
        %v2985 = vpack.c.b16 %v2425, %v2417
        %v2986 = vpack.c.b16 %v2426, %v2418
        %v2987 = vpack.c.b16 %v2427, %v2419
        %v2988 = vpack.c.b16 %v2436, %v2428
        %v2989 = vpack.c.b16 %v2437, %v2429
        %v2990 = vpack.c.b16 %v2438, %v2430
        %v2991 = vpack.c.b16 %v2439, %v2431
        %v2992 = vpack.c.b16 %v2440, %v2432
        %v2993 = vpack.c.b16 %v2441, %v2433
        %v2994 = vpack.c.b16 %v2442, %v2434
        %v2995 = vpack.c.b16 %v2443, %v2435
        %v2996 = vpack.c.b16 %v2452, %v2444
        %v2997 = vpack.c.b16 %v2453, %v2445
        %v2998 = vpack.c.b16 %v2454, %v2446
        %v2999 = vpack.c.b16 %v2455, %v2447
        %v3000 = vpack.c.b16 %v2456, %v2448
        %v3001 = vpack.c.b16 %v2457, %v2449
        %v3002 = vpack.c.b16 %v2458, %v2450
        %v3003 = vpack.c.b16 %v2459, %v2451
        %v3004 = vpack.c.b16 %v2468, %v2460
        %v3005 = vpack.c.b16 %v2469, %v2461
        %v3006 = vpack.c.b16 %v2470, %v2462
        %v3007 = vpack.c.b16 %v2471, %v2463
        %v3008 = vpack.c.b16 %v2472, %v2464
        %v3009 = vpack.c.b16 %v2473, %v2465
        %v3010 = vpack.c.b16 %v2474, %v2466
        %v3011 = vpack.c.b16 %v2475, %v2467
        %v3012 = vpack.c.b16 %v2484, %v2476
        %v3013 = vpack.c.b16 %v2485, %v2477
        %v3014 = vpack.c.b16 %v2486, %v2478
        %v3015 = vpack.c.b16 %v2487, %v2479
        %v3016 = vpack.c.b16 %v2488, %v2480
        %v3017 = vpack.c.b16 %v2489, %v2481
        %v3018 = vpack.c.b16 %v2490, %v2482
        %v3019 = vpack.c.b16 %v2491, %v2483
        %v3020 = vpack.c.b16 %v2500, %v2492
        %v3021 = vpack.c.b16 %v2501, %v2493
        %v3022 = vpack.c.b16 %v2502, %v2494
        %v3023 = vpack.c.b16 %v2503, %v2495
        %v3024 = vpack.c.b16 %v2504, %v2496
        %v3025 = vpack.c.b16 %v2505, %v2497
        %v3026 = vpack.c.b16 %v2506, %v2498
        %v3027 = vpack.c.b16 %v2507, %v2499
        %v3028 = vpack.c.b16 %v2516, %v2508
        %v3029 = vpack.c.b16 %v2517, %v2509
        %v3030 = vpack.c.b16 %v2518, %v2510
        %v3031 = vpack.c.b16 %v2519, %v2511
        %v3032 = vpack.c.b16 %v2520, %v2512
        %v3033 = vpack.c.b16 %v2521, %v2513
        %v3034 = vpack.c.b16 %v2522, %v2514
        %v3035 = vpack.c.b16 %v2523, %v2515
        %3548 = vmatprep.subr.bf16.mxu0 %v2581
        %3549 = vmatpush1.bf16.msra.mxu0 %v2580
        %3550 = vmatprep.subr.bf16.mxu0 %v2573
        %3551 = vmatpush1.bf16.msra.mxu0 %v2572
        %3552 = vmatprep.subr.bf16.mxu0 %v2565
        %3553 = vmatpush1.bf16.msra.mxu0 %v2564
        %3554 = vmatprep.subr.bf16.mxu0 %v2557
        %3555 = vmatpush1.bf16.msra.mxu0 %v2556
        %3556 = vmatprep.subr.bf16.mxu0 %v2549
        %3557 = vmatpush1.bf16.msra.mxu0 %v2548
        %3558 = vmatprep.subr.bf16.mxu0 %v2541
        %3559 = vmatpush1.bf16.msra.mxu0 %v2540
        %3560 = vmatprep.subr.bf16.mxu0 %v2533
        %3561 = vmatpush1.bf16.msra.mxu0 %v2532
        %3562 = vmatprep.subr.bf16.mxu0 %v2525
        %3563 = vmatpush1.bf16.msra.mxu0 %v2524
        %3564 = vmatprep.subr.bf16.mxu0 %v2645
        %3565 = vmatpush2.bf16.msra.mxu0 %v2644
        %3566 = vmatprep.subr.bf16.mxu0 %v2637
        %3567 = vmatpush2.bf16.msra.mxu0 %v2636
        %3568 = vmatprep.subr.bf16.mxu0 %v2629
        %3569 = vmatpush2.bf16.msra.mxu0 %v2628
        %3570 = vmatprep.subr.bf16.mxu0 %v2621
        %3571 = vmatpush2.bf16.msra.mxu0 %v2620
        %3572 = vmatprep.subr.bf16.mxu0 %v2613
        %3573 = vmatpush2.bf16.msra.mxu0 %v2612
        %3574 = vmatprep.subr.bf16.mxu0 %v2605
        %3575 = vmatpush2.bf16.msra.mxu0 %v2604
        %3576 = vmatprep.subr.bf16.mxu0 %v2597
        %3577 = vmatpush2.bf16.msra.mxu0 %v2596
        %3578 = vmatprep.subr.bf16.mxu0 %v2589
        %3579 = vmatpush2.bf16.msra.mxu0 %v2588
        %3580 = vmatprep.mubr.bf16.mxu0 %v973
        %3581 = vmatmul.mubr.bf16.gmra.mxu0 %v972
        %v3582 = vpop.f32.mrf.mxu0
        %v3583 = vadd.f32 %v959, %v3582
        %v3584 = vpop.f32.mrf.mxu0
        %v3585 = vadd.f32 %v959, %v3584
        %v3586 = vpop.f32.mrf.mxu0
        %v3587 = vpop.f32.mrf.mxu0
        %3588 = vdwg.mxu0
        %3589 = vmatprep.subr.bf16.mxu0 %v2709
        %3590 = vmatpush1.bf16.msra.mxu0 %v2708
        %3591 = vmatprep.subr.bf16.mxu0 %v2701
        %3592 = vmatpush1.bf16.msra.mxu0 %v2700
        %3593 = vmatprep.subr.bf16.mxu0 %v2693
        %3594 = vmatpush1.bf16.msra.mxu0 %v2692
        %3595 = vmatprep.subr.bf16.mxu0 %v2685
        %3596 = vmatpush1.bf16.msra.mxu0 %v2684
        %3597 = vmatprep.subr.bf16.mxu0 %v2677
        %3598 = vmatpush1.bf16.msra.mxu0 %v2676
        %3599 = vmatprep.subr.bf16.mxu0 %v2669
        %3600 = vmatpush1.bf16.msra.mxu0 %v2668
        %3601 = vmatprep.subr.bf16.mxu0 %v2661
        %3602 = vmatpush1.bf16.msra.mxu0 %v2660
        %3603 = vmatprep.subr.bf16.mxu0 %v2653
        %3604 = vmatpush1.bf16.msra.mxu0 %v2652
        %3605 = vmatprep.subr.bf16.mxu0 %v2773
        %3606 = vmatpush2.bf16.msra.mxu0 %v2772
        %3607 = vmatprep.subr.bf16.mxu0 %v2765
        %3608 = vmatpush2.bf16.msra.mxu0 %v2764
        %3609 = vmatprep.subr.bf16.mxu0 %v2757
        %3610 = vmatpush2.bf16.msra.mxu0 %v2756
        %3611 = vmatprep.subr.bf16.mxu0 %v2749
        %3612 = vmatpush2.bf16.msra.mxu0 %v2748
        %3613 = vmatprep.subr.bf16.mxu0 %v2741
        %3614 = vmatpush2.bf16.msra.mxu0 %v2740
        %3615 = vmatprep.subr.bf16.mxu0 %v2733
        %3616 = vmatpush2.bf16.msra.mxu0 %v2732
        %3617 = vmatprep.subr.bf16.mxu0 %v2725
        %3618 = vmatpush2.bf16.msra.mxu0 %v2724
        %3619 = vmatprep.subr.bf16.mxu0 %v2717
        %3620 = vmatpush2.bf16.msra.mxu0 %v2716
        %3621 = vmatprep.mubr.bf16.mxu0 %v975
        %3622 = vmatmul.mubr.bf16.gmra.mxu0 %v974
        %v3623 = vpop.f32.mrf.mxu0
        %v3624 = vadd.f32 %v3583, %v3623
        %v3625 = vpop.f32.mrf.mxu0
        %v3626 = vadd.f32 %v3585, %v3625
        %v3627 = vpop.f32.mrf.mxu0
        %v3628 = vpop.f32.mrf.mxu0
        %3629 = vdwg.mxu0
        %3630 = vmatprep.subr.bf16.mxu0 %v2837
        %3631 = vmatpush1.bf16.msra.mxu0 %v2836
        %3632 = vmatprep.subr.bf16.mxu0 %v2829
        %3633 = vmatpush1.bf16.msra.mxu0 %v2828
        %3634 = vmatprep.subr.bf16.mxu0 %v2821
        %3635 = vmatpush1.bf16.msra.mxu0 %v2820
        %3636 = vmatprep.subr.bf16.mxu0 %v2813
        %3637 = vmatpush1.bf16.msra.mxu0 %v2812
        %3638 = vmatprep.subr.bf16.mxu0 %v2805
        %3639 = vmatpush1.bf16.msra.mxu0 %v2804
        %3640 = vmatprep.subr.bf16.mxu0 %v2797
        %3641 = vmatpush1.bf16.msra.mxu0 %v2796
        %3642 = vmatprep.subr.bf16.mxu0 %v2789
        %3643 = vmatpush1.bf16.msra.mxu0 %v2788
        %3644 = vmatprep.subr.bf16.mxu0 %v2781
        %3645 = vmatpush1.bf16.msra.mxu0 %v2780
        %3646 = vmatprep.subr.bf16.mxu0 %v2901
        %3647 = vmatpush2.bf16.msra.mxu0 %v2900
        %3648 = vmatprep.subr.bf16.mxu0 %v2893
        %3649 = vmatpush2.bf16.msra.mxu0 %v2892
        %3650 = vmatprep.subr.bf16.mxu0 %v2885
        %3651 = vmatpush2.bf16.msra.mxu0 %v2884
        %3652 = vmatprep.subr.bf16.mxu0 %v2877
        %3653 = vmatpush2.bf16.msra.mxu0 %v2876
        %3654 = vmatprep.subr.bf16.mxu0 %v2869
        %3655 = vmatpush2.bf16.msra.mxu0 %v2868
        %3656 = vmatprep.subr.bf16.mxu0 %v2861
        %3657 = vmatpush2.bf16.msra.mxu0 %v2860
        %3658 = vmatprep.subr.bf16.mxu0 %v2853
        %3659 = vmatpush2.bf16.msra.mxu0 %v2852
        %3660 = vmatprep.subr.bf16.mxu0 %v2845
        %3661 = vmatpush2.bf16.msra.mxu0 %v2844
        %3662 = vmatprep.mubr.bf16.mxu0 %v977
        %3663 = vmatmul.mubr.bf16.gmra.mxu0 %v976
        %v3664 = vpop.f32.mrf.mxu0
        %v3665 = vadd.f32 %v3624, %v3664
        %v3666 = vpop.f32.mrf.mxu0
        %v3667 = vadd.f32 %v3626, %v3666
        %v3668 = vpop.f32.mrf.mxu0
        %v3669 = vpop.f32.mrf.mxu0
        %3670 = vdwg.mxu0
        %3671 = vmatprep.subr.bf16.mxu0 %v2965
        %3672 = vmatpush1.bf16.msra.mxu0 %v2964
        %3673 = vmatprep.subr.bf16.mxu0 %v2957
        %3674 = vmatpush1.bf16.msra.mxu0 %v2956
        %3675 = vmatprep.subr.bf16.mxu0 %v2949
        %3676 = vmatpush1.bf16.msra.mxu0 %v2948
        %3677 = vmatprep.subr.bf16.mxu0 %v2941
        %3678 = vmatpush1.bf16.msra.mxu0 %v2940
        %3679 = vmatprep.subr.bf16.mxu0 %v2933
        %3680 = vmatpush1.bf16.msra.mxu0 %v2932
        %3681 = vmatprep.subr.bf16.mxu0 %v2925
        %3682 = vmatpush1.bf16.msra.mxu0 %v2924
        %3683 = vmatprep.subr.bf16.mxu0 %v2917
        %3684 = vmatpush1.bf16.msra.mxu0 %v2916
        %3685 = vmatprep.subr.bf16.mxu0 %v2909
        %3686 = vmatpush1.bf16.msra.mxu0 %v2908
        %3687 = vmatprep.subr.bf16.mxu0 %v3029
        %3688 = vmatpush2.bf16.msra.mxu0 %v3028
        %3689 = vmatprep.subr.bf16.mxu0 %v3021
        %3690 = vmatpush2.bf16.msra.mxu0 %v3020
        %3691 = vmatprep.subr.bf16.mxu0 %v3013
        %3692 = vmatpush2.bf16.msra.mxu0 %v3012
        %3693 = vmatprep.subr.bf16.mxu0 %v3005
        %3694 = vmatpush2.bf16.msra.mxu0 %v3004
        %3695 = vmatprep.subr.bf16.mxu0 %v2997
        %3696 = vmatpush2.bf16.msra.mxu0 %v2996
        %3697 = vmatprep.subr.bf16.mxu0 %v2989
        %3698 = vmatpush2.bf16.msra.mxu0 %v2988
        %3699 = vmatprep.subr.bf16.mxu0 %v2981
        %3700 = vmatpush2.bf16.msra.mxu0 %v2980
        %3701 = vmatprep.subr.bf16.mxu0 %v2973
        %3702 = vmatpush2.bf16.msra.mxu0 %v2972
        %3703 = vmatprep.mubr.bf16.mxu0 %v979
        %3704 = vmatmul.mubr.bf16.gmra.mxu0 %v978
        %v3705 = vpop.f32.mrf.mxu0
        %v3706 = vadd.f32 %v3665, %v3705
        %v3707 = vpop.f32.mrf.mxu0
        %v3708 = vadd.f32 %v3667, %v3707
        %v3709 = vpop.f32.mrf.mxu0
        %v3710 = vpop.f32.mrf.mxu0
        %3711 = vdwg.mxu0
        %3712 = vmatprep.subr.bf16.mxu0 %v2583
        %3713 = vmatpush1.bf16.msra.mxu0 %v2582
        %3714 = vmatprep.subr.bf16.mxu0 %v2575
        %3715 = vmatpush1.bf16.msra.mxu0 %v2574
        %3716 = vmatprep.subr.bf16.mxu0 %v2567
        %3717 = vmatpush1.bf16.msra.mxu0 %v2566
        %3718 = vmatprep.subr.bf16.mxu0 %v2559
        %3719 = vmatpush1.bf16.msra.mxu0 %v2558
        %3720 = vmatprep.subr.bf16.mxu0 %v2551
        %3721 = vmatpush1.bf16.msra.mxu0 %v2550
        %3722 = vmatprep.subr.bf16.mxu0 %v2543
        %3723 = vmatpush1.bf16.msra.mxu0 %v2542
        %3724 = vmatprep.subr.bf16.mxu0 %v2535
        %3725 = vmatpush1.bf16.msra.mxu0 %v2534
        %3726 = vmatprep.subr.bf16.mxu0 %v2527
        %3727 = vmatpush1.bf16.msra.mxu0 %v2526
        %3728 = vmatprep.subr.bf16.mxu0 %v2647
        %3729 = vmatpush2.bf16.msra.mxu0 %v2646
        %3730 = vmatprep.subr.bf16.mxu0 %v2639
        %3731 = vmatpush2.bf16.msra.mxu0 %v2638
        %3732 = vmatprep.subr.bf16.mxu0 %v2631
        %3733 = vmatpush2.bf16.msra.mxu0 %v2630
        %3734 = vmatprep.subr.bf16.mxu0 %v2623
        %3735 = vmatpush2.bf16.msra.mxu0 %v2622
        %3736 = vmatprep.subr.bf16.mxu0 %v2615
        %3737 = vmatpush2.bf16.msra.mxu0 %v2614
        %3738 = vmatprep.subr.bf16.mxu0 %v2607
        %3739 = vmatpush2.bf16.msra.mxu0 %v2606
        %3740 = vmatprep.subr.bf16.mxu0 %v2599
        %3741 = vmatpush2.bf16.msra.mxu0 %v2598
        %3742 = vmatprep.subr.bf16.mxu0 %v2591
        %3743 = vmatpush2.bf16.msra.mxu0 %v2590
        %3744 = vmatprep.mubr.bf16.mxu0 %v973
        %3745 = vmatmul.mubr.bf16.gmra.mxu0 %v972
        %v3746 = vpop.f32.mrf.mxu0
        %v3747 = vadd.f32 %v959, %v3746
        %v3748 = vpop.f32.mrf.mxu0
        %v3749 = vadd.f32 %v959, %v3748
        %v3750 = vpop.f32.mrf.mxu0
        %v3751 = vpop.f32.mrf.mxu0
        %3752 = vdwg.mxu0
        %3753 = vmatprep.subr.bf16.mxu0 %v2711
        %3754 = vmatpush1.bf16.msra.mxu0 %v2710
        %3755 = vmatprep.subr.bf16.mxu0 %v2703
        %3756 = vmatpush1.bf16.msra.mxu0 %v2702
        %3757 = vmatprep.subr.bf16.mxu0 %v2695
        %3758 = vmatpush1.bf16.msra.mxu0 %v2694
        %3759 = vmatprep.subr.bf16.mxu0 %v2687
        %3760 = vmatpush1.bf16.msra.mxu0 %v2686
        %3761 = vmatprep.subr.bf16.mxu0 %v2679
        %3762 = vmatpush1.bf16.msra.mxu0 %v2678
        %3763 = vmatprep.subr.bf16.mxu0 %v2671
        %3764 = vmatpush1.bf16.msra.mxu0 %v2670
        %3765 = vmatprep.subr.bf16.mxu0 %v2663
        %3766 = vmatpush1.bf16.msra.mxu0 %v2662
        %3767 = vmatprep.subr.bf16.mxu0 %v2655
        %3768 = vmatpush1.bf16.msra.mxu0 %v2654
        %3769 = vmatprep.subr.bf16.mxu0 %v2775
        %3770 = vmatpush2.bf16.msra.mxu0 %v2774
        %3771 = vmatprep.subr.bf16.mxu0 %v2767
        %3772 = vmatpush2.bf16.msra.mxu0 %v2766
        %3773 = vmatprep.subr.bf16.mxu0 %v2759
        %3774 = vmatpush2.bf16.msra.mxu0 %v2758
        %3775 = vmatprep.subr.bf16.mxu0 %v2751
        %3776 = vmatpush2.bf16.msra.mxu0 %v2750
        %3777 = vmatprep.subr.bf16.mxu0 %v2743
        %3778 = vmatpush2.bf16.msra.mxu0 %v2742
        %3779 = vmatprep.subr.bf16.mxu0 %v2735
        %3780 = vmatpush2.bf16.msra.mxu0 %v2734
        %3781 = vmatprep.subr.bf16.mxu0 %v2727
        %3782 = vmatpush2.bf16.msra.mxu0 %v2726
        %3783 = vmatprep.subr.bf16.mxu0 %v2719
        %3784 = vmatpush2.bf16.msra.mxu0 %v2718
        %3785 = vmatprep.mubr.bf16.mxu0 %v975
        %3786 = vmatmul.mubr.bf16.gmra.mxu0 %v974
        %v3787 = vpop.f32.mrf.mxu0
        %v3788 = vadd.f32 %v3747, %v3787
        %v3789 = vpop.f32.mrf.mxu0
        %v3790 = vadd.f32 %v3749, %v3789
        %v3791 = vpop.f32.mrf.mxu0
        %v3792 = vpop.f32.mrf.mxu0
        %3793 = vdwg.mxu0
        %3794 = vmatprep.subr.bf16.mxu0 %v2839
        %3795 = vmatpush1.bf16.msra.mxu0 %v2838
        %3796 = vmatprep.subr.bf16.mxu0 %v2831
        %3797 = vmatpush1.bf16.msra.mxu0 %v2830
        %3798 = vmatprep.subr.bf16.mxu0 %v2823
        %3799 = vmatpush1.bf16.msra.mxu0 %v2822
        %3800 = vmatprep.subr.bf16.mxu0 %v2815
        %3801 = vmatpush1.bf16.msra.mxu0 %v2814
        %3802 = vmatprep.subr.bf16.mxu0 %v2807
        %3803 = vmatpush1.bf16.msra.mxu0 %v2806
        %3804 = vmatprep.subr.bf16.mxu0 %v2799
        %3805 = vmatpush1.bf16.msra.mxu0 %v2798
        %3806 = vmatprep.subr.bf16.mxu0 %v2791
        %3807 = vmatpush1.bf16.msra.mxu0 %v2790
        %3808 = vmatprep.subr.bf16.mxu0 %v2783
        %3809 = vmatpush1.bf16.msra.mxu0 %v2782
        %3810 = vmatprep.subr.bf16.mxu0 %v2903
        %3811 = vmatpush2.bf16.msra.mxu0 %v2902
        %3812 = vmatprep.subr.bf16.mxu0 %v2895
        %3813 = vmatpush2.bf16.msra.mxu0 %v2894
        %3814 = vmatprep.subr.bf16.mxu0 %v2887
        %3815 = vmatpush2.bf16.msra.mxu0 %v2886
        %3816 = vmatprep.subr.bf16.mxu0 %v2879
        %3817 = vmatpush2.bf16.msra.mxu0 %v2878
        %3818 = vmatprep.subr.bf16.mxu0 %v2871
        %3819 = vmatpush2.bf16.msra.mxu0 %v2870
        %3820 = vmatprep.subr.bf16.mxu0 %v2863
        %3821 = vmatpush2.bf16.msra.mxu0 %v2862
        %3822 = vmatprep.subr.bf16.mxu0 %v2855
        %3823 = vmatpush2.bf16.msra.mxu0 %v2854
        %3824 = vmatprep.subr.bf16.mxu0 %v2847
        %3825 = vmatpush2.bf16.msra.mxu0 %v2846
        %3826 = vmatprep.mubr.bf16.mxu0 %v977
        %3827 = vmatmul.mubr.bf16.gmra.mxu0 %v976
        %v3828 = vpop.f32.mrf.mxu0
        %v3829 = vadd.f32 %v3788, %v3828
        %v3830 = vpop.f32.mrf.mxu0
        %v3831 = vadd.f32 %v3790, %v3830
        %v3832 = vpop.f32.mrf.mxu0
        %v3833 = vpop.f32.mrf.mxu0
        %3834 = vdwg.mxu0
        %3835 = vmatprep.subr.bf16.mxu0 %v2967
        %3836 = vmatpush1.bf16.msra.mxu0 %v2966
        %3837 = vmatprep.subr.bf16.mxu0 %v2959
        %3838 = vmatpush1.bf16.msra.mxu0 %v2958
        %3839 = vmatprep.subr.bf16.mxu0 %v2951
        %3840 = vmatpush1.bf16.msra.mxu0 %v2950
        %3841 = vmatprep.subr.bf16.mxu0 %v2943
        %3842 = vmatpush1.bf16.msra.mxu0 %v2942
        %3843 = vmatprep.subr.bf16.mxu0 %v2935
        %3844 = vmatpush1.bf16.msra.mxu0 %v2934
        %3845 = vmatprep.subr.bf16.mxu0 %v2927
        %3846 = vmatpush1.bf16.msra.mxu0 %v2926
        %3847 = vmatprep.subr.bf16.mxu0 %v2919
        %3848 = vmatpush1.bf16.msra.mxu0 %v2918
        %3849 = vmatprep.subr.bf16.mxu0 %v2911
        %3850 = vmatpush1.bf16.msra.mxu0 %v2910
        %3851 = vmatprep.subr.bf16.mxu0 %v3031
        %3852 = vmatpush2.bf16.msra.mxu0 %v3030
        %3853 = vmatprep.subr.bf16.mxu0 %v3023
        %3854 = vmatpush2.bf16.msra.mxu0 %v3022
        %3855 = vmatprep.subr.bf16.mxu0 %v3015
        %3856 = vmatpush2.bf16.msra.mxu0 %v3014
        %3857 = vmatprep.subr.bf16.mxu0 %v3007
        %3858 = vmatpush2.bf16.msra.mxu0 %v3006
        %3859 = vmatprep.subr.bf16.mxu0 %v2999
        %3860 = vmatpush2.bf16.msra.mxu0 %v2998
        %3861 = vmatprep.subr.bf16.mxu0 %v2991
        %3862 = vmatpush2.bf16.msra.mxu0 %v2990
        %3863 = vmatprep.subr.bf16.mxu0 %v2983
        %3864 = vmatpush2.bf16.msra.mxu0 %v2982
        %3865 = vmatprep.subr.bf16.mxu0 %v2975
        %3866 = vmatpush2.bf16.msra.mxu0 %v2974
        %3867 = vmatprep.mubr.bf16.mxu0 %v979
        %3868 = vmatmul.mubr.bf16.gmra.mxu0 %v978
        %v3869 = vpop.f32.mrf.mxu0
        %v3870 = vadd.f32 %v3829, %v3869
        %v3871 = vpop.f32.mrf.mxu0
        %v3872 = vadd.f32 %v3831, %v3871
        %v3873 = vpop.f32.mrf.mxu0
        %v3874 = vpop.f32.mrf.mxu0
        %3875 = vdwg.mxu0
        %3876 = vmatprep.subr.bf16.mxu0 %v2585
        %3877 = vmatpush1.bf16.msra.mxu0 %v2584
        %3878 = vmatprep.subr.bf16.mxu0 %v2577
        %3879 = vmatpush1.bf16.msra.mxu0 %v2576
        %3880 = vmatprep.subr.bf16.mxu0 %v2569
        %3881 = vmatpush1.bf16.msra.mxu0 %v2568
        %3882 = vmatprep.subr.bf16.mxu0 %v2561
        %3883 = vmatpush1.bf16.msra.mxu0 %v2560
        %3884 = vmatprep.subr.bf16.mxu0 %v2553
        %3885 = vmatpush1.bf16.msra.mxu0 %v2552
        %3886 = vmatprep.subr.bf16.mxu0 %v2545
        %3887 = vmatpush1.bf16.msra.mxu0 %v2544
        %3888 = vmatprep.subr.bf16.mxu0 %v2537
        %3889 = vmatpush1.bf16.msra.mxu0 %v2536
        %3890 = vmatprep.subr.bf16.mxu0 %v2529
        %3891 = vmatpush1.bf16.msra.mxu0 %v2528
        %3892 = vmatprep.subr.bf16.mxu0 %v2649
        %3893 = vmatpush2.bf16.msra.mxu0 %v2648
        %3894 = vmatprep.subr.bf16.mxu0 %v2641
        %3895 = vmatpush2.bf16.msra.mxu0 %v2640
        %3896 = vmatprep.subr.bf16.mxu0 %v2633
        %3897 = vmatpush2.bf16.msra.mxu0 %v2632
        %3898 = vmatprep.subr.bf16.mxu0 %v2625
        %3899 = vmatpush2.bf16.msra.mxu0 %v2624
        %3900 = vmatprep.subr.bf16.mxu0 %v2617
        %3901 = vmatpush2.bf16.msra.mxu0 %v2616
        %3902 = vmatprep.subr.bf16.mxu0 %v2609
        %3903 = vmatpush2.bf16.msra.mxu0 %v2608
        %3904 = vmatprep.subr.bf16.mxu0 %v2601
        %3905 = vmatpush2.bf16.msra.mxu0 %v2600
        %3906 = vmatprep.subr.bf16.mxu0 %v2593
        %3907 = vmatpush2.bf16.msra.mxu0 %v2592
        %3908 = vmatprep.mubr.bf16.mxu0 %v973
        %3909 = vmatmul.mubr.bf16.gmra.mxu0 %v972
        %v3910 = vpop.f32.mrf.mxu0
        %v3911 = vadd.f32 %v959, %v3910
        %v3912 = vpop.f32.mrf.mxu0
        %v3913 = vadd.f32 %v959, %v3912
        %v3914 = vpop.f32.mrf.mxu0
        %v3915 = vpop.f32.mrf.mxu0
        %3916 = vdwg.mxu0
        %3917 = vmatprep.subr.bf16.mxu0 %v2713
        %3918 = vmatpush1.bf16.msra.mxu0 %v2712
        %3919 = vmatprep.subr.bf16.mxu0 %v2705
        %3920 = vmatpush1.bf16.msra.mxu0 %v2704
        %3921 = vmatprep.subr.bf16.mxu0 %v2697
        %3922 = vmatpush1.bf16.msra.mxu0 %v2696
        %3923 = vmatprep.subr.bf16.mxu0 %v2689
        %3924 = vmatpush1.bf16.msra.mxu0 %v2688
        %3925 = vmatprep.subr.bf16.mxu0 %v2681
        %3926 = vmatpush1.bf16.msra.mxu0 %v2680
        %3927 = vmatprep.subr.bf16.mxu0 %v2673
        %3928 = vmatpush1.bf16.msra.mxu0 %v2672
        %3929 = vmatprep.subr.bf16.mxu0 %v2665
        %3930 = vmatpush1.bf16.msra.mxu0 %v2664
        %3931 = vmatprep.subr.bf16.mxu0 %v2657
        %3932 = vmatpush1.bf16.msra.mxu0 %v2656
        %3933 = vmatprep.subr.bf16.mxu0 %v2777
        %3934 = vmatpush2.bf16.msra.mxu0 %v2776
        %3935 = vmatprep.subr.bf16.mxu0 %v2769
        %3936 = vmatpush2.bf16.msra.mxu0 %v2768
        %3937 = vmatprep.subr.bf16.mxu0 %v2761
        %3938 = vmatpush2.bf16.msra.mxu0 %v2760
        %3939 = vmatprep.subr.bf16.mxu0 %v2753
        %3940 = vmatpush2.bf16.msra.mxu0 %v2752
        %3941 = vmatprep.subr.bf16.mxu0 %v2745
        %3942 = vmatpush2.bf16.msra.mxu0 %v2744
        %3943 = vmatprep.subr.bf16.mxu0 %v2737
        %3944 = vmatpush2.bf16.msra.mxu0 %v2736
        %3945 = vmatprep.subr.bf16.mxu0 %v2729
        %3946 = vmatpush2.bf16.msra.mxu0 %v2728
        %3947 = vmatprep.subr.bf16.mxu0 %v2721
        %3948 = vmatpush2.bf16.msra.mxu0 %v2720
        %3949 = vmatprep.mubr.bf16.mxu0 %v975
        %3950 = vmatmul.mubr.bf16.gmra.mxu0 %v974
        %v3951 = vpop.f32.mrf.mxu0
        %v3952 = vadd.f32 %v3911, %v3951
        %v3953 = vpop.f32.mrf.mxu0
        %v3954 = vadd.f32 %v3913, %v3953
        %v3955 = vpop.f32.mrf.mxu0
        %v3956 = vpop.f32.mrf.mxu0
        %3957 = vdwg.mxu0
        %3958 = vmatprep.subr.bf16.mxu0 %v2841
        %3959 = vmatpush1.bf16.msra.mxu0 %v2840
        %3960 = vmatprep.subr.bf16.mxu0 %v2833
        %3961 = vmatpush1.bf16.msra.mxu0 %v2832
        %3962 = vmatprep.subr.bf16.mxu0 %v2825
        %3963 = vmatpush1.bf16.msra.mxu0 %v2824
        %3964 = vmatprep.subr.bf16.mxu0 %v2817
        %3965 = vmatpush1.bf16.msra.mxu0 %v2816
        %3966 = vmatprep.subr.bf16.mxu0 %v2809
        %3967 = vmatpush1.bf16.msra.mxu0 %v2808
        %3968 = vmatprep.subr.bf16.mxu0 %v2801
        %3969 = vmatpush1.bf16.msra.mxu0 %v2800
        %3970 = vmatprep.subr.bf16.mxu0 %v2793
        %3971 = vmatpush1.bf16.msra.mxu0 %v2792
        %3972 = vmatprep.subr.bf16.mxu0 %v2785
        %3973 = vmatpush1.bf16.msra.mxu0 %v2784
        %3974 = vmatprep.subr.bf16.mxu0 %v2905
        %3975 = vmatpush2.bf16.msra.mxu0 %v2904
        %3976 = vmatprep.subr.bf16.mxu0 %v2897
        %3977 = vmatpush2.bf16.msra.mxu0 %v2896
        %3978 = vmatprep.subr.bf16.mxu0 %v2889
        %3979 = vmatpush2.bf16.msra.mxu0 %v2888
        %3980 = vmatprep.subr.bf16.mxu0 %v2881
        %3981 = vmatpush2.bf16.msra.mxu0 %v2880
        %3982 = vmatprep.subr.bf16.mxu0 %v2873
        %3983 = vmatpush2.bf16.msra.mxu0 %v2872
        %3984 = vmatprep.subr.bf16.mxu0 %v2865
        %3985 = vmatpush2.bf16.msra.mxu0 %v2864
        %3986 = vmatprep.subr.bf16.mxu0 %v2857
        %3987 = vmatpush2.bf16.msra.mxu0 %v2856
        %3988 = vmatprep.subr.bf16.mxu0 %v2849
        %3989 = vmatpush2.bf16.msra.mxu0 %v2848
        %3990 = vmatprep.mubr.bf16.mxu0 %v977
        %3991 = vmatmul.mubr.bf16.gmra.mxu0 %v976
        %v3992 = vpop.f32.mrf.mxu0
        %v3993 = vadd.f32 %v3952, %v3992
        %v3994 = vpop.f32.mrf.mxu0
        %v3995 = vadd.f32 %v3954, %v3994
        %v3996 = vpop.f32.mrf.mxu0
        %v3997 = vpop.f32.mrf.mxu0
        %3998 = vdwg.mxu0
        %3999 = vmatprep.subr.bf16.mxu0 %v2969
        %4000 = vmatpush1.bf16.msra.mxu0 %v2968
        %4001 = vmatprep.subr.bf16.mxu0 %v2961
        %4002 = vmatpush1.bf16.msra.mxu0 %v2960
        %4003 = vmatprep.subr.bf16.mxu0 %v2953
        %4004 = vmatpush1.bf16.msra.mxu0 %v2952
        %4005 = vmatprep.subr.bf16.mxu0 %v2945
        %4006 = vmatpush1.bf16.msra.mxu0 %v2944
        %4007 = vmatprep.subr.bf16.mxu0 %v2937
        %4008 = vmatpush1.bf16.msra.mxu0 %v2936
        %4009 = vmatprep.subr.bf16.mxu0 %v2929
        %4010 = vmatpush1.bf16.msra.mxu0 %v2928
        %4011 = vmatprep.subr.bf16.mxu0 %v2921
        %4012 = vmatpush1.bf16.msra.mxu0 %v2920
        %4013 = vmatprep.subr.bf16.mxu0 %v2913
        %4014 = vmatpush1.bf16.msra.mxu0 %v2912
        %4015 = vmatprep.subr.bf16.mxu0 %v3033
        %4016 = vmatpush2.bf16.msra.mxu0 %v3032
        %4017 = vmatprep.subr.bf16.mxu0 %v3025
        %4018 = vmatpush2.bf16.msra.mxu0 %v3024
        %4019 = vmatprep.subr.bf16.mxu0 %v3017
        %4020 = vmatpush2.bf16.msra.mxu0 %v3016
        %4021 = vmatprep.subr.bf16.mxu0 %v3009
        %4022 = vmatpush2.bf16.msra.mxu0 %v3008
        %4023 = vmatprep.subr.bf16.mxu0 %v3001
        %4024 = vmatpush2.bf16.msra.mxu0 %v3000
        %4025 = vmatprep.subr.bf16.mxu0 %v2993
        %4026 = vmatpush2.bf16.msra.mxu0 %v2992
        %4027 = vmatprep.subr.bf16.mxu0 %v2985
        %4028 = vmatpush2.bf16.msra.mxu0 %v2984
        %4029 = vmatprep.subr.bf16.mxu0 %v2977
        %4030 = vmatpush2.bf16.msra.mxu0 %v2976
        %4031 = vmatprep.mubr.bf16.mxu0 %v979
        %4032 = vmatmul.mubr.bf16.gmra.mxu0 %v978
        %v4033 = vpop.f32.mrf.mxu0
        %v4034 = vadd.f32 %v3993, %v4033
        %v4035 = vpop.f32.mrf.mxu0
        %v4036 = vadd.f32 %v3995, %v4035
        %v4037 = vpop.f32.mrf.mxu0
        %v4038 = vpop.f32.mrf.mxu0
        %4039 = vdwg.mxu0
        %4040 = vmatprep.subr.bf16.mxu0 %v2587
        %4041 = vmatpush1.bf16.msra.mxu0 %v2586
        %4042 = vmatprep.subr.bf16.mxu0 %v2579
        %4043 = vmatpush1.bf16.msra.mxu0 %v2578
        %4044 = vmatprep.subr.bf16.mxu0 %v2571
        %4045 = vmatpush1.bf16.msra.mxu0 %v2570
        %4046 = vmatprep.subr.bf16.mxu0 %v2563
        %4047 = vmatpush1.bf16.msra.mxu0 %v2562
        %4048 = vmatprep.subr.bf16.mxu0 %v2555
        %4049 = vmatpush1.bf16.msra.mxu0 %v2554
        %4050 = vmatprep.subr.bf16.mxu0 %v2547
        %4051 = vmatpush1.bf16.msra.mxu0 %v2546
        %4052 = vmatprep.subr.bf16.mxu0 %v2539
        %4053 = vmatpush1.bf16.msra.mxu0 %v2538
        %4054 = vmatprep.subr.bf16.mxu0 %v2531
        %4055 = vmatpush1.bf16.msra.mxu0 %v2530
        %4056 = vmatprep.subr.bf16.mxu0 %v2651
        %4057 = vmatpush2.bf16.msra.mxu0 %v2650
        %4058 = vmatprep.subr.bf16.mxu0 %v2643
        %4059 = vmatpush2.bf16.msra.mxu0 %v2642
        %4060 = vmatprep.subr.bf16.mxu0 %v2635
        %4061 = vmatpush2.bf16.msra.mxu0 %v2634
        %4062 = vmatprep.subr.bf16.mxu0 %v2627
        %4063 = vmatpush2.bf16.msra.mxu0 %v2626
        %4064 = vmatprep.subr.bf16.mxu0 %v2619
        %4065 = vmatpush2.bf16.msra.mxu0 %v2618
        %4066 = vmatprep.subr.bf16.mxu0 %v2611
        %4067 = vmatpush2.bf16.msra.mxu0 %v2610
        %4068 = vmatprep.subr.bf16.mxu0 %v2603
        %4069 = vmatpush2.bf16.msra.mxu0 %v2602
        %4070 = vmatprep.subr.bf16.mxu0 %v2595
        %4071 = vmatpush2.bf16.msra.mxu0 %v2594
        %4072 = vmatprep.mubr.bf16.mxu0 %v973
        %4073 = vmatmul.mubr.bf16.gmra.mxu0 %v972
        %v4074 = vpop.f32.mrf.mxu0
        %v4075 = vadd.f32 %v959, %v4074
        %v4076 = vpop.f32.mrf.mxu0
        %v4077 = vadd.f32 %v959, %v4076
        %v4078 = vpop.f32.mrf.mxu0
        %v4079 = vpop.f32.mrf.mxu0
        %4080 = vdwg.mxu0
        %4081 = vmatprep.subr.bf16.mxu0 %v2715
        %4082 = vmatpush1.bf16.msra.mxu0 %v2714
        %4083 = vmatprep.subr.bf16.mxu0 %v2707
        %4084 = vmatpush1.bf16.msra.mxu0 %v2706
        %4085 = vmatprep.subr.bf16.mxu0 %v2699
        %4086 = vmatpush1.bf16.msra.mxu0 %v2698
        %4087 = vmatprep.subr.bf16.mxu0 %v2691
        %4088 = vmatpush1.bf16.msra.mxu0 %v2690
        %4089 = vmatprep.subr.bf16.mxu0 %v2683
        %4090 = vmatpush1.bf16.msra.mxu0 %v2682
        %4091 = vmatprep.subr.bf16.mxu0 %v2675
        %4092 = vmatpush1.bf16.msra.mxu0 %v2674
        %4093 = vmatprep.subr.bf16.mxu0 %v2667
        %4094 = vmatpush1.bf16.msra.mxu0 %v2666
        %4095 = vmatprep.subr.bf16.mxu0 %v2659
        %4096 = vmatpush1.bf16.msra.mxu0 %v2658
        %4097 = vmatprep.subr.bf16.mxu0 %v2779
        %4098 = vmatpush2.bf16.msra.mxu0 %v2778
        %4099 = vmatprep.subr.bf16.mxu0 %v2771
        %4100 = vmatpush2.bf16.msra.mxu0 %v2770
        %4101 = vmatprep.subr.bf16.mxu0 %v2763
        %4102 = vmatpush2.bf16.msra.mxu0 %v2762
        %4103 = vmatprep.subr.bf16.mxu0 %v2755
        %4104 = vmatpush2.bf16.msra.mxu0 %v2754
        %4105 = vmatprep.subr.bf16.mxu0 %v2747
        %4106 = vmatpush2.bf16.msra.mxu0 %v2746
        %4107 = vmatprep.subr.bf16.mxu0 %v2739
        %4108 = vmatpush2.bf16.msra.mxu0 %v2738
        %4109 = vmatprep.subr.bf16.mxu0 %v2731
        %4110 = vmatpush2.bf16.msra.mxu0 %v2730
        %4111 = vmatprep.subr.bf16.mxu0 %v2723
        %4112 = vmatpush2.bf16.msra.mxu0 %v2722
        %4113 = vmatprep.mubr.bf16.mxu0 %v975
        %4114 = vmatmul.mubr.bf16.gmra.mxu0 %v974
        %v4115 = vpop.f32.mrf.mxu0
        %v4116 = vadd.f32 %v4075, %v4115
        %v4117 = vpop.f32.mrf.mxu0
        %v4118 = vadd.f32 %v4077, %v4117
        %v4119 = vpop.f32.mrf.mxu0
        %v4120 = vpop.f32.mrf.mxu0
        %4121 = vdwg.mxu0
        %4122 = vmatprep.subr.bf16.mxu0 %v2843
        %4123 = vmatpush1.bf16.msra.mxu0 %v2842
        %4124 = vmatprep.subr.bf16.mxu0 %v2835
        %4125 = vmatpush1.bf16.msra.mxu0 %v2834
        %4126 = vmatprep.subr.bf16.mxu0 %v2827
        %4127 = vmatpush1.bf16.msra.mxu0 %v2826
        %4128 = vmatprep.subr.bf16.mxu0 %v2819
        %4129 = vmatpush1.bf16.msra.mxu0 %v2818
        %4130 = vmatprep.subr.bf16.mxu0 %v2811
        %4131 = vmatpush1.bf16.msra.mxu0 %v2810
        %4132 = vmatprep.subr.bf16.mxu0 %v2803
        %4133 = vmatpush1.bf16.msra.mxu0 %v2802
        %4134 = vmatprep.subr.bf16.mxu0 %v2795
        %4135 = vmatpush1.bf16.msra.mxu0 %v2794
        %4136 = vmatprep.subr.bf16.mxu0 %v2787
        %4137 = vmatpush1.bf16.msra.mxu0 %v2786
        %4138 = vmatprep.subr.bf16.mxu0 %v2907
        %4139 = vmatpush2.bf16.msra.mxu0 %v2906
        %4140 = vmatprep.subr.bf16.mxu0 %v2899
        %4141 = vmatpush2.bf16.msra.mxu0 %v2898
        %4142 = vmatprep.subr.bf16.mxu0 %v2891
        %4143 = vmatpush2.bf16.msra.mxu0 %v2890
        %4144 = vmatprep.subr.bf16.mxu0 %v2883
        %4145 = vmatpush2.bf16.msra.mxu0 %v2882
        %4146 = vmatprep.subr.bf16.mxu0 %v2875
        %4147 = vmatpush2.bf16.msra.mxu0 %v2874
        %4148 = vmatprep.subr.bf16.mxu0 %v2867
        %4149 = vmatpush2.bf16.msra.mxu0 %v2866
        %4150 = vmatprep.subr.bf16.mxu0 %v2859
        %4151 = vmatpush2.bf16.msra.mxu0 %v2858
        %4152 = vmatprep.subr.bf16.mxu0 %v2851
        %4153 = vmatpush2.bf16.msra.mxu0 %v2850
        %4154 = vmatprep.mubr.bf16.mxu0 %v977
        %4155 = vmatmul.mubr.bf16.gmra.mxu0 %v976
        %v4156 = vpop.f32.mrf.mxu0
        %v4157 = vadd.f32 %v4116, %v4156
        %v4158 = vpop.f32.mrf.mxu0
        %v4159 = vadd.f32 %v4118, %v4158
        %v4160 = vpop.f32.mrf.mxu0
        %v4161 = vpop.f32.mrf.mxu0
        %4162 = vdwg.mxu0
        %4163 = vmatprep.subr.bf16.mxu0 %v2971
        %4164 = vmatpush1.bf16.msra.mxu0 %v2970
        %4165 = vmatprep.subr.bf16.mxu0 %v2963
        %4166 = vmatpush1.bf16.msra.mxu0 %v2962
        %4167 = vmatprep.subr.bf16.mxu0 %v2955
        %4168 = vmatpush1.bf16.msra.mxu0 %v2954
        %4169 = vmatprep.subr.bf16.mxu0 %v2947
        %4170 = vmatpush1.bf16.msra.mxu0 %v2946
        %4171 = vmatprep.subr.bf16.mxu0 %v2939
        %4172 = vmatpush1.bf16.msra.mxu0 %v2938
        %4173 = vmatprep.subr.bf16.mxu0 %v2931
        %4174 = vmatpush1.bf16.msra.mxu0 %v2930
        %4175 = vmatprep.subr.bf16.mxu0 %v2923
        %4176 = vmatpush1.bf16.msra.mxu0 %v2922
        %4177 = vmatprep.subr.bf16.mxu0 %v2915
        %4178 = vmatpush1.bf16.msra.mxu0 %v2914
        %4179 = vmatprep.subr.bf16.mxu0 %v3035
        %4180 = vmatpush2.bf16.msra.mxu0 %v3034
        %4181 = vmatprep.subr.bf16.mxu0 %v3027
        %4182 = vmatpush2.bf16.msra.mxu0 %v3026
        %4183 = vmatprep.subr.bf16.mxu0 %v3019
        %4184 = vmatpush2.bf16.msra.mxu0 %v3018
        %4185 = vmatprep.subr.bf16.mxu0 %v3011
        %4186 = vmatpush2.bf16.msra.mxu0 %v3010
        %4187 = vmatprep.subr.bf16.mxu0 %v3003
        %4188 = vmatpush2.bf16.msra.mxu0 %v3002
        %4189 = vmatprep.subr.bf16.mxu0 %v2995
        %4190 = vmatpush2.bf16.msra.mxu0 %v2994
        %4191 = vmatprep.subr.bf16.mxu0 %v2987
        %4192 = vmatpush2.bf16.msra.mxu0 %v2986
        %4193 = vmatprep.subr.bf16.mxu0 %v2979
        %4194 = vmatpush2.bf16.msra.mxu0 %v2978
        %4195 = vmatprep.mubr.bf16.mxu0 %v979
        %4196 = vmatmul.mubr.bf16.gmra.mxu0 %v978
        %v4197 = vpop.f32.mrf.mxu0
        %v4198 = vadd.f32 %v4157, %v4197
        %v4199 = vpop.f32.mrf.mxu0
        %v4200 = vadd.f32 %v4159, %v4199
        %v4201 = vpop.f32.mrf.mxu0
        %v4202 = vpop.f32.mrf.mxu0
        %4203 = vdwg.mxu0
        %v4204 = vmax.f32 %v3706, 0.0
        %v4205 = vmax.f32 %v3708, 0.0
        %v4206 = vmax.f32 %v3870, 0.0
        %v4207 = vmax.f32 %v3872, 0.0
        %v4208 = vmax.f32 %v4034, 0.0
        %v4209 = vmax.f32 %v4036, 0.0
        %v4210 = vmax.f32 %v4198, 0.0
        %v4211 = vmax.f32 %v4200, 0.0
        %v4212 = vmax.f32 %v4204, %v4205
        %v4213 = vmax.f32 %v4212, %v4206
        %v4214 = vmax.f32 %v4213, %v4207
        %v4215 = vmax.f32 %v4214, %v4208
        %v4216 = vmax.f32 %v4215, %v4209
        %v4217 = vmax.f32 %v4216, %v4210
        %v4218 = vmax.f32 %v4217, %v4211
        %v4219 = vpack.c.bf16 %v4218, %v4218
        %v4220 = vld [vmem:[%s388] sm:$0xff]
        %v4221 = vld [vmem:[%s388 + $0x8] sm:$0xff]
        %v4222 = vld [vmem:[%s388 + $0x10] sm:$0xff]
        %v4223 = vld [vmem:[%s388 + $0x18] sm:$0xff]
        %v4224 = vld [vmem:[%s388 + $0x20] sm:$0xff]
        %v4225 = vld [vmem:[%s388 + $0x28] sm:$0xff]
        %v4226 = vld [vmem:[%s388 + $0x30] sm:$0xff]
        %v4227 = vld [vmem:[%s388 + $0x38] sm:$0xff]
        %v4228 = vld [vmem:[%s388 + $0x40] sm:$0xff]
        %v4229 = vld [vmem:[%s388 + $0x48] sm:$0xff]
        %v4230 = vld [vmem:[%s388 + $0x50] sm:$0xff]
        %v4231 = vld [vmem:[%s388 + $0x58] sm:$0xff]
        %v4232 = vld [vmem:[%s388 + $0x60] sm:$0xff]
        %v4233 = vld [vmem:[%s388 + $0x68] sm:$0xff]
        %v4234 = vld [vmem:[%s388 + $0x70] sm:$0xff]
        %v4235 = vld [vmem:[%s388 + $0x78] sm:$0xff]
        %v4252 = vunpack.c.l.b16 %v4220
        %v4253 = vunpack.c.h.b16 %v4220
        %v4254 = vunpack.c.l.b16 %v4221
        %v4255 = vunpack.c.h.b16 %v4221
        %v4256 = vunpack.c.l.b16 %v4222
        %v4257 = vunpack.c.h.b16 %v4222
        %v4258 = vunpack.c.l.b16 %v4223
        %v4259 = vunpack.c.h.b16 %v4223
        %v4260 = vunpack.c.l.b16 %v4224
        %v4261 = vunpack.c.h.b16 %v4224
        %v4262 = vunpack.c.l.b16 %v4225
        %v4263 = vunpack.c.h.b16 %v4225
        %v4264 = vunpack.c.l.b16 %v4226
        %v4265 = vunpack.c.h.b16 %v4226
        %v4266 = vunpack.c.l.b16 %v4227
        %v4267 = vunpack.c.h.b16 %v4227
        %v4268 = vunpack.c.l.b16 %v4228
        %v4269 = vunpack.c.h.b16 %v4228
        %v4270 = vunpack.c.l.b16 %v4229
        %v4271 = vunpack.c.h.b16 %v4229
        %v4272 = vunpack.c.l.b16 %v4230
        %v4273 = vunpack.c.h.b16 %v4230
        %v4274 = vunpack.c.l.b16 %v4231
        %v4275 = vunpack.c.h.b16 %v4231
        %v4276 = vunpack.c.l.b16 %v4232
        %v4277 = vunpack.c.h.b16 %v4232
        %v4278 = vunpack.c.l.b16 %v4233
        %v4279 = vunpack.c.h.b16 %v4233
        %v4280 = vunpack.c.l.b16 %v4234
        %v4281 = vunpack.c.h.b16 %v4234
        %v4282 = vunpack.c.l.b16 %v4235
        %v4283 = vunpack.c.h.b16 %v4235
        %v4284 = vpack.c.b16 %v4254, %v4252
        %v4285 = vpack.c.b16 %v4255, %v4253
        %v4286 = vpack.c.b16 %v4258, %v4256
        %v4287 = vpack.c.b16 %v4259, %v4257
        %v4288 = vpack.c.b16 %v4262, %v4260
        %v4289 = vpack.c.b16 %v4263, %v4261
        %v4290 = vpack.c.b16 %v4266, %v4264
        %v4291 = vpack.c.b16 %v4267, %v4265
        %v4292 = vpack.c.b16 %v4270, %v4268
        %v4293 = vpack.c.b16 %v4271, %v4269
        %v4294 = vpack.c.b16 %v4274, %v4272
        %v4295 = vpack.c.b16 %v4275, %v4273
        %v4296 = vpack.c.b16 %v4278, %v4276
        %v4297 = vpack.c.b16 %v4279, %v4277
        %v4298 = vpack.c.b16 %v4282, %v4280
        %v4299 = vpack.c.b16 %v4283, %v4281
        %4316 = vmatprep.subr.bf16.mxu0 %v4299
        %4317 = vmatpush1.bf16.msra.mxu0 %v4298
        %4318 = vmatprep.subr.bf16.mxu0 %v4297
        %4319 = vmatpush1.bf16.msra.mxu0 %v4296
        %4320 = vmatprep.subr.bf16.mxu0 %v4295
        %4321 = vmatpush1.bf16.msra.mxu0 %v4294
        %4322 = vmatprep.subr.bf16.mxu0 %v4293
        %4323 = vmatpush1.bf16.msra.mxu0 %v4292
        %4324 = vmatprep.subr.bf16.mxu0 %v4291
        %4325 = vmatpush1.bf16.msra.mxu0 %v4290
        %4326 = vmatprep.subr.bf16.mxu0 %v4289
        %4327 = vmatpush1.bf16.msra.mxu0 %v4288
        %4328 = vmatprep.subr.bf16.mxu0 %v4287
        %4329 = vmatpush1.bf16.msra.mxu0 %v4286
        %4330 = vmatprep.subr.bf16.mxu0 %v4285
        %4331 = vmatpush1.bf16.msra.mxu0 %v4284
        %4332 = vmatprep.subr.bf16.mxu0 0
        %4333 = vmatpush2.bf16.msra.mxu0 0
        %4334 = vmatprep.subr.bf16.mxu0 0
        %4335 = vmatpush2.bf16.msra.mxu0 0
        %4336 = vmatprep.subr.bf16.mxu0 0
        %4337 = vmatpush2.bf16.msra.mxu0 0
        %4338 = vmatprep.subr.bf16.mxu0 0
        %4339 = vmatpush2.bf16.msra.mxu0 0
        %4340 = vmatprep.subr.bf16.mxu0 0
        %4341 = vmatpush2.bf16.msra.mxu0 0
        %4342 = vmatprep.subr.bf16.mxu0 0
        %4343 = vmatpush2.bf16.msra.mxu0 0
        %4344 = vmatprep.subr.bf16.mxu0 0
        %4345 = vmatpush2.bf16.msra.mxu0 0
        %4346 = vmatprep.subr.bf16.mxu0 0
        %4347 = vmatpush2.bf16.msra.mxu0 0
        %4348 = vmatprep.mubr.bf16.mxu0 0
        %4349 = vmatmul.mubr.bf16.gmra.mxu0 %v4219
        %v4350 = vpop.f32.mrf.mxu0
        %v4351 = vadd.f32 0.0, %v4350
        %v4352 = vpop.f32.mrf.mxu0
        %v4353 = vadd.f32 0.0, %v4352
        %v4354 = vpop.f32.mrf.mxu0
        %v4355 = vpop.f32.mrf.mxu0
        %4356 = vdwg.mxu0
        %p4357 = scmp.eq.s32.totalorder %s29, 0
        // Predicated region
        $region85: #{akpgcn_forward.1} parent=55 // pred_check
          %p4358 = pneg %p4357
        $region86: #{akpgcn_forward.1} parent=55 // pred_check_branch
          %4360 = sbr.rel (%p4358) target = $region88
        $region87: #{akpgcn_forward.1} parent=55 // pred_region
          %v4361 = vld [vmem:[#allocation9] sm:$0x3]
          %v4363 = vlaneseq
          %v4364 = vshrl.u32 %v4363, 7
          %v4365 = vsub.s32 0, %v4364
          %v4366 = vrot.slane %v4361, %v4365
          %v4367 = vlaneseq
          %v4368 = vshrl.u32 %v4367, 7
          %v4369 = vsub.s32 1, %v4368
          %v4370 = vrot.slane %v4361, %v4369
          %v4373 = vadd.f32 %v4351, %v4366
          %v4374 = vadd.f32 %v4353, %v4370
          %4375 = vst [vmem:[#allocation2] sm:$0xff] %v4373
          %4376 = vst [vmem:[#allocation2 + $0x8] sm:$0xff] %v4374
        $region88: #{akpgcn_forward.1} parent=55 // pred_fallthru
          _
        %p4377 = scmp.ne.s32.totalorder %s29, 0
        // Predicated region
        $region89: #{akpgcn_forward.1} parent=55 // pred_check
          %p4378 = pneg %p4377
        $region90: #{akpgcn_forward.1} parent=55 // pred_check_branch
          %4380 = sbr.rel (%p4378) target = $region92
        $region91: #{akpgcn_forward.1} parent=55 // pred_region
          %v4381 = vld [vmem:[#allocation2] sm:$0xff]
          %v4382 = vld [vmem:[#allocation2 + $0x8] sm:$0xff]
          %v4383 = vadd.f32 %v4381, %v4351
          %v4384 = vadd.f32 %v4382, %v4353
          %4385 = vst [vmem:[#allocation2] sm:$0xff] %v4383
          %4386 = vst [vmem:[#allocation2 + $0x8] sm:$0xff] %v4384
        $region92: #{akpgcn_forward.1} parent=55 // pred_fallthru
          _
        %p4387 = scmp.eq.s32.totalorder %s29, 4
        // Predicated region
        $region93: #{akpgcn_forward.1} parent=55 // pred_check
          %p4388 = pneg %p4387
        $region94: #{akpgcn_forward.1} parent=55 // pred_check_branch
          %4390 = sbr.rel (%p4388) target = $region96
        $region95: #{akpgcn_forward.1} parent=55 // pred_region
          %v4391 = vld [vmem:[#allocation2] sm:$0xff]
          %v4392 = vld [vmem:[#allocation2 + $0x8] sm:$0xff]
          %v4393 = vmax.f32 %v4391, 0.0
          %v4394 = vmax.f32 %v4392, 0.0
          %v4395 = vld [vmem:[#allocation10] sm:$0x3]
          %v4396 = vld [vmem:[#allocation12] sm:$0x3]
          %v4398 = vlaneseq
          %v4399 = vshrl.u32 %v4398, 7
          %v4400 = vsub.s32 0, %v4399
          %v4401 = vrot.slane %v4395, %v4400
          %v4402 = vlaneseq
          %v4403 = vshrl.u32 %v4402, 7
          %v4404 = vsub.s32 1, %v4403
          %v4405 = vrot.slane %v4395, %v4404
          %v4408 = vmul.f32 %v4393, %v4401
          %v4409 = vmul.f32 %v4394, %v4405
          %v4411 = vlaneseq
          %v4412 = vshrl.u32 %v4411, 7
          %v4413 = vsub.s32 0, %v4412
          %v4414 = vrot.slane %v4396, %v4413
          %v4415 = vlaneseq
          %v4416 = vshrl.u32 %v4415, 7
          %v4417 = vsub.s32 1, %v4416
          %v4418 = vrot.slane %v4396, %v4417
          %v4421 = vadd.f32 %v4408, %v4414
          %v4422 = vadd.f32 %v4409, %v4418
          %v4423 = vmax.f32 %v4421, 0.0
          %v4424 = vmax.f32 %v4422, 0.0
          %v4425 = vpack.c.bf16 %v4423, %v4423
          %v4426 = vpack.c.bf16 %v4424, %v4424
          %v4427 = vld [vmem:[%s7] sm:$0xf]
          %v4428 = vld [vmem:[%s7 + $0x4] sm:$0xf]
          %v4429 = vld [vmem:[%s7 + $0x8] sm:$0xf]
          %v4430 = vld [vmem:[%s7 + $0xc] sm:$0xf]
          %v4431 = vld [vmem:[%s7 + $0x10] sm:$0xf]
          %v4432 = vld [vmem:[%s7 + $0x14] sm:$0xf]
          %v4433 = vld [vmem:[%s7 + $0x18] sm:$0xf]
          %v4434 = vld [vmem:[%s7 + $0x1c] sm:$0xf]
          %v4435 = vld [vmem:[%s7 + $0x20] sm:$0xf]
          %v4436 = vld [vmem:[%s7 + $0x24] sm:$0xf]
          %v4437 = vld [vmem:[%s7 + $0x28] sm:$0xf]
          %v4438 = vld [vmem:[%s7 + $0x2c] sm:$0xf]
          %v4439 = vld [vmem:[%s7 + $0x30] sm:$0xf]
          %v4440 = vld [vmem:[%s7 + $0x34] sm:$0xf]
          %v4441 = vld [vmem:[%s7 + $0x38] sm:$0xf]
          %v4442 = vld [vmem:[%s7 + $0x3c] sm:$0xf]
          %v4443 = vld [vmem:[%s7 + $0x40] sm:$0xf]
          %v4444 = vld [vmem:[%s7 + $0x44] sm:$0xf]
          %v4445 = vld [vmem:[%s7 + $0x48] sm:$0xf]
          %v4446 = vld [vmem:[%s7 + $0x4c] sm:$0xf]
          %v4447 = vld [vmem:[%s7 + $0x50] sm:$0xf]
          %v4448 = vld [vmem:[%s7 + $0x54] sm:$0xf]
          %v4449 = vld [vmem:[%s7 + $0x58] sm:$0xf]
          %v4450 = vld [vmem:[%s7 + $0x5c] sm:$0xf]
          %v4451 = vld [vmem:[%s7 + $0x60] sm:$0xf]
          %v4452 = vld [vmem:[%s7 + $0x64] sm:$0xf]
          %v4453 = vld [vmem:[%s7 + $0x68] sm:$0xf]
          %v4454 = vld [vmem:[%s7 + $0x6c] sm:$0xf]
          %v4455 = vld [vmem:[%s7 + $0x70] sm:$0xf]
          %v4456 = vld [vmem:[%s7 + $0x74] sm:$0xf]
          %v4457 = vld [vmem:[%s7 + $0x78] sm:$0xf]
          %v4458 = vld [vmem:[%s7 + $0x7c] sm:$0xf]
          %v4459 = vld [vmem:[#allocation13] sm:$0x1]
          %v4461 = vlaneseq
          %v4462 = vshrl.u32 %v4461, 7
          %v4463 = vsub.s32 0, %v4462
          %v4464 = vrot.slane %v4459, %v4463
          %v4498 = vunpack.c.l.b16 %v4427
          %v4499 = vunpack.c.l.b16 %v4428
          %v4500 = vunpack.c.l.b16 %v4429
          %v4501 = vunpack.c.l.b16 %v4430
          %v4502 = vunpack.c.l.b16 %v4431
          %v4503 = vunpack.c.l.b16 %v4432
          %v4504 = vunpack.c.l.b16 %v4433
          %v4505 = vunpack.c.l.b16 %v4434
          %v4506 = vunpack.c.l.b16 %v4435
          %v4507 = vunpack.c.l.b16 %v4436
          %v4508 = vunpack.c.l.b16 %v4437
          %v4509 = vunpack.c.l.b16 %v4438
          %v4510 = vunpack.c.l.b16 %v4439
          %v4511 = vunpack.c.l.b16 %v4440
          %v4512 = vunpack.c.l.b16 %v4441
          %v4513 = vunpack.c.l.b16 %v4442
          %v4514 = vunpack.c.l.b16 %v4443
          %v4515 = vunpack.c.l.b16 %v4444
          %v4516 = vunpack.c.l.b16 %v4445
          %v4517 = vunpack.c.l.b16 %v4446
          %v4518 = vunpack.c.l.b16 %v4447
          %v4519 = vunpack.c.l.b16 %v4448
          %v4520 = vunpack.c.l.b16 %v4449
          %v4521 = vunpack.c.l.b16 %v4450
          %v4522 = vunpack.c.l.b16 %v4451
          %v4523 = vunpack.c.l.b16 %v4452
          %v4524 = vunpack.c.l.b16 %v4453
          %v4525 = vunpack.c.l.b16 %v4454
          %v4526 = vunpack.c.l.b16 %v4455
          %v4527 = vunpack.c.l.b16 %v4456
          %v4528 = vunpack.c.l.b16 %v4457
          %v4529 = vunpack.c.l.b16 %v4458
          %v4530 = vpack.c.b16 %v4499, %v4498
          %v4531 = vpack.c.b16 %v4501, %v4500
          %v4532 = vpack.c.b16 %v4503, %v4502
          %v4533 = vpack.c.b16 %v4505, %v4504
          %v4534 = vpack.c.b16 %v4507, %v4506
          %v4535 = vpack.c.b16 %v4509, %v4508
          %v4536 = vpack.c.b16 %v4511, %v4510
          %v4537 = vpack.c.b16 %v4513, %v4512
          %v4538 = vpack.c.b16 %v4515, %v4514
          %v4539 = vpack.c.b16 %v4517, %v4516
          %v4540 = vpack.c.b16 %v4519, %v4518
          %v4541 = vpack.c.b16 %v4521, %v4520
          %v4542 = vpack.c.b16 %v4523, %v4522
          %v4543 = vpack.c.b16 %v4525, %v4524
          %v4544 = vpack.c.b16 %v4527, %v4526
          %v4545 = vpack.c.b16 %v4529, %v4528
          %4562 = vmatprep.subr.bf16.mxu0 0
          %4563 = vmatpush1.bf16.msra.mxu0 %v4537
          %4564 = vmatprep.subr.bf16.mxu0 0
          %4565 = vmatpush1.bf16.msra.mxu0 %v4536
          %4566 = vmatprep.subr.bf16.mxu0 0
          %4567 = vmatpush1.bf16.msra.mxu0 %v4535
          %4568 = vmatprep.subr.bf16.mxu0 0
          %4569 = vmatpush1.bf16.msra.mxu0 %v4534
          %4570 = vmatprep.subr.bf16.mxu0 0
          %4571 = vmatpush1.bf16.msra.mxu0 %v4533
          %4572 = vmatprep.subr.bf16.mxu0 0
          %4573 = vmatpush1.bf16.msra.mxu0 %v4532
          %4574 = vmatprep.subr.bf16.mxu0 0
          %4575 = vmatpush1.bf16.msra.mxu0 %v4531
          %4576 = vmatprep.subr.bf16.mxu0 0
          %4577 = vmatpush1.bf16.msra.mxu0 %v4530
          %4578 = vmatprep.subr.bf16.mxu0 0
          %4579 = vmatpush2.bf16.msra.mxu0 %v4545
          %4580 = vmatprep.subr.bf16.mxu0 0
          %4581 = vmatpush2.bf16.msra.mxu0 %v4544
          %4582 = vmatprep.subr.bf16.mxu0 0
          %4583 = vmatpush2.bf16.msra.mxu0 %v4543
          %4584 = vmatprep.subr.bf16.mxu0 0
          %4585 = vmatpush2.bf16.msra.mxu0 %v4542
          %4586 = vmatprep.subr.bf16.mxu0 0
          %4587 = vmatpush2.bf16.msra.mxu0 %v4541
          %4588 = vmatprep.subr.bf16.mxu0 0
          %4589 = vmatpush2.bf16.msra.mxu0 %v4540
          %4590 = vmatprep.subr.bf16.mxu0 0
          %4591 = vmatpush2.bf16.msra.mxu0 %v4539
          %4592 = vmatprep.subr.bf16.mxu0 0
          %4593 = vmatpush2.bf16.msra.mxu0 %v4538
          %4594 = vmatprep.mubr.bf16.mxu0 %v4426
          %4595 = vmatmul.mubr.bf16.gmra.mxu0 %v4425
          %v4596 = vpop.f32.mrf.mxu0
          %v4597 = vadd.f32 %v4464, %v4596
          %v4598 = vpop.f32.mrf.mxu0
          %v4599 = vpop.f32.mrf.mxu0
          %v4600 = vpop.f32.mrf.mxu0
          %4601 = vdwg.mxu0
          %vm4602 = vcmask 105472
          %4603 = vst.msk [vmem:[%s9] sm:$0xff] %vm4602, %v4597
        $region96: #{akpgcn_forward.1} parent=55 // pred_fallthru
          _
        // Predicated region
        $region97: #{akpgcn_forward.1} parent=55 // pred_check
          %p4604 = pneg %p241
        $region98: #{akpgcn_forward.1} parent=55 // pred_check_branch
          %4606 = sbr.rel (%p4604) target = $region100
        $region99: #{akpgcn_forward.1} parent=55 // pred_region
          _
        $region100: #{akpgcn_forward.1} parent=55 // pred_fallthru
          _
        // Predicated region
        $region101: #{akpgcn_forward.1} parent=55 // pred_check
          %p4607 = pneg %p241
        $region102: #{akpgcn_forward.1} parent=55 // pred_check_branch
          %4609 = sbr.rel (%p4607) target = $region104
        $region103: #{akpgcn_forward.1} parent=55 // pred_region
          _
        $region104: #{akpgcn_forward.1} parent=55 // pred_fallthru
          _
      $region56: #{akpgcn_forward.1} parent=5 // pred_fallthru
        _
      %p4610 = scmp.le.s32.totalorder 2, %s24
      // Predicated region
      $region105: #{akpgcn_forward.1} parent=5 // pred_check
        %p4611 = pneg %p4610
      $region106: #{akpgcn_forward.1} parent=5 // pred_check_branch
        %4613 = sbr.rel (%p4611) target = $region108
      $region107: #{akpgcn_forward.1} parent=5 // pred_region
        %s4614 = ssub.s32 %s24, 2
      $region108: #{akpgcn_forward.1} parent=5 // pred_fallthru
        _
    $region6: #{akpgcn_forward.1} parent=1 // loop_footer
      %s28 = sadd.s32 1, %s24
    $region7: #{akpgcn_forward.1} parent=1 // loop_footer_branch
      %23 = sbr.rel target = $region3
    $region8: #{akpgcn_forward.1} parent=1 // loop_exit
      _
    %4615 = vsyncpa [#allocation4], 1
    %s4616 = scalar_lea.sflag [#allocation4], 1
    %4617 = vsyncpa %s4616, 1
    %4618 = vsyncpa [#allocation8], 1
    %s4619 = scalar_lea.sflag [#allocation8], 1
    %4620 = vsyncpa %s4619, 1
    %4621 = vsyncpa [#allocation11], 1
    %4622 = vsyncpa [#allocation14], 1
    %4623 = vsyncpa [#allocation5], 1
    %s4624 = scalar_lea.sflag [#allocation5], 1
    %4625 = vsyncpa %s4624, 1

</llo_original>
